<compile_context>
chip_gen: v7x
topology: tpu7x:2x2x1
jax: 0.10.0
libtpu: 0.0.40
codegen_flags: <defaults>
</compile_context>

<pallas_src>
import jax
import jax.numpy as jnp
from jax.experimental import pallas as pl
from jax.experimental.pallas import tpu as pltpu

# ---------------- small synthetic BERT config ----------------
VOCAB = 100
HIDDEN = 32               # true hidden size
HP = 128                  # hidden padded to one full lane tile
N_LAYERS = 2
N_HEADS = 2
HEAD_DIM = HIDDEN // N_HEADS   # 16
SEG = 128                 # per-head padded lane segment (128-aligned slices)
INTERMEDIATE = 64
IP = 128                  # FFN intermediate padded to lanes
MAX_POS = 16
TYPE_VOCAB = 2
NUM_CLASSES = 7           # ('anger','disgust','fear','joy','neutral','sadness','surprise')
PAD_OUT = 128             # lane-dense classifier output width
SEQ = 8
BATCH = 2
LN_EPS = 1e-12


# ---------------- in-kernel helpers ----------------
def _layernorm(x, gamma, beta, eps=LN_EPS):
    """LayerNorm over the TRUE hidden width (HIDDEN) on an HP-padded slab.

    Pad lanes of x are zero, so sum(x)/HIDDEN and sum(x*x)/HIDDEN are exact
    statistics of the real lanes; pad lanes of gamma/beta are zero, so the
    output's pad lanes stay exactly zero.
    """
    inv_n = 1.0 / HIDDEN
    mean = jnp.sum(x, axis=-1, keepdims=True) * inv_n
    msq = jnp.sum(x * x, axis=-1, keepdims=True) * inv_n
    var = msq - mean * mean
    return (x - mean) * jax.lax.rsqrt(var + eps) * gamma + beta


def _mm(a, b):
    """2-D MXU matmul: bf16 inputs, f32 accumulate."""
    return jnp.dot(a.astype(jnp.bfloat16), b.astype(jnp.bfloat16),
                   preferred_element_type=jnp.float32)


def _mm_nt(a, b):
    """a @ b.T as a dot_general (no materialized transpose), bf16 -> f32."""
    return jax.lax.dot_general(a.astype(jnp.bfloat16), b.astype(jnp.bfloat16),
                               (((1,), (1,)), ((), ())),
                               preferred_element_type=jnp.float32)


# ---------------- single fused forward kernel (whole batch, no grid) --------
def bert_forward_kernel(emb_ref, bias_ref,
                        emb_g_ref, emb_b_ref,
                        wqkv_ref, bqkv_ref, wo_ref, bo_ref,
                        ln1g_ref, ln1b_ref, w1_ref, b1_ref, w2_ref, b2_ref,
                        ln2g_ref, ln2b_ref,
                        wp_ref, bp_ref, wc_ref, bc_ref,
                        out_ref):
    n_rows = emb_ref.shape[0]          # B*S (static)
    n_batch = n_rows // SEQ

    # --- embedding LayerNorm; x stays resident in VMEM/vregs for the whole fwd
    x = _layernorm(emb_ref[...], emb_g_ref[...], emb_b_ref[...])   # (B*S, HP)

    # additive attention bias (block-diagonal over batch + key padding mask),
    # computed once in the wrapper, reused across all layers / heads
    bias = bias_ref[...]                                           # (B*S, B*S)

    scale = 1.0 / (HEAD_DIM ** 0.5)

    # TODO(synk): at real bert-base depth replace the static unroll with a
    # layer grid axis / lax.fori_loop and per-layer weight streaming.
    for li in range(N_LAYERS):
        # fused QKV projection: one (HP, 3*N_HEADS*SEG) bf16 matmul; each
        # head's Q/K/V lands in its own 128-lane-aligned segment.
        qkv = _mm(x, wqkv_ref[li]) + bqkv_ref[li]                  # (B*S, 768)

        ctx = []
        for h in range(N_HEADS):
            q_h = qkv[:, (0 * N_HEADS + h) * SEG:(0 * N_HEADS + h + 1) * SEG]
            k_h = qkv[:, (1 * N_HEADS + h) * SEG:(1 * N_HEADS + h + 1) * SEG]
            v_h = qkv[:, (2 * N_HEADS + h) * SEG:(2 * N_HEADS + h + 1) * SEG]
            s = _mm_nt(q_h, k_h) * scale + bias                    # (B*S, B*S)
            s = s - jnp.max(s, axis=-1, keepdims=True)
            e = jnp.exp(s)
            p = e * pl.reciprocal(jnp.sum(e, axis=-1, keepdims=True), approx=True)
            ctx.append(_mm(p, v_h))                                # (B*S, SEG)
        ctx_cat = jnp.concatenate(ctx, axis=-1)                    # (B*S, N_HEADS*SEG)

        attn = _mm(ctx_cat, wo_ref[li]) + bo_ref[li]               # (B*S, HP)
        x = _layernorm(x + attn, ln1g_ref[li], ln1b_ref[li])

        # feed-forward (intermediate padded to IP lanes; pad lanes stay 0)
        hmid = _mm(x, w1_ref[li]) + b1_ref[li]                     # (B*S, IP)
        # TODO(synk): HF bert-base uses exact erf GELU; tanh-approx GELU here.
        hmid = jax.nn.gelu(hmid)
        ffn = _mm(hmid, w2_ref[li]) + b2_ref[li]                   # (B*S, HP)
        x = _layernorm(x + ffn, ln2g_ref[li], ln2b_ref[li])

    # --- pooler tanh(Linear) on each sequence's [CLS] row + emotion head -----
    cls_rows = [x[b * SEQ:b * SEQ + 1, :] for b in range(n_batch)]  # 8-aligned rows
    cls = jnp.concatenate(cls_rows, axis=0)                         # (B, HP)
    pooled = jnp.tanh(_mm(cls, wp_ref[...]) + bp_ref[...])          # (B, HP)
    logits = _mm(pooled, wc_ref[...]) + bc_ref[...]                 # (B, 128); pad bias -1e30
    logits = logits - jnp.max(logits, axis=-1, keepdims=True)
    e = jnp.exp(logits)
    out_ref[...] = e / jnp.sum(e, axis=-1, keepdims=True)           # exact recip


def bert_forward_pallas(params, emb, bias):
    B = emb.shape[0] // SEQ
    vmem = pl.BlockSpec(memory_space=pltpu.MemorySpace.VMEM)

    out = pl.pallas_call(
        bert_forward_kernel,
        out_shape=jax.ShapeDtypeStruct((B, PAD_OUT), jnp.float32),
        in_specs=[vmem] * 20,
        out_specs=vmem,
        compiler_params=pltpu.CompilerParams(
            vmem_limit_bytes=48 * 1024 * 1024),
    )(emb, bias,
      params['emb_ln_g'], params['emb_ln_b'],
      params['wqkv'], params['bqkv'], params['wo'], params['bo'],
      params['ln1_g'], params['ln1_b'], params['w1'], params['b1'],
      params['w2'], params['b2'], params['ln2_g'], params['ln2_b'],
      params['pool_w'], params['pool_b'], params['cls_w'], params['cls_b'])

    return out[:, :NUM_CLASSES]          # slice off lane padding


# ---------------- deterministic parameter init (padded layouts) -------------
def init_params(key):
    def nrm(k, shape, std=0.02):
        return (std * jax.random.normal(k, shape)).astype(jnp.float32)

    def pad2(a, rows, cols):
        out = jnp.zeros((rows, cols), jnp.float32)
        return out.at[:a.shape[0], :a.shape[1]].set(a)

    keys = jax.random.split(key, 8 + N_LAYERS)

    wqkv, bqkv, wo_l, bo_l = [], [], [], []
    ln1g, ln1b, w1_l, b1_l, w2_l, b2_l, ln2g, ln2b = [], [], [], [], [], [], [], []

    gamma_pad = jnp.zeros((1, HP), jnp.float32).at[:, :HIDDEN].set(1.0)
    beta_pad = jnp.zeros((1, HP), jnp.float32)

    for li in range(N_LAYERS):
        lk = jax.random.split(keys[8 + li], 6)
        wq = nrm(lk[0], (HIDDEN, HIDDEN))
        wk = nrm(lk[1], (HIDDEN, HIDDEN))
        wv = nrm(lk[2], (HIDDEN, HIDDEN))

        # fused QKV with each head's output in its own 128-lane segment:
        # layout [Q_h0 | Q_h1 | K_h0 | K_h1 | V_h0 | V_h1], each SEG=128 wide
        wq_pad = jnp.zeros((HP, 3 * N_HEADS * SEG), jnp.float32)
        for which, wm in enumerate((wq, wk, wv)):
            for h in range(N_HEADS):
                c0 = (which * N_HEADS + h) * SEG
                wq_pad = wq_pad.at[:HIDDEN, c0:c0 + HEAD_DIM].set(
                    wm[:, h * HEAD_DIM:(h + 1) * HEAD_DIM])
        wqkv.append(wq_pad)
        bqkv.append(jnp.zeros((1, 3 * N_HEADS * SEG), jnp.float32))

        # Wo re-laid-out to consume the concatenated per-head-segment context
        wo = nrm(lk[3], (HIDDEN, HIDDEN))
        wo_pad = jnp.zeros((N_HEADS * SEG, HP), jnp.float32)
        for h in range(N_HEADS):
            wo_pad = wo_pad.at[h * SEG:h * SEG + HEAD_DIM, :HIDDEN].set(
                wo[h * HEAD_DIM:(h + 1) * HEAD_DIM, :])
        wo_l.append(wo_pad)
        bo_l.append(jnp.zeros((1, HP), jnp.float32))

        ln1g.append(gamma_pad)
        ln1b.append(beta_pad)
        w1_l.append(pad2(nrm(lk[4], (HIDDEN, INTERMEDIATE)), HP, IP))
        b1_l.append(jnp.zeros((1, IP), jnp.float32))
        w2_l.append(pad2(nrm(lk[5], (INTERMEDIATE, HIDDEN)), IP, HP))
        b2_l.append(jnp.zeros((1, HP), jnp.float32))
        ln2g.append(gamma_pad)
        ln2b.append(beta_pad)

    def sbf16(xs):
        return jnp.stack(xs).astype(jnp.bfloat16)

    def sf32(xs):
        return jnp.stack(xs)

    # lane-dense classifier: pad to 128 cols, pad-bias = -1e30 so softmax -> 0
    cls_w = nrm(keys[4], (HIDDEN, NUM_CLASSES))
    cls_w_pad = pad2(cls_w, HP, PAD_OUT)
    cls_b_pad = jnp.full((1, PAD_OUT), -1e30, jnp.float32).at[:, :NUM_CLASSES].set(0.0)

    return {
        # embedding tables padded to HP lanes (pad lanes are zero)
        'word_emb': pad2(nrm(keys[0], (VOCAB, HIDDEN)), VOCAB, HP),
        'pos_emb': pad2(nrm(keys[1], (MAX_POS, HIDDEN)), MAX_POS, HP),
        'type_emb': pad2(nrm(keys[2], (TYPE_VOCAB, HIDDEN)), TYPE_VOCAB, HP),
        'emb_ln_g': gamma_pad,
        'emb_ln_b': beta_pad,
        'wqkv': sbf16(wqkv), 'bqkv': sf32(bqkv),
        'wo': sbf16(wo_l), 'bo': sf32(bo_l),
        'ln1_g': sf32(ln1g), 'ln1_b': sf32(ln1b),
        'w1': sbf16(w1_l), 'b1': sf32(b1_l),
        'w2': sbf16(w2_l), 'b2': sf32(b2_l),
        'ln2_g': sf32(ln2g), 'ln2_b': sf32(ln2b),
        'pool_w': pad2(nrm(keys[3], (HIDDEN, HIDDEN)), HP, HP).astype(jnp.bfloat16),
        'pool_b': jnp.zeros((1, HP), jnp.float32),
        'cls_w': cls_w_pad.astype(jnp.bfloat16),
        'cls_b': cls_b_pad,
    }


# ---------------- full forward (BERTBase.forward equivalent) ----------------
@jax.jit
def bert_base_forward(params, input_ids, attention_mask, token_type_ids):
    B, S = input_ids.shape
    # glue: embedding table gathers + summation in plain JAX
    word_e = jnp.take(params['word_emb'], input_ids, axis=0)        # (B,S,HP)
    type_e = jnp.take(params['type_emb'], token_type_ids, axis=0)   # (B,S,HP)
    pos_e = params['pos_emb'][:S][None]                             # (1,S,HP)
    emb = (word_e + type_e + pos_e).reshape(B * S, HP)              # (B*S,HP)

    # additive attention bias: block-diagonal over batch + key padding mask
    row_batch = jnp.repeat(jnp.arange(B), S)                        # (B*S,)
    same = row_batch[:, None] == row_batch[None, :]                 # (B*S,B*S)
    key_valid = (attention_mask.reshape(-1) > 0)[None, :]           # (1,B*S)
    bias = jnp.where(same & key_valid, 0.0, -1e9).astype(jnp.float32)

    emotion = bert_forward_pallas(params, emb, bias)                # (B, 7)
    return emotion, None                                            # matches (emotion, None)


if __name__ == "__main__":
    key = jax.random.PRNGKey(0)
    pkey, ikey = jax.random.split(key)
    params = init_params(pkey)

    input_ids = jax.random.randint(ikey, (BATCH, SEQ), 0, VOCAB, dtype=jnp.int32)
    attention_mask = jnp.array([[1] * SEQ, [1] * (SEQ - 2) + [0] * 2], dtype=jnp.int32)
    token_type_ids = jnp.zeros((BATCH, SEQ), dtype=jnp.int32)

    emotion, _ = bert_base_forward(params, input_ids, attention_mask, token_type_ids)
    emotion = jax.block_until_ready(emotion)

    assert emotion.shape == (BATCH, NUM_CLASSES)
    assert bool(jnp.all(jnp.isfinite(emotion)))
    # softmax rows should sum to ~1 (final softmax uses exact f32 division)
    assert bool(jnp.allclose(jnp.sum(emotion, axis=-1), 1.0, atol=1e-5))
    print("KERNEL_OK")
</pallas_src>

<mosaic_0001>
module attributes {stable_mosaic.version = 11 : i64} {
  func.func @bert_forward_kernel(%arg0: memref<16x128xf32, #tpu.memory_space<vmem>>, %arg1: memref<16x16xf32, #tpu.memory_space<vmem>>, %arg2: memref<1x128xf32, #tpu.memory_space<vmem>>, %arg3: memref<1x128xf32, #tpu.memory_space<vmem>>, %arg4: memref<2x128x768xbf16, #tpu.memory_space<vmem>>, %arg5: memref<2x1x768xf32, #tpu.memory_space<vmem>>, %arg6: memref<2x256x128xbf16, #tpu.memory_space<vmem>>, %arg7: memref<2x1x128xf32, #tpu.memory_space<vmem>>, %arg8: memref<2x1x128xf32, #tpu.memory_space<vmem>>, %arg9: memref<2x1x128xf32, #tpu.memory_space<vmem>>, %arg10: memref<2x128x128xbf16, #tpu.memory_space<vmem>>, %arg11: memref<2x1x128xf32, #tpu.memory_space<vmem>>, %arg12: memref<2x128x128xbf16, #tpu.memory_space<vmem>>, %arg13: memref<2x1x128xf32, #tpu.memory_space<vmem>>, %arg14: memref<2x1x128xf32, #tpu.memory_space<vmem>>, %arg15: memref<2x1x128xf32, #tpu.memory_space<vmem>>, %arg16: memref<128x128xbf16, #tpu.memory_space<vmem>>, %arg17: memref<1x128xf32, #tpu.memory_space<vmem>>, %arg18: memref<128x128xbf16, #tpu.memory_space<vmem>>, %arg19: memref<1x128xf32, #tpu.memory_space<vmem>>, %arg20: memref<2x128xf32, #tpu.memory_space<vmem>>) attributes {dimension_semantics = [], scalar_prefetch = 0 : i64, scratch_operands = 0 : i64, tpu.core_type = #tpu.core_type<tc>} {
    %c0 = arith.constant 0 : index
    %c0_0 = arith.constant 0 : index
    %0 = vector.load %arg0[%c0, %c0_0] : memref<16x128xf32, #tpu.memory_space<vmem>>, vector<16x128xf32>
    %c0_1 = arith.constant 0 : index
    %c0_2 = arith.constant 0 : index
    %1 = vector.load %arg2[%c0_1, %c0_2] : memref<1x128xf32, #tpu.memory_space<vmem>>, vector<1x128xf32>
    %c0_3 = arith.constant 0 : index
    %c0_4 = arith.constant 0 : index
    %2 = vector.load %arg3[%c0_3, %c0_4] : memref<1x128xf32, #tpu.memory_space<vmem>>, vector<1x128xf32>
    %cst = arith.constant dense<0.000000e+00> : vector<16xf32>
    %3 = vector.multi_reduction <add>, %0, %cst [1] : vector<16x128xf32> to vector<16xf32>
    %4 = vector.shape_cast %3 : vector<16xf32> to vector<16x1xf32>
    %cst_5 = arith.constant 3.125000e-02 : f32
    %5 = vector.broadcast %cst_5 : f32 to vector<16x1xf32>
    %6 = arith.mulf %4, %5 : vector<16x1xf32>
    %7 = arith.mulf %0, %0 : vector<16x128xf32>
    %cst_6 = arith.constant dense<0.000000e+00> : vector<16xf32>
    %8 = vector.multi_reduction <add>, %7, %cst_6 [1] : vector<16x128xf32> to vector<16xf32>
    %9 = vector.shape_cast %8 : vector<16xf32> to vector<16x1xf32>
    %cst_7 = arith.constant 3.125000e-02 : f32
    %10 = vector.broadcast %cst_7 : f32 to vector<16x1xf32>
    %11 = arith.mulf %9, %10 : vector<16x1xf32>
    %12 = arith.mulf %6, %6 : vector<16x1xf32>
    %13 = arith.subf %11, %12 : vector<16x1xf32>
    %14 = vector.broadcast %6 : vector<16x1xf32> to vector<16x128xf32>
    %15 = arith.subf %0, %14 : vector<16x128xf32>
    %cst_8 = arith.constant 9.99999996E-13 : f32
    %16 = vector.broadcast %cst_8 : f32 to vector<16x1xf32>
    %17 = arith.addf %13, %16 : vector<16x1xf32>
    %18 = math.rsqrt %17 : vector<16x1xf32>
    %19 = vector.broadcast %18 : vector<16x1xf32> to vector<16x128xf32>
    %20 = arith.mulf %15, %19 : vector<16x128xf32>
    %21 = vector.broadcast %1 : vector<1x128xf32> to vector<16x128xf32>
    %22 = arith.mulf %20, %21 : vector<16x128xf32>
    %23 = vector.broadcast %2 : vector<1x128xf32> to vector<16x128xf32>
    %24 = arith.addf %22, %23 : vector<16x128xf32>
    %c0_9 = arith.constant 0 : index
    %c0_10 = arith.constant 0 : index
    %25 = vector.load %arg1[%c0_9, %c0_10] : memref<16x16xf32, #tpu.memory_space<vmem>>, vector<16x16xf32>
    %c0_11 = arith.constant 0 : index
    %c0_12 = arith.constant 0 : index
    %c0_13 = arith.constant 0 : index
    %26 = vector.load %arg4[%c0_11, %c0_12, %c0_13] : memref<2x128x768xbf16, #tpu.memory_space<vmem>>, vector<1x128x768xbf16>
    %27 = vector.shape_cast %26 : vector<1x128x768xbf16> to vector<128x768xbf16>
    %28 = arith.truncf %24 : vector<16x128xf32> to vector<16x128xbf16>
    %cst_14 = arith.constant dense<0.000000e+00> : vector<16x768xf32>
    %29 = tpu.matmul %28, %27, %cst_14 {dimension_numbers = #tpu.dot_dimension_numbers<[1], [0], [0], [1], [0, 0, 1, 1], [], []>} : vector<16x128xbf16>, vector<128x768xbf16>, vector<16x768xf32> -> vector<16x768xf32>
    %c0_15 = arith.constant 0 : index
    %c0_16 = arith.constant 0 : index
    %c0_17 = arith.constant 0 : index
    %30 = vector.load %arg5[%c0_15, %c0_16, %c0_17] : memref<2x1x768xf32, #tpu.memory_space<vmem>>, vector<1x1x768xf32>
    %31 = vector.shape_cast %30 : vector<1x1x768xf32> to vector<1x768xf32>
    %32 = vector.broadcast %31 : vector<1x768xf32> to vector<16x768xf32>
    %33 = arith.addf %29, %32 : vector<16x768xf32>
    %34 = vector.extract_strided_slice %33 {offsets = [0, 0], sizes = [16, 128], strides = [1, 1]} : vector<16x768xf32> to vector<16x128xf32>
    %35 = vector.extract_strided_slice %33 {offsets = [0, 256], sizes = [16, 128], strides = [1, 1]} : vector<16x768xf32> to vector<16x128xf32>
    %36 = vector.extract_strided_slice %33 {offsets = [0, 512], sizes = [16, 128], strides = [1, 1]} : vector<16x768xf32> to vector<16x128xf32>
    %37 = arith.truncf %34 : vector<16x128xf32> to vector<16x128xbf16>
    %38 = arith.truncf %35 : vector<16x128xf32> to vector<16x128xbf16>
    %cst_18 = arith.constant dense<0.000000e+00> : vector<16x16xf32>
    %39 = tpu.matmul %37, %38, %cst_18 {dimension_numbers = #tpu.dot_dimension_numbers<[1], [1], [0], [0], [0, 0, 1, 0], [], []>} : vector<16x128xbf16>, vector<16x128xbf16>, vector<16x16xf32> -> vector<16x16xf32>
    %cst_19 = arith.constant 2.500000e-01 : f32
    %40 = vector.broadcast %cst_19 : f32 to vector<16x16xf32>
    %41 = arith.mulf %39, %40 : vector<16x16xf32>
    %42 = arith.addf %41, %25 : vector<16x16xf32>
    %cst_20 = arith.constant dense<0xFF800000> : vector<16xf32>
    %43 = vector.multi_reduction <maximumf>, %42, %cst_20 [1] : vector<16x16xf32> to vector<16xf32>
    %44 = vector.shape_cast %43 : vector<16xf32> to vector<16x1xf32>
    %45 = vector.broadcast %44 : vector<16x1xf32> to vector<16x16xf32>
    %46 = arith.subf %42, %45 : vector<16x16xf32>
    %47 = math.exp %46 : vector<16x16xf32>
    %cst_21 = arith.constant dense<0.000000e+00> : vector<16xf32>
    %48 = vector.multi_reduction <add>, %47, %cst_21 [1] : vector<16x16xf32> to vector<16xf32>
    %49 = vector.shape_cast %48 : vector<16xf32> to vector<16x1xf32>
    %50 = tpu.reciprocal %49 {approx = true} : vector<16x1xf32> -> vector<16x1xf32>
    %51 = vector.broadcast %50 : vector<16x1xf32> to vector<16x16xf32>
    %52 = arith.mulf %47, %51 : vector<16x16xf32>
    %53 = arith.truncf %52 : vector<16x16xf32> to vector<16x16xbf16>
    %54 = arith.truncf %36 : vector<16x128xf32> to vector<16x128xbf16>
    %cst_22 = arith.constant dense<0.000000e+00> : vector<16x128xf32>
    %55 = tpu.matmul %53, %54, %cst_22 {dimension_numbers = #tpu.dot_dimension_numbers<[1], [0], [0], [1], [0, 0, 1, 1], [], []>} : vector<16x16xbf16>, vector<16x128xbf16>, vector<16x128xf32> -> vector<16x128xf32>
    %56 = vector.extract_strided_slice %33 {offsets = [0, 128], sizes = [16, 128], strides = [1, 1]} : vector<16x768xf32> to vector<16x128xf32>
    %57 = vector.extract_strided_slice %33 {offsets = [0, 384], sizes = [16, 128], strides = [1, 1]} : vector<16x768xf32> to vector<16x128xf32>
    %58 = vector.extract_strided_slice %33 {offsets = [0, 640], sizes = [16, 128], strides = [1, 1]} : vector<16x768xf32> to vector<16x128xf32>
    %59 = arith.truncf %56 : vector<16x128xf32> to vector<16x128xbf16>
    %60 = arith.truncf %57 : vector<16x128xf32> to vector<16x128xbf16>
    %cst_23 = arith.constant dense<0.000000e+00> : vector<16x16xf32>
    %61 = tpu.matmul %59, %60, %cst_23 {dimension_numbers = #tpu.dot_dimension_numbers<[1], [1], [0], [0], [0, 0, 1, 0], [], []>} : vector<16x128xbf16>, vector<16x128xbf16>, vector<16x16xf32> -> vector<16x16xf32>
    %cst_24 = arith.constant 2.500000e-01 : f32
    %62 = vector.broadcast %cst_24 : f32 to vector<16x16xf32>
    %63 = arith.mulf %61, %62 : vector<16x16xf32>
    %64 = arith.addf %63, %25 : vector<16x16xf32>
    %cst_25 = arith.constant dense<0xFF800000> : vector<16xf32>
    %65 = vector.multi_reduction <maximumf>, %64, %cst_25 [1] : vector<16x16xf32> to vector<16xf32>
    %66 = vector.shape_cast %65 : vector<16xf32> to vector<16x1xf32>
    %67 = vector.broadcast %66 : vector<16x1xf32> to vector<16x16xf32>
    %68 = arith.subf %64, %67 : vector<16x16xf32>
    %69 = math.exp %68 : vector<16x16xf32>
    %cst_26 = arith.constant dense<0.000000e+00> : vector<16xf32>
    %70 = vector.multi_reduction <add>, %69, %cst_26 [1] : vector<16x16xf32> to vector<16xf32>
    %71 = vector.shape_cast %70 : vector<16xf32> to vector<16x1xf32>
    %72 = tpu.reciprocal %71 {approx = true} : vector<16x1xf32> -> vector<16x1xf32>
    %73 = vector.broadcast %72 : vector<16x1xf32> to vector<16x16xf32>
    %74 = arith.mulf %69, %73 : vector<16x16xf32>
    %75 = arith.truncf %74 : vector<16x16xf32> to vector<16x16xbf16>
    %76 = arith.truncf %58 : vector<16x128xf32> to vector<16x128xbf16>
    %cst_27 = arith.constant dense<0.000000e+00> : vector<16x128xf32>
    %77 = tpu.matmul %75, %76, %cst_27 {dimension_numbers = #tpu.dot_dimension_numbers<[1], [0], [0], [1], [0, 0, 1, 1], [], []>} : vector<16x16xbf16>, vector<16x128xbf16>, vector<16x128xf32> -> vector<16x128xf32>
    %78 = tpu.concatenate %55, %77 in 1 : vector<16x128xf32>, vector<16x128xf32> -> vector<16x256xf32>
    %c0_28 = arith.constant 0 : index
    %c0_29 = arith.constant 0 : index
    %c0_30 = arith.constant 0 : index
    %79 = vector.load %arg6[%c0_28, %c0_29, %c0_30] : memref<2x256x128xbf16, #tpu.memory_space<vmem>>, vector<1x256x128xbf16>
    %80 = vector.shape_cast %79 : vector<1x256x128xbf16> to vector<256x128xbf16>
    %81 = arith.truncf %78 : vector<16x256xf32> to vector<16x256xbf16>
    %cst_31 = arith.constant dense<0.000000e+00> : vector<16x128xf32>
    %82 = tpu.matmul %81, %80, %cst_31 {dimension_numbers = #tpu.dot_dimension_numbers<[1], [0], [0], [1], [0, 0, 1, 1], [], []>} : vector<16x256xbf16>, vector<256x128xbf16>, vector<16x128xf32> -> vector<16x128xf32>
    %c0_32 = arith.constant 0 : index
    %c0_33 = arith.constant 0 : index
    %c0_34 = arith.constant 0 : index
    %83 = vector.load %arg7[%c0_32, %c0_33, %c0_34] : memref<2x1x128xf32, #tpu.memory_space<vmem>>, vector<1x1x128xf32>
    %84 = vector.shape_cast %83 : vector<1x1x128xf32> to vector<1x128xf32>
    %85 = vector.broadcast %84 : vector<1x128xf32> to vector<16x128xf32>
    %86 = arith.addf %82, %85 : vector<16x128xf32>
    %87 = arith.addf %24, %86 : vector<16x128xf32>
    %c0_35 = arith.constant 0 : index
    %c0_36 = arith.constant 0 : index
    %c0_37 = arith.constant 0 : index
    %88 = vector.load %arg8[%c0_35, %c0_36, %c0_37] : memref<2x1x128xf32, #tpu.memory_space<vmem>>, vector<1x1x128xf32>
    %89 = vector.shape_cast %88 : vector<1x1x128xf32> to vector<1x128xf32>
    %c0_38 = arith.constant 0 : index
    %c0_39 = arith.constant 0 : index
    %c0_40 = arith.constant 0 : index
    %90 = vector.load %arg9[%c0_38, %c0_39, %c0_40] : memref<2x1x128xf32, #tpu.memory_space<vmem>>, vector<1x1x128xf32>
    %91 = vector.shape_cast %90 : vector<1x1x128xf32> to vector<1x128xf32>
    %cst_41 = arith.constant dense<0.000000e+00> : vector<16xf32>
    %92 = vector.multi_reduction <add>, %87, %cst_41 [1] : vector<16x128xf32> to vector<16xf32>
    %93 = vector.shape_cast %92 : vector<16xf32> to vector<16x1xf32>
    %cst_42 = arith.constant 3.125000e-02 : f32
    %94 = vector.broadcast %cst_42 : f32 to vector<16x1xf32>
    %95 = arith.mulf %93, %94 : vector<16x1xf32>
    %96 = arith.mulf %87, %87 : vector<16x128xf32>
    %cst_43 = arith.constant dense<0.000000e+00> : vector<16xf32>
    %97 = vector.multi_reduction <add>, %96, %cst_43 [1] : vector<16x128xf32> to vector<16xf32>
    %98 = vector.shape_cast %97 : vector<16xf32> to vector<16x1xf32>
    %cst_44 = arith.constant 3.125000e-02 : f32
    %99 = vector.broadcast %cst_44 : f32 to vector<16x1xf32>
    %100 = arith.mulf %98, %99 : vector<16x1xf32>
    %101 = arith.mulf %95, %95 : vector<16x1xf32>
    %102 = arith.subf %100, %101 : vector<16x1xf32>
    %103 = vector.broadcast %95 : vector<16x1xf32> to vector<16x128xf32>
    %104 = arith.subf %87, %103 : vector<16x128xf32>
    %cst_45 = arith.constant 9.99999996E-13 : f32
    %105 = vector.broadcast %cst_45 : f32 to vector<16x1xf32>
    %106 = arith.addf %102, %105 : vector<16x1xf32>
    %107 = math.rsqrt %106 : vector<16x1xf32>
    %108 = vector.broadcast %107 : vector<16x1xf32> to vector<16x128xf32>
    %109 = arith.mulf %104, %108 : vector<16x128xf32>
    %110 = vector.broadcast %89 : vector<1x128xf32> to vector<16x128xf32>
    %111 = arith.mulf %109, %110 : vector<16x128xf32>
    %112 = vector.broadcast %91 : vector<1x128xf32> to vector<16x128xf32>
    %113 = arith.addf %111, %112 : vector<16x128xf32>
    %c0_46 = arith.constant 0 : index
    %c0_47 = arith.constant 0 : index
    %c0_48 = arith.constant 0 : index
    %114 = vector.load %arg10[%c0_46, %c0_47, %c0_48] : memref<2x128x128xbf16, #tpu.memory_space<vmem>>, vector<1x128x128xbf16>
    %115 = vector.shape_cast %114 : vector<1x128x128xbf16> to vector<128x128xbf16>
    %116 = arith.truncf %113 : vector<16x128xf32> to vector<16x128xbf16>
    %cst_49 = arith.constant dense<0.000000e+00> : vector<16x128xf32>
    %117 = tpu.matmul %116, %115, %cst_49 {dimension_numbers = #tpu.dot_dimension_numbers<[1], [0], [0], [1], [0, 0, 1, 1], [], []>} : vector<16x128xbf16>, vector<128x128xbf16>, vector<16x128xf32> -> vector<16x128xf32>
    %c0_50 = arith.constant 0 : index
    %c0_51 = arith.constant 0 : index
    %c0_52 = arith.constant 0 : index
    %118 = vector.load %arg11[%c0_50, %c0_51, %c0_52] : memref<2x1x128xf32, #tpu.memory_space<vmem>>, vector<1x1x128xf32>
    %119 = vector.shape_cast %118 : vector<1x1x128xf32> to vector<1x128xf32>
    %120 = vector.broadcast %119 : vector<1x128xf32> to vector<16x128xf32>
    %121 = arith.addf %117, %120 : vector<16x128xf32>
    %122 = arith.mulf %121, %121 : vector<16x128xf32>
    %123 = arith.mulf %121, %122 : vector<16x128xf32>
    %cst_53 = arith.constant 4.471500e-02 : f32
    %124 = vector.broadcast %cst_53 : f32 to vector<16x128xf32>
    %125 = arith.mulf %124, %123 : vector<16x128xf32>
    %126 = arith.addf %121, %125 : vector<16x128xf32>
    %cst_54 = arith.constant 0.797884583 : f32
    %127 = vector.broadcast %cst_54 : f32 to vector<16x128xf32>
    %128 = arith.mulf %127, %126 : vector<16x128xf32>
    %129 = math.tanh %128 : vector<16x128xf32>
    %cst_55 = arith.constant 1.000000e+00 : f32
    %130 = vector.broadcast %cst_55 : f32 to vector<16x128xf32>
    %131 = arith.addf %130, %129 : vector<16x128xf32>
    %cst_56 = arith.constant 5.000000e-01 : f32
    %132 = vector.broadcast %cst_56 : f32 to vector<16x128xf32>
    %133 = arith.mulf %132, %131 : vector<16x128xf32>
    %134 = arith.mulf %121, %133 : vector<16x128xf32>
    %c0_57 = arith.constant 0 : index
    %c0_58 = arith.constant 0 : index
    %c0_59 = arith.constant 0 : index
    %135 = vector.load %arg12[%c0_57, %c0_58, %c0_59] : memref<2x128x128xbf16, #tpu.memory_space<vmem>>, vector<1x128x128xbf16>
    %136 = vector.shape_cast %135 : vector<1x128x128xbf16> to vector<128x128xbf16>
    %137 = arith.truncf %134 : vector<16x128xf32> to vector<16x128xbf16>
    %cst_60 = arith.constant dense<0.000000e+00> : vector<16x128xf32>
    %138 = tpu.matmul %137, %136, %cst_60 {dimension_numbers = #tpu.dot_dimension_numbers<[1], [0], [0], [1], [0, 0, 1, 1], [], []>} : vector<16x128xbf16>, vector<128x128xbf16>, vector<16x128xf32> -> vector<16x128xf32>
    %c0_61 = arith.constant 0 : index
    %c0_62 = arith.constant 0 : index
    %c0_63 = arith.constant 0 : index
    %139 = vector.load %arg13[%c0_61, %c0_62, %c0_63] : memref<2x1x128xf32, #tpu.memory_space<vmem>>, vector<1x1x128xf32>
    %140 = vector.shape_cast %139 : vector<1x1x128xf32> to vector<1x128xf32>
    %141 = vector.broadcast %140 : vector<1x128xf32> to vector<16x128xf32>
    %142 = arith.addf %138, %141 : vector<16x128xf32>
    %143 = arith.addf %113, %142 : vector<16x128xf32>
    %c0_64 = arith.constant 0 : index
    %c0_65 = arith.constant 0 : index
    %c0_66 = arith.constant 0 : index
    %144 = vector.load %arg14[%c0_64, %c0_65, %c0_66] : memref<2x1x128xf32, #tpu.memory_space<vmem>>, vector<1x1x128xf32>
    %145 = vector.shape_cast %144 : vector<1x1x128xf32> to vector<1x128xf32>
    %c0_67 = arith.constant 0 : index
    %c0_68 = arith.constant 0 : index
    %c0_69 = arith.constant 0 : index
    %146 = vector.load %arg15[%c0_67, %c0_68, %c0_69] : memref<2x1x128xf32, #tpu.memory_space<vmem>>, vector<1x1x128xf32>
    %147 = vector.shape_cast %146 : vector<1x1x128xf32> to vector<1x128xf32>
    %cst_70 = arith.constant dense<0.000000e+00> : vector<16xf32>
    %148 = vector.multi_reduction <add>, %143, %cst_70 [1] : vector<16x128xf32> to vector<16xf32>
    %149 = vector.shape_cast %148 : vector<16xf32> to vector<16x1xf32>
    %cst_71 = arith.constant 3.125000e-02 : f32
    %150 = vector.broadcast %cst_71 : f32 to vector<16x1xf32>
    %151 = arith.mulf %149, %150 : vector<16x1xf32>
    %152 = arith.mulf %143, %143 : vector<16x128xf32>
    %cst_72 = arith.constant dense<0.000000e+00> : vector<16xf32>
    %153 = vector.multi_reduction <add>, %152, %cst_72 [1] : vector<16x128xf32> to vector<16xf32>
    %154 = vector.shape_cast %153 : vector<16xf32> to vector<16x1xf32>
    %cst_73 = arith.constant 3.125000e-02 : f32
    %155 = vector.broadcast %cst_73 : f32 to vector<16x1xf32>
    %156 = arith.mulf %154, %155 : vector<16x1xf32>
    %157 = arith.mulf %151, %151 : vector<16x1xf32>
    %158 = arith.subf %156, %157 : vector<16x1xf32>
    %159 = vector.broadcast %151 : vector<16x1xf32> to vector<16x128xf32>
    %160 = arith.subf %143, %159 : vector<16x128xf32>
    %cst_74 = arith.constant 9.99999996E-13 : f32
    %161 = vector.broadcast %cst_74 : f32 to vector<16x1xf32>
    %162 = arith.addf %158, %161 : vector<16x1xf32>
    %163 = math.rsqrt %162 : vector<16x1xf32>
    %164 = vector.broadcast %163 : vector<16x1xf32> to vector<16x128xf32>
    %165 = arith.mulf %160, %164 : vector<16x128xf32>
    %166 = vector.broadcast %145 : vector<1x128xf32> to vector<16x128xf32>
    %167 = arith.mulf %165, %166 : vector<16x128xf32>
    %168 = vector.broadcast %147 : vector<1x128xf32> to vector<16x128xf32>
    %169 = arith.addf %167, %168 : vector<16x128xf32>
    %c1 = arith.constant 1 : index
    %c0_75 = arith.constant 0 : index
    %c0_76 = arith.constant 0 : index
    %170 = vector.load %arg4[%c1, %c0_75, %c0_76] : memref<2x128x768xbf16, #tpu.memory_space<vmem>>, vector<1x128x768xbf16>
    %171 = vector.shape_cast %170 : vector<1x128x768xbf16> to vector<128x768xbf16>
    %172 = arith.truncf %169 : vector<16x128xf32> to vector<16x128xbf16>
    %cst_77 = arith.constant dense<0.000000e+00> : vector<16x768xf32>
    %173 = tpu.matmul %172, %171, %cst_77 {dimension_numbers = #tpu.dot_dimension_numbers<[1], [0], [0], [1], [0, 0, 1, 1], [], []>} : vector<16x128xbf16>, vector<128x768xbf16>, vector<16x768xf32> -> vector<16x768xf32>
    %c1_78 = arith.constant 1 : index
    %c0_79 = arith.constant 0 : index
    %c0_80 = arith.constant 0 : index
    %174 = vector.load %arg5[%c1_78, %c0_79, %c0_80] : memref<2x1x768xf32, #tpu.memory_space<vmem>>, vector<1x1x768xf32>
    %175 = vector.shape_cast %174 : vector<1x1x768xf32> to vector<1x768xf32>
    %176 = vector.broadcast %175 : vector<1x768xf32> to vector<16x768xf32>
    %177 = arith.addf %173, %176 : vector<16x768xf32>
    %178 = vector.extract_strided_slice %177 {offsets = [0, 0], sizes = [16, 128], strides = [1, 1]} : vector<16x768xf32> to vector<16x128xf32>
    %179 = vector.extract_strided_slice %177 {offsets = [0, 256], sizes = [16, 128], strides = [1, 1]} : vector<16x768xf32> to vector<16x128xf32>
    %180 = vector.extract_strided_slice %177 {offsets = [0, 512], sizes = [16, 128], strides = [1, 1]} : vector<16x768xf32> to vector<16x128xf32>
    %181 = arith.truncf %178 : vector<16x128xf32> to vector<16x128xbf16>
    %182 = arith.truncf %179 : vector<16x128xf32> to vector<16x128xbf16>
    %cst_81 = arith.constant dense<0.000000e+00> : vector<16x16xf32>
    %183 = tpu.matmul %181, %182, %cst_81 {dimension_numbers = #tpu.dot_dimension_numbers<[1], [1], [0], [0], [0, 0, 1, 0], [], []>} : vector<16x128xbf16>, vector<16x128xbf16>, vector<16x16xf32> -> vector<16x16xf32>
    %cst_82 = arith.constant 2.500000e-01 : f32
    %184 = vector.broadcast %cst_82 : f32 to vector<16x16xf32>
    %185 = arith.mulf %183, %184 : vector<16x16xf32>
    %186 = arith.addf %185, %25 : vector<16x16xf32>
    %cst_83 = arith.constant dense<0xFF800000> : vector<16xf32>
    %187 = vector.multi_reduction <maximumf>, %186, %cst_83 [1] : vector<16x16xf32> to vector<16xf32>
    %188 = vector.shape_cast %187 : vector<16xf32> to vector<16x1xf32>
    %189 = vector.broadcast %188 : vector<16x1xf32> to vector<16x16xf32>
    %190 = arith.subf %186, %189 : vector<16x16xf32>
    %191 = math.exp %190 : vector<16x16xf32>
    %cst_84 = arith.constant dense<0.000000e+00> : vector<16xf32>
    %192 = vector.multi_reduction <add>, %191, %cst_84 [1] : vector<16x16xf32> to vector<16xf32>
    %193 = vector.shape_cast %192 : vector<16xf32> to vector<16x1xf32>
    %194 = tpu.reciprocal %193 {approx = true} : vector<16x1xf32> -> vector<16x1xf32>
    %195 = vector.broadcast %194 : vector<16x1xf32> to vector<16x16xf32>
    %196 = arith.mulf %191, %195 : vector<16x16xf32>
    %197 = arith.truncf %196 : vector<16x16xf32> to vector<16x16xbf16>
    %198 = arith.truncf %180 : vector<16x128xf32> to vector<16x128xbf16>
    %cst_85 = arith.constant dense<0.000000e+00> : vector<16x128xf32>
    %199 = tpu.matmul %197, %198, %cst_85 {dimension_numbers = #tpu.dot_dimension_numbers<[1], [0], [0], [1], [0, 0, 1, 1], [], []>} : vector<16x16xbf16>, vector<16x128xbf16>, vector<16x128xf32> -> vector<16x128xf32>
    %200 = vector.extract_strided_slice %177 {offsets = [0, 128], sizes = [16, 128], strides = [1, 1]} : vector<16x768xf32> to vector<16x128xf32>
    %201 = vector.extract_strided_slice %177 {offsets = [0, 384], sizes = [16, 128], strides = [1, 1]} : vector<16x768xf32> to vector<16x128xf32>
    %202 = vector.extract_strided_slice %177 {offsets = [0, 640], sizes = [16, 128], strides = [1, 1]} : vector<16x768xf32> to vector<16x128xf32>
    %203 = arith.truncf %200 : vector<16x128xf32> to vector<16x128xbf16>
    %204 = arith.truncf %201 : vector<16x128xf32> to vector<16x128xbf16>
    %cst_86 = arith.constant dense<0.000000e+00> : vector<16x16xf32>
    %205 = tpu.matmul %203, %204, %cst_86 {dimension_numbers = #tpu.dot_dimension_numbers<[1], [1], [0], [0], [0, 0, 1, 0], [], []>} : vector<16x128xbf16>, vector<16x128xbf16>, vector<16x16xf32> -> vector<16x16xf32>
    %cst_87 = arith.constant 2.500000e-01 : f32
    %206 = vector.broadcast %cst_87 : f32 to vector<16x16xf32>
    %207 = arith.mulf %205, %206 : vector<16x16xf32>
    %208 = arith.addf %207, %25 : vector<16x16xf32>
    %cst_88 = arith.constant dense<0xFF800000> : vector<16xf32>
    %209 = vector.multi_reduction <maximumf>, %208, %cst_88 [1] : vector<16x16xf32> to vector<16xf32>
    %210 = vector.shape_cast %209 : vector<16xf32> to vector<16x1xf32>
    %211 = vector.broadcast %210 : vector<16x1xf32> to vector<16x16xf32>
    %212 = arith.subf %208, %211 : vector<16x16xf32>
    %213 = math.exp %212 : vector<16x16xf32>
    %cst_89 = arith.constant dense<0.000000e+00> : vector<16xf32>
    %214 = vector.multi_reduction <add>, %213, %cst_89 [1] : vector<16x16xf32> to vector<16xf32>
    %215 = vector.shape_cast %214 : vector<16xf32> to vector<16x1xf32>
    %216 = tpu.reciprocal %215 {approx = true} : vector<16x1xf32> -> vector<16x1xf32>
    %217 = vector.broadcast %216 : vector<16x1xf32> to vector<16x16xf32>
    %218 = arith.mulf %213, %217 : vector<16x16xf32>
    %219 = arith.truncf %218 : vector<16x16xf32> to vector<16x16xbf16>
    %220 = arith.truncf %202 : vector<16x128xf32> to vector<16x128xbf16>
    %cst_90 = arith.constant dense<0.000000e+00> : vector<16x128xf32>
    %221 = tpu.matmul %219, %220, %cst_90 {dimension_numbers = #tpu.dot_dimension_numbers<[1], [0], [0], [1], [0, 0, 1, 1], [], []>} : vector<16x16xbf16>, vector<16x128xbf16>, vector<16x128xf32> -> vector<16x128xf32>
    %222 = tpu.concatenate %199, %221 in 1 : vector<16x128xf32>, vector<16x128xf32> -> vector<16x256xf32>
    %c1_91 = arith.constant 1 : index
    %c0_92 = arith.constant 0 : index
    %c0_93 = arith.constant 0 : index
    %223 = vector.load %arg6[%c1_91, %c0_92, %c0_93] : memref<2x256x128xbf16, #tpu.memory_space<vmem>>, vector<1x256x128xbf16>
    %224 = vector.shape_cast %223 : vector<1x256x128xbf16> to vector<256x128xbf16>
    %225 = arith.truncf %222 : vector<16x256xf32> to vector<16x256xbf16>
    %cst_94 = arith.constant dense<0.000000e+00> : vector<16x128xf32>
    %226 = tpu.matmul %225, %224, %cst_94 {dimension_numbers = #tpu.dot_dimension_numbers<[1], [0], [0], [1], [0, 0, 1, 1], [], []>} : vector<16x256xbf16>, vector<256x128xbf16>, vector<16x128xf32> -> vector<16x128xf32>
    %c1_95 = arith.constant 1 : index
    %c0_96 = arith.constant 0 : index
    %c0_97 = arith.constant 0 : index
    %227 = vector.load %arg7[%c1_95, %c0_96, %c0_97] : memref<2x1x128xf32, #tpu.memory_space<vmem>>, vector<1x1x128xf32>
    %228 = vector.shape_cast %227 : vector<1x1x128xf32> to vector<1x128xf32>
    %229 = vector.broadcast %228 : vector<1x128xf32> to vector<16x128xf32>
    %230 = arith.addf %226, %229 : vector<16x128xf32>
    %231 = arith.addf %169, %230 : vector<16x128xf32>
    %c1_98 = arith.constant 1 : index
    %c0_99 = arith.constant 0 : index
    %c0_100 = arith.constant 0 : index
    %232 = vector.load %arg8[%c1_98, %c0_99, %c0_100] : memref<2x1x128xf32, #tpu.memory_space<vmem>>, vector<1x1x128xf32>
    %233 = vector.shape_cast %232 : vector<1x1x128xf32> to vector<1x128xf32>
    %c1_101 = arith.constant 1 : index
    %c0_102 = arith.constant 0 : index
    %c0_103 = arith.constant 0 : index
    %234 = vector.load %arg9[%c1_101, %c0_102, %c0_103] : memref<2x1x128xf32, #tpu.memory_space<vmem>>, vector<1x1x128xf32>
    %235 = vector.shape_cast %234 : vector<1x1x128xf32> to vector<1x128xf32>
    %cst_104 = arith.constant dense<0.000000e+00> : vector<16xf32>
    %236 = vector.multi_reduction <add>, %231, %cst_104 [1] : vector<16x128xf32> to vector<16xf32>
    %237 = vector.shape_cast %236 : vector<16xf32> to vector<16x1xf32>
    %cst_105 = arith.constant 3.125000e-02 : f32
    %238 = vector.broadcast %cst_105 : f32 to vector<16x1xf32>
    %239 = arith.mulf %237, %238 : vector<16x1xf32>
    %240 = arith.mulf %231, %231 : vector<16x128xf32>
    %cst_106 = arith.constant dense<0.000000e+00> : vector<16xf32>
    %241 = vector.multi_reduction <add>, %240, %cst_106 [1] : vector<16x128xf32> to vector<16xf32>
    %242 = vector.shape_cast %241 : vector<16xf32> to vector<16x1xf32>
    %cst_107 = arith.constant 3.125000e-02 : f32
    %243 = vector.broadcast %cst_107 : f32 to vector<16x1xf32>
    %244 = arith.mulf %242, %243 : vector<16x1xf32>
    %245 = arith.mulf %239, %239 : vector<16x1xf32>
    %246 = arith.subf %244, %245 : vector<16x1xf32>
    %247 = vector.broadcast %239 : vector<16x1xf32> to vector<16x128xf32>
    %248 = arith.subf %231, %247 : vector<16x128xf32>
    %cst_108 = arith.constant 9.99999996E-13 : f32
    %249 = vector.broadcast %cst_108 : f32 to vector<16x1xf32>
    %250 = arith.addf %246, %249 : vector<16x1xf32>
    %251 = math.rsqrt %250 : vector<16x1xf32>
    %252 = vector.broadcast %251 : vector<16x1xf32> to vector<16x128xf32>
    %253 = arith.mulf %248, %252 : vector<16x128xf32>
    %254 = vector.broadcast %233 : vector<1x128xf32> to vector<16x128xf32>
    %255 = arith.mulf %253, %254 : vector<16x128xf32>
    %256 = vector.broadcast %235 : vector<1x128xf32> to vector<16x128xf32>
    %257 = arith.addf %255, %256 : vector<16x128xf32>
    %c1_109 = arith.constant 1 : index
    %c0_110 = arith.constant 0 : index
    %c0_111 = arith.constant 0 : index
    %258 = vector.load %arg10[%c1_109, %c0_110, %c0_111] : memref<2x128x128xbf16, #tpu.memory_space<vmem>>, vector<1x128x128xbf16>
    %259 = vector.shape_cast %258 : vector<1x128x128xbf16> to vector<128x128xbf16>
    %260 = arith.truncf %257 : vector<16x128xf32> to vector<16x128xbf16>
    %cst_112 = arith.constant dense<0.000000e+00> : vector<16x128xf32>
    %261 = tpu.matmul %260, %259, %cst_112 {dimension_numbers = #tpu.dot_dimension_numbers<[1], [0], [0], [1], [0, 0, 1, 1], [], []>} : vector<16x128xbf16>, vector<128x128xbf16>, vector<16x128xf32> -> vector<16x128xf32>
    %c1_113 = arith.constant 1 : index
    %c0_114 = arith.constant 0 : index
    %c0_115 = arith.constant 0 : index
    %262 = vector.load %arg11[%c1_113, %c0_114, %c0_115] : memref<2x1x128xf32, #tpu.memory_space<vmem>>, vector<1x1x128xf32>
    %263 = vector.shape_cast %262 : vector<1x1x128xf32> to vector<1x128xf32>
    %264 = vector.broadcast %263 : vector<1x128xf32> to vector<16x128xf32>
    %265 = arith.addf %261, %264 : vector<16x128xf32>
    %266 = arith.mulf %265, %265 : vector<16x128xf32>
    %267 = arith.mulf %265, %266 : vector<16x128xf32>
    %cst_116 = arith.constant 4.471500e-02 : f32
    %268 = vector.broadcast %cst_116 : f32 to vector<16x128xf32>
    %269 = arith.mulf %268, %267 : vector<16x128xf32>
    %270 = arith.addf %265, %269 : vector<16x128xf32>
    %cst_117 = arith.constant 0.797884583 : f32
    %271 = vector.broadcast %cst_117 : f32 to vector<16x128xf32>
    %272 = arith.mulf %271, %270 : vector<16x128xf32>
    %273 = math.tanh %272 : vector<16x128xf32>
    %cst_118 = arith.constant 1.000000e+00 : f32
    %274 = vector.broadcast %cst_118 : f32 to vector<16x128xf32>
    %275 = arith.addf %274, %273 : vector<16x128xf32>
    %cst_119 = arith.constant 5.000000e-01 : f32
    %276 = vector.broadcast %cst_119 : f32 to vector<16x128xf32>
    %277 = arith.mulf %276, %275 : vector<16x128xf32>
    %278 = arith.mulf %265, %277 : vector<16x128xf32>
    %c1_120 = arith.constant 1 : index
    %c0_121 = arith.constant 0 : index
    %c0_122 = arith.constant 0 : index
    %279 = vector.load %arg12[%c1_120, %c0_121, %c0_122] : memref<2x128x128xbf16, #tpu.memory_space<vmem>>, vector<1x128x128xbf16>
    %280 = vector.shape_cast %279 : vector<1x128x128xbf16> to vector<128x128xbf16>
    %281 = arith.truncf %278 : vector<16x128xf32> to vector<16x128xbf16>
    %cst_123 = arith.constant dense<0.000000e+00> : vector<16x128xf32>
    %282 = tpu.matmul %281, %280, %cst_123 {dimension_numbers = #tpu.dot_dimension_numbers<[1], [0], [0], [1], [0, 0, 1, 1], [], []>} : vector<16x128xbf16>, vector<128x128xbf16>, vector<16x128xf32> -> vector<16x128xf32>
    %c1_124 = arith.constant 1 : index
    %c0_125 = arith.constant 0 : index
    %c0_126 = arith.constant 0 : index
    %283 = vector.load %arg13[%c1_124, %c0_125, %c0_126] : memref<2x1x128xf32, #tpu.memory_space<vmem>>, vector<1x1x128xf32>
    %284 = vector.shape_cast %283 : vector<1x1x128xf32> to vector<1x128xf32>
    %285 = vector.broadcast %284 : vector<1x128xf32> to vector<16x128xf32>
    %286 = arith.addf %282, %285 : vector<16x128xf32>
    %287 = arith.addf %257, %286 : vector<16x128xf32>
    %c1_127 = arith.constant 1 : index
    %c0_128 = arith.constant 0 : index
    %c0_129 = arith.constant 0 : index
    %288 = vector.load %arg14[%c1_127, %c0_128, %c0_129] : memref<2x1x128xf32, #tpu.memory_space<vmem>>, vector<1x1x128xf32>
    %289 = vector.shape_cast %288 : vector<1x1x128xf32> to vector<1x128xf32>
    %c1_130 = arith.constant 1 : index
    %c0_131 = arith.constant 0 : index
    %c0_132 = arith.constant 0 : index
    %290 = vector.load %arg15[%c1_130, %c0_131, %c0_132] : memref<2x1x128xf32, #tpu.memory_space<vmem>>, vector<1x1x128xf32>
    %291 = vector.shape_cast %290 : vector<1x1x128xf32> to vector<1x128xf32>
    %cst_133 = arith.constant dense<0.000000e+00> : vector<16xf32>
    %292 = vector.multi_reduction <add>, %287, %cst_133 [1] : vector<16x128xf32> to vector<16xf32>
    %293 = vector.shape_cast %292 : vector<16xf32> to vector<16x1xf32>
    %cst_134 = arith.constant 3.125000e-02 : f32
    %294 = vector.broadcast %cst_134 : f32 to vector<16x1xf32>
    %295 = arith.mulf %293, %294 : vector<16x1xf32>
    %296 = arith.mulf %287, %287 : vector<16x128xf32>
    %cst_135 = arith.constant dense<0.000000e+00> : vector<16xf32>
    %297 = vector.multi_reduction <add>, %296, %cst_135 [1] : vector<16x128xf32> to vector<16xf32>
    %298 = vector.shape_cast %297 : vector<16xf32> to vector<16x1xf32>
    %cst_136 = arith.constant 3.125000e-02 : f32
    %299 = vector.broadcast %cst_136 : f32 to vector<16x1xf32>
    %300 = arith.mulf %298, %299 : vector<16x1xf32>
    %301 = arith.mulf %295, %295 : vector<16x1xf32>
    %302 = arith.subf %300, %301 : vector<16x1xf32>
    %303 = vector.broadcast %295 : vector<16x1xf32> to vector<16x128xf32>
    %304 = arith.subf %287, %303 : vector<16x128xf32>
    %cst_137 = arith.constant 9.99999996E-13 : f32
    %305 = vector.broadcast %cst_137 : f32 to vector<16x1xf32>
    %306 = arith.addf %302, %305 : vector<16x1xf32>
    %307 = math.rsqrt %306 : vector<16x1xf32>
    %308 = vector.broadcast %307 : vector<16x1xf32> to vector<16x128xf32>
    %309 = arith.mulf %304, %308 : vector<16x128xf32>
    %310 = vector.broadcast %289 : vector<1x128xf32> to vector<16x128xf32>
    %311 = arith.mulf %309, %310 : vector<16x128xf32>
    %312 = vector.broadcast %291 : vector<1x128xf32> to vector<16x128xf32>
    %313 = arith.addf %311, %312 : vector<16x128xf32>
    %314 = vector.extract_strided_slice %313 {offsets = [0, 0], sizes = [1, 128], strides = [1, 1]} : vector<16x128xf32> to vector<1x128xf32>
    %315 = vector.extract_strided_slice %313 {offsets = [8, 0], sizes = [1, 128], strides = [1, 1]} : vector<16x128xf32> to vector<1x128xf32>
    %316 = tpu.concatenate %314, %315 in 0 : vector<1x128xf32>, vector<1x128xf32> -> vector<2x128xf32>
    %c0_138 = arith.constant 0 : index
    %c0_139 = arith.constant 0 : index
    %317 = vector.load %arg16[%c0_138, %c0_139] : memref<128x128xbf16, #tpu.memory_space<vmem>>, vector<128x128xbf16>
    %318 = arith.truncf %316 : vector<2x128xf32> to vector<2x128xbf16>
    %cst_140 = arith.constant dense<0.000000e+00> : vector<2x128xf32>
    %319 = tpu.matmul %318, %317, %cst_140 {dimension_numbers = #tpu.dot_dimension_numbers<[1], [0], [0], [1], [0, 0, 1, 1], [], []>} : vector<2x128xbf16>, vector<128x128xbf16>, vector<2x128xf32> -> vector<2x128xf32>
    %c0_141 = arith.constant 0 : index
    %c0_142 = arith.constant 0 : index
    %320 = vector.load %arg17[%c0_141, %c0_142] : memref<1x128xf32, #tpu.memory_space<vmem>>, vector<1x128xf32>
    %321 = vector.broadcast %320 : vector<1x128xf32> to vector<2x128xf32>
    %322 = arith.addf %319, %321 : vector<2x128xf32>
    %323 = math.tanh %322 : vector<2x128xf32>
    %c0_143 = arith.constant 0 : index
    %c0_144 = arith.constant 0 : index
    %324 = vector.load %arg18[%c0_143, %c0_144] : memref<128x128xbf16, #tpu.memory_space<vmem>>, vector<128x128xbf16>
    %325 = arith.truncf %323 : vector<2x128xf32> to vector<2x128xbf16>
    %cst_145 = arith.constant dense<0.000000e+00> : vector<2x128xf32>
    %326 = tpu.matmul %325, %324, %cst_145 {dimension_numbers = #tpu.dot_dimension_numbers<[1], [0], [0], [1], [0, 0, 1, 1], [], []>} : vector<2x128xbf16>, vector<128x128xbf16>, vector<2x128xf32> -> vector<2x128xf32>
    %c0_146 = arith.constant 0 : index
    %c0_147 = arith.constant 0 : index
    %327 = vector.load %arg19[%c0_146, %c0_147] : memref<1x128xf32, #tpu.memory_space<vmem>>, vector<1x128xf32>
    %328 = vector.broadcast %327 : vector<1x128xf32> to vector<2x128xf32>
    %329 = arith.addf %326, %328 : vector<2x128xf32>
    %cst_148 = arith.constant dense<0xFF800000> : vector<2xf32>
    %330 = vector.multi_reduction <maximumf>, %329, %cst_148 [1] : vector<2x128xf32> to vector<2xf32>
    %331 = vector.shape_cast %330 : vector<2xf32> to vector<2x1xf32>
    %332 = vector.broadcast %331 : vector<2x1xf32> to vector<2x128xf32>
    %333 = arith.subf %329, %332 : vector<2x128xf32>
    %334 = math.exp %333 : vector<2x128xf32>
    %cst_149 = arith.constant dense<0.000000e+00> : vector<2xf32>
    %335 = vector.multi_reduction <add>, %334, %cst_149 [1] : vector<2x128xf32> to vector<2xf32>
    %336 = vector.shape_cast %335 : vector<2xf32> to vector<2x1xf32>
    %337 = vector.broadcast %336 : vector<2x1xf32> to vector<2x128xf32>
    %338 = arith.divf %334, %337 : vector<2x128xf32>
    %c0_150 = arith.constant 0 : index
    %c0_151 = arith.constant 0 : index
    %339 = vector.load %arg20[%c0_150, %c0_151] : memref<2x128xf32, #tpu.memory_space<vmem>>, vector<2x128xf32>
    tpu.vector_store %arg20[%c0_150, %c0_151], %338 {strides = array<i32>} : memref<2x128xf32, #tpu.memory_space<vmem>>, vector<2x128xf32>,
    return
  }
}

</mosaic_0001>

<llo_original>
// kernel: bert_base_forward.1
$region0: #{bert_base_forward.1}
  #allocation0 [shape = 'u32[]', space=smem, size = 0x4, offset = 0x4, fixed_abs, tag = 'smem constant byte address 0x4 - core index']
  #allocation1 [shape = 'u32[144,128]{1,0:T(1,128)}', space=vmem, size = 0x12000, scoped, tag = 'internal scratch']
  %s0 = inlined_call_operand.vmem [shape: f32[16,128], index: 0, kind: input, shape index: {}]
  %s1 = inlined_call_operand.vmem [shape: f32[16,16], index: 1, kind: input, shape index: {}]
  %s2 = inlined_call_operand.vmem [shape: f32[1,128], index: 2, kind: input, shape index: {}]
  %s3 = inlined_call_operand.vmem [shape: f32[1,128], index: 3, kind: input, shape index: {}]
  %s4 = inlined_call_operand.hbm [shape: bf16[2,128,768], index: 4, kind: input, shape index: {}]
  %s5 = inlined_call_operand.vmem [shape: f32[2,1,768], index: 5, kind: input, shape index: {}]
  %s6 = inlined_call_operand.vmem [shape: bf16[2,256,128], index: 6, kind: input, shape index: {}]
  %s7 = inlined_call_operand.vmem [shape: f32[2,1,128], index: 7, kind: input, shape index: {}]
  %s8 = inlined_call_operand.vmem [shape: f32[2,1,128], index: 8, kind: input, shape index: {}]
  %s9 = inlined_call_operand.vmem [shape: f32[2,1,128], index: 9, kind: input, shape index: {}]
  %s10 = inlined_call_operand.vmem [shape: bf16[2,128,128], index: 10, kind: input, shape index: {}]
  %s11 = inlined_call_operand.vmem [shape: f32[2,1,128], index: 11, kind: input, shape index: {}]
  %s12 = inlined_call_operand.hbm [shape: bf16[2,128,128], index: 12, kind: input, shape index: {}]
  %s13 = inlined_call_operand.vmem [shape: f32[2,1,128], index: 13, kind: input, shape index: {}]
  %s14 = inlined_call_operand.hbm [shape: f32[2,1,128], index: 14, kind: input, shape index: {}]
  %s15 = inlined_call_operand.hbm [shape: f32[2,1,128], index: 15, kind: input, shape index: {}]
  %s16 = inlined_call_operand.hbm [shape: bf16[128,128], index: 16, kind: input, shape index: {}]
  %s17 = inlined_call_operand.hbm [shape: f32[1,128], index: 17, kind: input, shape index: {}]
  %s18 = inlined_call_operand.vmem [shape: bf16[128,128], index: 18, kind: input, shape index: {}]
  %s19 = inlined_call_operand.vmem [shape: f32[1,128], index: 19, kind: input, shape index: {}]
  %s20 = inlined_call_operand.hbm [shape: f32[2,128], index: 20, kind: output, shape index: {}]
  %s21 = sld [smem:[#allocation0]]
  $region114: #{bert_base_forward.1} parent=0
    _
  %s23 = ssub.s32 1, %s21
  %s24 = scalar_select 0, %s23, %s21
  $region1: #{bert_base_forward.1} parent=0
    #allocation2 [shape = 'u8[393216]{0}', space=vmem, size = 0x60000, scoped, tag = 'input window, operand 4, single buffered']
    #allocation3 [shape = 's32[1]{0}', space=sflag, size = 0x4, scoped, tag = 'scoped memory for bert_base_forward.1']
    #allocation4 [shape = 's32[1]{0}', space=sflag, size = 0x4, scoped, tag = 'scoped memory for bert_base_forward.1']
    #allocation5 [shape = 'u8[65536]{0}', space=vmem, size = 0x10000, scoped, tag = 'input window, operand 12, single buffered']
    #allocation6 [shape = 's32[1]{0}', space=sflag, size = 0x4, scoped, tag = 'scoped memory for bert_base_forward.1']
    #allocation7 [shape = 'u8[1024]{0}', space=vmem, size = 0x400, scoped, tag = 'input window, operand 14, single buffered']
    #allocation8 [shape = 'u8[1024]{0}', space=vmem, size = 0x400, scoped, tag = 'input window, operand 15, single buffered']
    #allocation9 [shape = 's32[1]{0}', space=sflag, size = 0x4, scoped, tag = 'scoped memory for bert_base_forward.1']
    #allocation10 [shape = 'u8[32768]{0}', space=vmem, size = 0x8000, scoped, tag = 'input window, operand 16, single buffered']
    #allocation11 [shape = 'u8[512]{0}', space=vmem, size = 0x400, scoped, tag = 'input window, operand 17, single buffered']
    #allocation12 [shape = 's32[1]{0}', space=sflag, size = 0x4, scoped, tag = 'scoped memory for bert_base_forward.1']
    #allocation13 [shape = 'u8[1024]{0}', space=vmem, size = 0x400, scoped, tag = 'output window, operand 0, single buffered']
    %25 = vsyncpa [#allocation3], 0
    %26 = vsyncpa [#allocation6], 0
    %27 = vsyncpa [#allocation9], 0
    %28 = vsyncpa [#allocation12], 0
    %29 = vsyncpa [#allocation4], 0
    // Predicated region
    $region2: #{bert_base_forward.1} parent=1 // pred_check
      _
    $region3: #{bert_base_forward.1} parent=1 // pred_check_branch
      %31 = sbr.rel (0) target = $region5
    $region4: #{bert_base_forward.1} parent=1 // pred_region
      _
    $region5: #{bert_base_forward.1} parent=1 // pred_fallthru
      _
    // Predicated region
    $region6: #{bert_base_forward.1} parent=1 // pred_check
      _
    $region7: #{bert_base_forward.1} parent=1 // pred_check_branch
      %33 = sbr.rel (0) target = $region9
    $region8: #{bert_base_forward.1} parent=1 // pred_region
      _
    $region9: #{bert_base_forward.1} parent=1 // pred_fallthru
      _
    // Predicated region
    $region10: #{bert_base_forward.1} parent=1 // pred_check
      _
    $region11: #{bert_base_forward.1} parent=1 // pred_check_branch
      %35 = sbr.rel (0) target = $region13
    $region12: #{bert_base_forward.1} parent=1 // pred_region
      _
    $region13: #{bert_base_forward.1} parent=1 // pred_fallthru
      _
    // Predicated region
    $region14: #{bert_base_forward.1} parent=1 // pred_check
      _
    $region15: #{bert_base_forward.1} parent=1 // pred_check_branch
      %37 = sbr.rel (0) target = $region17
    $region16: #{bert_base_forward.1} parent=1 // pred_region
      _
    $region17: #{bert_base_forward.1} parent=1 // pred_fallthru
      _
    // Predicated region
    $region18: #{bert_base_forward.1} parent=1 // pred_check
      _
    $region19: #{bert_base_forward.1} parent=1 // pred_check_branch
      %39 = sbr.rel (0) target = $region21
    $region20: #{bert_base_forward.1} parent=1 // pred_region
      %s41 = ssub.s32 12288, 12288
      %42 = vsyncadd [#allocation3], %s41
      %s43 = sshll.u32 [#allocation2], 4
      %s44 = int_to_ptr.vmem [resolvable:$true] %s43
      %49 = dma.hbm_to_vmem [thread:$0]  %s4, 12288, %s44, [#allocation3], 384, 384, 24
    $region21: #{bert_base_forward.1} parent=1 // pred_fallthru
      _
    // Predicated region
    $region22: #{bert_base_forward.1} parent=1 // pred_check
      _
    $region23: #{bert_base_forward.1} parent=1 // pred_check_branch
      %51 = sbr.rel (0) target = $region25
    $region24: #{bert_base_forward.1} parent=1 // pred_region
      _
    $region25: #{bert_base_forward.1} parent=1 // pred_fallthru
      _
    // Predicated region
    $region26: #{bert_base_forward.1} parent=1 // pred_check
      _
    $region27: #{bert_base_forward.1} parent=1 // pred_check_branch
      %53 = sbr.rel (0) target = $region29
    $region28: #{bert_base_forward.1} parent=1 // pred_region
      _
    $region29: #{bert_base_forward.1} parent=1 // pred_fallthru
      _
    // Predicated region
    $region30: #{bert_base_forward.1} parent=1 // pred_check
      _
    $region31: #{bert_base_forward.1} parent=1 // pred_check_branch
      %55 = sbr.rel (0) target = $region33
    $region32: #{bert_base_forward.1} parent=1 // pred_region
      _
    $region33: #{bert_base_forward.1} parent=1 // pred_fallthru
      _
    // Predicated region
    $region34: #{bert_base_forward.1} parent=1 // pred_check
      _
    $region35: #{bert_base_forward.1} parent=1 // pred_check_branch
      %57 = sbr.rel (0) target = $region37
    $region36: #{bert_base_forward.1} parent=1 // pred_region
      _
    $region37: #{bert_base_forward.1} parent=1 // pred_fallthru
      _
    // Predicated region
    $region38: #{bert_base_forward.1} parent=1 // pred_check
      _
    $region39: #{bert_base_forward.1} parent=1 // pred_check_branch
      %59 = sbr.rel (0) target = $region41
    $region40: #{bert_base_forward.1} parent=1 // pred_region
      _
    $region41: #{bert_base_forward.1} parent=1 // pred_fallthru
      _
    // Predicated region
    $region42: #{bert_base_forward.1} parent=1 // pred_check
      _
    $region43: #{bert_base_forward.1} parent=1 // pred_check_branch
      %61 = sbr.rel (0) target = $region45
    $region44: #{bert_base_forward.1} parent=1 // pred_region
      _
    $region45: #{bert_base_forward.1} parent=1 // pred_fallthru
      _
    // Predicated region
    $region46: #{bert_base_forward.1} parent=1 // pred_check
      _
    $region47: #{bert_base_forward.1} parent=1 // pred_check_branch
      %63 = sbr.rel (0) target = $region49
    $region48: #{bert_base_forward.1} parent=1 // pred_region
      _
    $region49: #{bert_base_forward.1} parent=1 // pred_fallthru
      _
    // Predicated region
    $region50: #{bert_base_forward.1} parent=1 // pred_check
      _
    $region51: #{bert_base_forward.1} parent=1 // pred_check_branch
      %65 = sbr.rel (0) target = $region53
    $region52: #{bert_base_forward.1} parent=1 // pred_region
      %s67 = ssub.s32 2048, 2048
      %68 = vsyncadd [#allocation6], %s67
      %s69 = sshll.u32 [#allocation5], 4
      %s70 = int_to_ptr.vmem [resolvable:$true] %s69
      %75 = dma.hbm_to_vmem [thread:$0]  %s12, 2048, %s70, [#allocation6], 64, 64, 4
    $region53: #{bert_base_forward.1} parent=1 // pred_fallthru
      _
    // Predicated region
    $region54: #{bert_base_forward.1} parent=1 // pred_check
      _
    $region55: #{bert_base_forward.1} parent=1 // pred_check_branch
      %77 = sbr.rel (0) target = $region57
    $region56: #{bert_base_forward.1} parent=1 // pred_region
      _
    $region57: #{bert_base_forward.1} parent=1 // pred_fallthru
      _
    // Predicated region
    $region58: #{bert_base_forward.1} parent=1 // pred_check
      _
    $region59: #{bert_base_forward.1} parent=1 // pred_check_branch
      %79 = sbr.rel (0) target = $region61
    $region60: #{bert_base_forward.1} parent=1 // pred_region
      %s81 = ssub.s32 32, 32
      %82 = vsyncadd [#allocation6], %s81
      %s83 = sshll.u32 [#allocation7], 4
      %s84 = int_to_ptr.vmem [resolvable:$true] %s83
      %89 = dma.hbm_to_vmem [thread:$0]  %s14, 32, %s84, [#allocation6], 16, 16, 1
    $region61: #{bert_base_forward.1} parent=1 // pred_fallthru
      _
    // Predicated region
    $region62: #{bert_base_forward.1} parent=1 // pred_check
      _
    $region63: #{bert_base_forward.1} parent=1 // pred_check_branch
      %91 = sbr.rel (0) target = $region65
    $region64: #{bert_base_forward.1} parent=1 // pred_region
      %s93 = ssub.s32 32, 32
      %94 = vsyncadd [#allocation9], %s93
      %s95 = sshll.u32 [#allocation8], 4
      %s96 = int_to_ptr.vmem [resolvable:$true] %s95
      %101 = dma.hbm_to_vmem [thread:$0]  %s15, 32, %s96, [#allocation9], 16, 16, 1
    $region65: #{bert_base_forward.1} parent=1 // pred_fallthru
      _
    // Predicated region
    $region66: #{bert_base_forward.1} parent=1 // pred_check
      _
    $region67: #{bert_base_forward.1} parent=1 // pred_check_branch
      %103 = sbr.rel (0) target = $region69
    $region68: #{bert_base_forward.1} parent=1 // pred_region
      %s105 = ssub.s32 1024, 1024
      %106 = vsyncadd [#allocation9], %s105
      %s107 = sshll.u32 [#allocation10], 4
      %s108 = int_to_ptr.vmem [resolvable:$true] %s107
      %113 = dma.hbm_to_vmem [thread:$0]  %s16, 1024, %s108, [#allocation9], 64, 64, 4
    $region69: #{bert_base_forward.1} parent=1 // pred_fallthru
      _
    // Predicated region
    $region70: #{bert_base_forward.1} parent=1 // pred_check
      _
    $region71: #{bert_base_forward.1} parent=1 // pred_check_branch
      %115 = sbr.rel (0) target = $region73
    $region72: #{bert_base_forward.1} parent=1 // pred_region
      %s117 = ssub.s32 16, 16
      %118 = vsyncadd [#allocation12], %s117
      %s120 = sshll.u32 [#allocation11], 4
      %s121 = int_to_ptr.vmem [resolvable:$true] %s120
      %123 = dma.hbm_to_vmem [thread:$0]  %s17, 16, %s121, [#allocation12]
    $region73: #{bert_base_forward.1} parent=1 // pred_fallthru
      _
    // Predicated region
    $region74: #{bert_base_forward.1} parent=1 // pred_check
      _
    $region75: #{bert_base_forward.1} parent=1 // pred_check_branch
      %125 = sbr.rel (0) target = $region77
    $region76: #{bert_base_forward.1} parent=1 // pred_region
      _
    $region77: #{bert_base_forward.1} parent=1 // pred_fallthru
      _
    // Predicated region
    $region78: #{bert_base_forward.1} parent=1 // pred_check
      _
    $region79: #{bert_base_forward.1} parent=1 // pred_check_branch
      %127 = sbr.rel (0) target = $region81
    $region80: #{bert_base_forward.1} parent=1 // pred_region
      _
    $region81: #{bert_base_forward.1} parent=1 // pred_fallthru
      _
    // Predicated region
    $region82: #{bert_base_forward.1} parent=1 // pred_check
      _
    $region83: #{bert_base_forward.1} parent=1 // pred_check_branch
      %129 = sbr.rel (0) target = $region85
    $region84: #{bert_base_forward.1} parent=1 // pred_region
      %130 = dma.done [#allocation3], 12288
    $region85: #{bert_base_forward.1} parent=1 // pred_fallthru
      _
    // Predicated region
    $region86: #{bert_base_forward.1} parent=1 // pred_check
      _
    $region87: #{bert_base_forward.1} parent=1 // pred_check_branch
      %132 = sbr.rel (0) target = $region89
    $region88: #{bert_base_forward.1} parent=1 // pred_region
      %133 = dma.done [#allocation6], 2048
    $region89: #{bert_base_forward.1} parent=1 // pred_fallthru
      _
    // Predicated region
    $region90: #{bert_base_forward.1} parent=1 // pred_check
      _
    $region91: #{bert_base_forward.1} parent=1 // pred_check_branch
      %135 = sbr.rel (0) target = $region93
    $region92: #{bert_base_forward.1} parent=1 // pred_region
      %136 = dma.done [#allocation6], 32
    $region93: #{bert_base_forward.1} parent=1 // pred_fallthru
      _
    // Predicated region
    $region94: #{bert_base_forward.1} parent=1 // pred_check
      _
    $region95: #{bert_base_forward.1} parent=1 // pred_check_branch
      %138 = sbr.rel (0) target = $region97
    $region96: #{bert_base_forward.1} parent=1 // pred_region
      %139 = dma.done [#allocation9], 32
    $region97: #{bert_base_forward.1} parent=1 // pred_fallthru
      _
    // Predicated region
    $region98: #{bert_base_forward.1} parent=1 // pred_check
      _
    $region99: #{bert_base_forward.1} parent=1 // pred_check_branch
      %141 = sbr.rel (0) target = $region101
    $region100: #{bert_base_forward.1} parent=1 // pred_region
      %142 = dma.done [#allocation9], 1024
    $region101: #{bert_base_forward.1} parent=1 // pred_fallthru
      _
    // Predicated region
    $region102: #{bert_base_forward.1} parent=1 // pred_check
      _
    $region103: #{bert_base_forward.1} parent=1 // pred_check_branch
      %144 = sbr.rel (0) target = $region105
    $region104: #{bert_base_forward.1} parent=1 // pred_region
      %145 = dma.done [#allocation12], 16
    $region105: #{bert_base_forward.1} parent=1 // pred_fallthru
      _
    %v147 = vld [vmem:[%s0] sm:$0xff]
    %v148 = vld [vmem:[%s0 + $0x8] sm:$0xff]
    %v149 = vld [vmem:[%s2] sm:$0x1]
    %v150 = vld [vmem:[%s3] sm:$0x1]
    %151 = vadd.xlane.f32.xlu0 %v147
    %v152 = vpop.xlane.xlu0 %151
    %153 = vadd.xlane.f32.xlu0 %v148
    %v154 = vpop.xlane.xlu0 %153
    %v155 = vmul.f32 %v152, 0.03125
    %v156 = vmul.f32 %v154, 0.03125
    %v157 = vmul.f32 %v147, %v147
    %v158 = vmul.f32 %v148, %v148
    %159 = vadd.xlane.f32.xlu0 %v157
    %v160 = vpop.xlane.xlu0 %159
    %161 = vadd.xlane.f32.xlu0 %v158
    %v162 = vpop.xlane.xlu0 %161
    %v163 = vmul.f32 %v160, 0.03125
    %v164 = vmul.f32 %v162, 0.03125
    %v165 = vmul.f32 %v155, %v155
    %v166 = vmul.f32 %v156, %v156
    %v167 = vsub.f32 %v163, %v165
    %v168 = vsub.f32 %v164, %v166
    %v169 = vsub.f32 %v147, %v155
    %v170 = vsub.f32 %v148, %v156
    %v171 = vadd.f32 %v167, 1e-12
    %v172 = vadd.f32 %v168, 1e-12
    %v173 = vrsqrt.pop %v171
    %v174 = vrsqrt.pop %v172
    %v175 = vmul.f32 %v169, %v173
    %v176 = vmul.f32 %v170, %v174
    %v178 = vlaneseq
    %v179 = vshrl.u32 %v178, 7
    %v180 = vsub.s32 0, %v179
    %v181 = vrot.slane %v149, %v180
    %v183 = vmul.f32 %v175, %v181
    %v184 = vmul.f32 %v176, %v181
    %v186 = vlaneseq
    %v187 = vshrl.u32 %v186, 7
    %v188 = vsub.s32 0, %v187
    %v189 = vrot.slane %v150, %v188
    %v191 = vadd.f32 %v183, %v189
    %v192 = vadd.f32 %v184, %v189
    %v193 = vld [vmem:[%s1] sm:$0xff]
    %v194 = vld [vmem:[%s1 + $0x8] sm:$0xff]
    %v195 = vld [vmem:[#allocation2] sm:$0xff]
    %v196 = vld [vmem:[#allocation2 + $0x8] sm:$0xff]
    %v197 = vld [vmem:[#allocation2 + $0x10] sm:$0xff]
    %v198 = vld [vmem:[#allocation2 + $0x18] sm:$0xff]
    %v199 = vld [vmem:[#allocation2 + $0x20] sm:$0xff]
    %v200 = vld [vmem:[#allocation2 + $0x28] sm:$0xff]
    %v201 = vld [vmem:[#allocation2 + $0x30] sm:$0xff]
    %v202 = vld [vmem:[#allocation2 + $0x38] sm:$0xff]
    %v203 = vld [vmem:[#allocation2 + $0x40] sm:$0xff]
    %v204 = vld [vmem:[#allocation2 + $0x48] sm:$0xff]
    %v205 = vld [vmem:[#allocation2 + $0x50] sm:$0xff]
    %v206 = vld [vmem:[#allocation2 + $0x58] sm:$0xff]
    %v207 = vld [vmem:[#allocation2 + $0x60] sm:$0xff]
    %v208 = vld [vmem:[#allocation2 + $0x68] sm:$0xff]
    %v209 = vld [vmem:[#allocation2 + $0x70] sm:$0xff]
    %v210 = vld [vmem:[#allocation2 + $0x78] sm:$0xff]
    %v211 = vld [vmem:[#allocation2 + $0x80] sm:$0xff]
    %v212 = vld [vmem:[#allocation2 + $0x88] sm:$0xff]
    %v213 = vld [vmem:[#allocation2 + $0x90] sm:$0xff]
    %v214 = vld [vmem:[#allocation2 + $0x98] sm:$0xff]
    %v215 = vld [vmem:[#allocation2 + $0xa0] sm:$0xff]
    %v216 = vld [vmem:[#allocation2 + $0xa8] sm:$0xff]
    %v217 = vld [vmem:[#allocation2 + $0xb0] sm:$0xff]
    %v218 = vld [vmem:[#allocation2 + $0xb8] sm:$0xff]
    %v219 = vld [vmem:[#allocation2 + $0xc0] sm:$0xff]
    %v220 = vld [vmem:[#allocation2 + $0xc8] sm:$0xff]
    %v221 = vld [vmem:[#allocation2 + $0xd0] sm:$0xff]
    %v222 = vld [vmem:[#allocation2 + $0xd8] sm:$0xff]
    %v223 = vld [vmem:[#allocation2 + $0xe0] sm:$0xff]
    %v224 = vld [vmem:[#allocation2 + $0xe8] sm:$0xff]
    %v225 = vld [vmem:[#allocation2 + $0xf0] sm:$0xff]
    %v226 = vld [vmem:[#allocation2 + $0xf8] sm:$0xff]
    %v227 = vld [vmem:[#allocation2 + $0x100] sm:$0xff]
    %v228 = vld [vmem:[#allocation2 + $0x108] sm:$0xff]
    %v229 = vld [vmem:[#allocation2 + $0x110] sm:$0xff]
    %v230 = vld [vmem:[#allocation2 + $0x118] sm:$0xff]
    %v231 = vld [vmem:[#allocation2 + $0x120] sm:$0xff]
    %v232 = vld [vmem:[#allocation2 + $0x128] sm:$0xff]
    %v233 = vld [vmem:[#allocation2 + $0x130] sm:$0xff]
    %v234 = vld [vmem:[#allocation2 + $0x138] sm:$0xff]
    %v235 = vld [vmem:[#allocation2 + $0x140] sm:$0xff]
    %v236 = vld [vmem:[#allocation2 + $0x148] sm:$0xff]
    %v237 = vld [vmem:[#allocation2 + $0x150] sm:$0xff]
    %v238 = vld [vmem:[#allocation2 + $0x158] sm:$0xff]
    %v239 = vld [vmem:[#allocation2 + $0x160] sm:$0xff]
    %v240 = vld [vmem:[#allocation2 + $0x168] sm:$0xff]
    %v241 = vld [vmem:[#allocation2 + $0x170] sm:$0xff]
    %v242 = vld [vmem:[#allocation2 + $0x178] sm:$0xff]
    %v243 = vpack.c.bf16 %v192, %v191
    %v244 = vld [vmem:[%s5] sm:$0x3f]
    %v246 = vlaneseq
    %v247 = vshrl.u32 %v246, 7
    %v248 = vsub.s32 0, %v247
    %v249 = vrot.slane %v244, %v248
    %v250 = vlaneseq
    %v251 = vshrl.u32 %v250, 7
    %v252 = vsub.s32 1, %v251
    %v253 = vrot.slane %v244, %v252
    %v254 = vlaneseq
    %v255 = vshrl.u32 %v254, 7
    %v256 = vsub.s32 2, %v255
    %v257 = vrot.slane %v244, %v256
    %v258 = vlaneseq
    %v259 = vshrl.u32 %v258, 7
    %v260 = vsub.s32 3, %v259
    %v261 = vrot.slane %v244, %v260
    %v262 = vlaneseq
    %v263 = vshrl.u32 %v262, 7
    %v264 = vsub.s32 4, %v263
    %v265 = vrot.slane %v244, %v264
    %v266 = vlaneseq
    %v267 = vshrl.u32 %v266, 7
    %v268 = vsub.s32 5, %v267
    %v269 = vrot.slane %v244, %v268
    %v324 = vunpack.c.l.b16 %v195
    %v325 = vunpack.c.h.b16 %v195
    %v326 = vunpack.c.l.b16 %v196
    %v327 = vunpack.c.h.b16 %v196
    %v328 = vunpack.c.l.b16 %v197
    %v329 = vunpack.c.h.b16 %v197
    %v330 = vunpack.c.l.b16 %v198
    %v331 = vunpack.c.h.b16 %v198
    %v332 = vunpack.c.l.b16 %v199
    %v333 = vunpack.c.h.b16 %v199
    %v334 = vunpack.c.l.b16 %v200
    %v335 = vunpack.c.h.b16 %v200
    %v336 = vunpack.c.l.b16 %v201
    %v337 = vunpack.c.h.b16 %v201
    %v338 = vunpack.c.l.b16 %v202
    %v339 = vunpack.c.h.b16 %v202
    %v340 = vunpack.c.l.b16 %v203
    %v341 = vunpack.c.h.b16 %v203
    %v342 = vunpack.c.l.b16 %v204
    %v343 = vunpack.c.h.b16 %v204
    %v344 = vunpack.c.l.b16 %v205
    %v345 = vunpack.c.h.b16 %v205
    %v346 = vunpack.c.l.b16 %v206
    %v347 = vunpack.c.h.b16 %v206
    %v348 = vunpack.c.l.b16 %v207
    %v349 = vunpack.c.h.b16 %v207
    %v350 = vunpack.c.l.b16 %v208
    %v351 = vunpack.c.h.b16 %v208
    %v352 = vunpack.c.l.b16 %v209
    %v353 = vunpack.c.h.b16 %v209
    %v354 = vunpack.c.l.b16 %v210
    %v355 = vunpack.c.h.b16 %v210
    %v356 = vunpack.c.l.b16 %v211
    %v357 = vunpack.c.h.b16 %v211
    %v358 = vunpack.c.l.b16 %v212
    %v359 = vunpack.c.h.b16 %v212
    %v360 = vunpack.c.l.b16 %v213
    %v361 = vunpack.c.h.b16 %v213
    %v362 = vunpack.c.l.b16 %v214
    %v363 = vunpack.c.h.b16 %v214
    %v364 = vunpack.c.l.b16 %v215
    %v365 = vunpack.c.h.b16 %v215
    %v366 = vunpack.c.l.b16 %v216
    %v367 = vunpack.c.h.b16 %v216
    %v368 = vunpack.c.l.b16 %v217
    %v369 = vunpack.c.h.b16 %v217
    %v370 = vunpack.c.l.b16 %v218
    %v371 = vunpack.c.h.b16 %v218
    %v372 = vunpack.c.l.b16 %v219
    %v373 = vunpack.c.h.b16 %v219
    %v374 = vunpack.c.l.b16 %v220
    %v375 = vunpack.c.h.b16 %v220
    %v376 = vunpack.c.l.b16 %v221
    %v377 = vunpack.c.h.b16 %v221
    %v378 = vunpack.c.l.b16 %v222
    %v379 = vunpack.c.h.b16 %v222
    %v380 = vunpack.c.l.b16 %v223
    %v381 = vunpack.c.h.b16 %v223
    %v382 = vunpack.c.l.b16 %v224
    %v383 = vunpack.c.h.b16 %v224
    %v384 = vunpack.c.l.b16 %v225
    %v385 = vunpack.c.h.b16 %v225
    %v386 = vunpack.c.l.b16 %v226
    %v387 = vunpack.c.h.b16 %v226
    %v388 = vunpack.c.l.b16 %v227
    %v389 = vunpack.c.h.b16 %v227
    %v390 = vunpack.c.l.b16 %v228
    %v391 = vunpack.c.h.b16 %v228
    %v392 = vunpack.c.l.b16 %v229
    %v393 = vunpack.c.h.b16 %v229
    %v394 = vunpack.c.l.b16 %v230
    %v395 = vunpack.c.h.b16 %v230
    %v396 = vunpack.c.l.b16 %v231
    %v397 = vunpack.c.h.b16 %v231
    %v398 = vunpack.c.l.b16 %v232
    %v399 = vunpack.c.h.b16 %v232
    %v400 = vunpack.c.l.b16 %v233
    %v401 = vunpack.c.h.b16 %v233
    %v402 = vunpack.c.l.b16 %v234
    %v403 = vunpack.c.h.b16 %v234
    %v404 = vunpack.c.l.b16 %v235
    %v405 = vunpack.c.h.b16 %v235
    %v406 = vunpack.c.l.b16 %v236
    %v407 = vunpack.c.h.b16 %v236
    %v408 = vunpack.c.l.b16 %v237
    %v409 = vunpack.c.h.b16 %v237
    %v410 = vunpack.c.l.b16 %v238
    %v411 = vunpack.c.h.b16 %v238
    %v412 = vunpack.c.l.b16 %v239
    %v413 = vunpack.c.h.b16 %v239
    %v414 = vunpack.c.l.b16 %v240
    %v415 = vunpack.c.h.b16 %v240
    %v416 = vunpack.c.l.b16 %v241
    %v417 = vunpack.c.h.b16 %v241
    %v418 = vunpack.c.l.b16 %v242
    %v419 = vunpack.c.h.b16 %v242
    %v420 = vpack.c.b16 %v330, %v324
    %v421 = vpack.c.b16 %v331, %v325
    %v422 = vpack.c.b16 %v332, %v326
    %v423 = vpack.c.b16 %v333, %v327
    %v424 = vpack.c.b16 %v334, %v328
    %v425 = vpack.c.b16 %v335, %v329
    %v426 = vpack.c.b16 %v342, %v336
    %v427 = vpack.c.b16 %v343, %v337
    %v428 = vpack.c.b16 %v344, %v338
    %v429 = vpack.c.b16 %v345, %v339
    %v430 = vpack.c.b16 %v346, %v340
    %v431 = vpack.c.b16 %v347, %v341
    %v432 = vpack.c.b16 %v354, %v348
    %v433 = vpack.c.b16 %v355, %v349
    %v434 = vpack.c.b16 %v356, %v350
    %v435 = vpack.c.b16 %v357, %v351
    %v436 = vpack.c.b16 %v358, %v352
    %v437 = vpack.c.b16 %v359, %v353
    %v438 = vpack.c.b16 %v366, %v360
    %v439 = vpack.c.b16 %v367, %v361
    %v440 = vpack.c.b16 %v368, %v362
    %v441 = vpack.c.b16 %v369, %v363
    %v442 = vpack.c.b16 %v370, %v364
    %v443 = vpack.c.b16 %v371, %v365
    %v444 = vpack.c.b16 %v378, %v372
    %v445 = vpack.c.b16 %v379, %v373
    %v446 = vpack.c.b16 %v380, %v374
    %v447 = vpack.c.b16 %v381, %v375
    %v448 = vpack.c.b16 %v382, %v376
    %v449 = vpack.c.b16 %v383, %v377
    %v450 = vpack.c.b16 %v390, %v384
    %v451 = vpack.c.b16 %v391, %v385
    %v452 = vpack.c.b16 %v392, %v386
    %v453 = vpack.c.b16 %v393, %v387
    %v454 = vpack.c.b16 %v394, %v388
    %v455 = vpack.c.b16 %v395, %v389
    %v456 = vpack.c.b16 %v402, %v396
    %v457 = vpack.c.b16 %v403, %v397
    %v458 = vpack.c.b16 %v404, %v398
    %v459 = vpack.c.b16 %v405, %v399
    %v460 = vpack.c.b16 %v406, %v400
    %v461 = vpack.c.b16 %v407, %v401
    %v462 = vpack.c.b16 %v414, %v408
    %v463 = vpack.c.b16 %v415, %v409
    %v464 = vpack.c.b16 %v416, %v410
    %v465 = vpack.c.b16 %v417, %v411
    %v466 = vpack.c.b16 %v418, %v412
    %v467 = vpack.c.b16 %v419, %v413
    %516 = vmatprep.subr.bf16.mxu0 %v421
    %517 = vmatpush1.bf16.msra.mxu0 %v420
    %518 = vmatprep.subr.bf16.mxu0 %v427
    %519 = vmatpush1.bf16.msra.mxu0 %v426
    %520 = vmatprep.subr.bf16.mxu0 %v433
    %521 = vmatpush1.bf16.msra.mxu0 %v432
    %522 = vmatprep.subr.bf16.mxu0 %v439
    %523 = vmatpush1.bf16.msra.mxu0 %v438
    %524 = vmatprep.subr.bf16.mxu0 %v445
    %525 = vmatpush1.bf16.msra.mxu0 %v444
    %526 = vmatprep.subr.bf16.mxu0 %v451
    %527 = vmatpush1.bf16.msra.mxu0 %v450
    %528 = vmatprep.subr.bf16.mxu0 %v457
    %529 = vmatpush1.bf16.msra.mxu0 %v456
    %530 = vmatprep.subr.bf16.mxu0 %v463
    %531 = vmatpush1.bf16.msra.mxu0 %v462
    %532 = vmatprep.subr.bf16.mxu0 0
    %533 = vmatpush1.bf16.msra.mxu0 0
    %534 = vmatprep.subr.bf16.mxu0 0
    %535 = vmatpush1.bf16.msra.mxu0 0
    %536 = vmatprep.subr.bf16.mxu0 0
    %537 = vmatpush1.bf16.msra.mxu0 0
    %538 = vmatprep.subr.bf16.mxu0 0
    %539 = vmatpush1.bf16.msra.mxu0 0
    %540 = vmatprep.subr.bf16.mxu0 0
    %541 = vmatpush1.bf16.msra.mxu0 0
    %542 = vmatprep.subr.bf16.mxu0 0
    %543 = vmatpush1.bf16.msra.mxu0 0
    %544 = vmatprep.subr.bf16.mxu0 0
    %545 = vmatpush1.bf16.msra.mxu0 0
    %546 = vmatprep.subr.bf16.mxu0 0
    %547 = vmatpush1.bf16.msra.mxu0 0
    %548 = vmatprep.mubr.bf16.mxu0 0
    %549 = vmatmul.mubr.bf16.gmra.mrb[0].mxu0 %v243
    %v550 = vpop.f32.mrb[0].mxu0
    %v551 = vadd.f32 %v249, %v550
    %v552 = vpop.f32.mrb[0].mxu0
    %v553 = vadd.f32 %v253, %v552
    %v554 = vpop.f32.mrb[0].mxu0
    %v555 = vadd.f32 %v249, %v554
    %v556 = vpop.f32.mrb[0].mxu0
    %v557 = vadd.f32 %v253, %v556
    %558 = vdwg.mxu0
    %559 = vmatprep.subr.bf16.mxu0 %v423
    %560 = vmatpush1.bf16.msra.mxu0 %v422
    %561 = vmatprep.subr.bf16.mxu0 %v429
    %562 = vmatpush1.bf16.msra.mxu0 %v428
    %563 = vmatprep.subr.bf16.mxu0 %v435
    %564 = vmatpush1.bf16.msra.mxu0 %v434
    %565 = vmatprep.subr.bf16.mxu0 %v441
    %566 = vmatpush1.bf16.msra.mxu0 %v440
    %567 = vmatprep.subr.bf16.mxu0 %v447
    %568 = vmatpush1.bf16.msra.mxu0 %v446
    %569 = vmatprep.subr.bf16.mxu0 %v453
    %570 = vmatpush1.bf16.msra.mxu0 %v452
    %571 = vmatprep.subr.bf16.mxu0 %v459
    %572 = vmatpush1.bf16.msra.mxu0 %v458
    %573 = vmatprep.subr.bf16.mxu0 %v465
    %574 = vmatpush1.bf16.msra.mxu0 %v464
    %575 = vmatprep.subr.bf16.mxu0 0
    %576 = vmatpush1.bf16.msra.mxu0 0
    %577 = vmatprep.subr.bf16.mxu0 0
    %578 = vmatpush1.bf16.msra.mxu0 0
    %579 = vmatprep.subr.bf16.mxu0 0
    %580 = vmatpush1.bf16.msra.mxu0 0
    %581 = vmatprep.subr.bf16.mxu0 0
    %582 = vmatpush1.bf16.msra.mxu0 0
    %583 = vmatprep.subr.bf16.mxu0 0
    %584 = vmatpush1.bf16.msra.mxu0 0
    %585 = vmatprep.subr.bf16.mxu0 0
    %586 = vmatpush1.bf16.msra.mxu0 0
    %587 = vmatprep.subr.bf16.mxu0 0
    %588 = vmatpush1.bf16.msra.mxu0 0
    %589 = vmatprep.subr.bf16.mxu0 0
    %590 = vmatpush1.bf16.msra.mxu0 0
    %591 = vmatprep.mubr.bf16.mxu0 0
    %592 = vmatmul.mubr.bf16.gmra.mrb[0].mxu0 %v243
    %v593 = vpop.f32.mrb[0].mxu0
    %v594 = vadd.f32 %v257, %v593
    %v595 = vpop.f32.mrb[0].mxu0
    %v596 = vadd.f32 %v261, %v595
    %v597 = vpop.f32.mrb[0].mxu0
    %v598 = vadd.f32 %v257, %v597
    %v599 = vpop.f32.mrb[0].mxu0
    %v600 = vadd.f32 %v261, %v599
    %601 = vdwg.mxu0
    %602 = vmatprep.subr.bf16.mxu0 %v425
    %603 = vmatpush1.bf16.msra.mxu0 %v424
    %604 = vmatprep.subr.bf16.mxu0 %v431
    %605 = vmatpush1.bf16.msra.mxu0 %v430
    %606 = vmatprep.subr.bf16.mxu0 %v437
    %607 = vmatpush1.bf16.msra.mxu0 %v436
    %608 = vmatprep.subr.bf16.mxu0 %v443
    %609 = vmatpush1.bf16.msra.mxu0 %v442
    %610 = vmatprep.subr.bf16.mxu0 %v449
    %611 = vmatpush1.bf16.msra.mxu0 %v448
    %612 = vmatprep.subr.bf16.mxu0 %v455
    %613 = vmatpush1.bf16.msra.mxu0 %v454
    %614 = vmatprep.subr.bf16.mxu0 %v461
    %615 = vmatpush1.bf16.msra.mxu0 %v460
    %616 = vmatprep.subr.bf16.mxu0 %v467
    %617 = vmatpush1.bf16.msra.mxu0 %v466
    %618 = vmatprep.subr.bf16.mxu0 0
    %619 = vmatpush1.bf16.msra.mxu0 0
    %620 = vmatprep.subr.bf16.mxu0 0
    %621 = vmatpush1.bf16.msra.mxu0 0
    %622 = vmatprep.subr.bf16.mxu0 0
    %623 = vmatpush1.bf16.msra.mxu0 0
    %624 = vmatprep.subr.bf16.mxu0 0
    %625 = vmatpush1.bf16.msra.mxu0 0
    %626 = vmatprep.subr.bf16.mxu0 0
    %627 = vmatpush1.bf16.msra.mxu0 0
    %628 = vmatprep.subr.bf16.mxu0 0
    %629 = vmatpush1.bf16.msra.mxu0 0
    %630 = vmatprep.subr.bf16.mxu0 0
    %631 = vmatpush1.bf16.msra.mxu0 0
    %632 = vmatprep.subr.bf16.mxu0 0
    %633 = vmatpush1.bf16.msra.mxu0 0
    %634 = vmatprep.mubr.bf16.mxu0 0
    %635 = vmatmul.mubr.bf16.gmra.mrb[0].mxu0 %v243
    %v636 = vpop.f32.mrb[0].mxu0
    %v637 = vadd.f32 %v265, %v636
    %v638 = vpop.f32.mrb[0].mxu0
    %v639 = vadd.f32 %v269, %v638
    %v640 = vpop.f32.mrb[0].mxu0
    %v641 = vadd.f32 %v265, %v640
    %v642 = vpop.f32.mrb[0].mxu0
    %v643 = vadd.f32 %v269, %v642
    %644 = vdwg.mxu0
    %v645 = vpack.c.bf16 %v555, %v551
    %v646 = vpack.c.bf16 %v598, %v594
    %647 = vmatprep.subr.bf16.mxu0 0
    %648 = vmatpush1.bf16.xpose.msra.mxu0 %v646
    %649 = vmatprep.subr.bf16.mxu0 0
    %650 = vmatpush1.bf16.xpose.msra.mxu0 0
    %651 = vmatprep.subr.bf16.mxu0 0
    %652 = vmatpush1.bf16.xpose.msra.mxu0 0
    %653 = vmatprep.subr.bf16.mxu0 0
    %654 = vmatpush1.bf16.xpose.msra.mxu0 0
    %655 = vmatprep.subr.bf16.mxu0 0
    %656 = vmatpush1.bf16.xpose.msra.mxu0 0
    %657 = vmatprep.subr.bf16.mxu0 0
    %658 = vmatpush1.bf16.xpose.msra.mxu0 0
    %659 = vmatprep.subr.bf16.mxu0 0
    %660 = vmatpush1.bf16.xpose.msra.mxu0 0
    %661 = vmatprep.subr.bf16.mxu0 0
    %662 = vmatpush1.bf16.xpose.msra.mxu0 0
    %663 = vmatprep.subr.bf16.mxu0 0
    %664 = vmatpush1.bf16.xpose.msra.mxu0 0
    %665 = vmatprep.subr.bf16.mxu0 0
    %666 = vmatpush1.bf16.xpose.msra.mxu0 0
    %667 = vmatprep.subr.bf16.mxu0 0
    %668 = vmatpush1.bf16.xpose.msra.mxu0 0
    %669 = vmatprep.subr.bf16.mxu0 0
    %670 = vmatpush1.bf16.xpose.msra.mxu0 0
    %671 = vmatprep.subr.bf16.mxu0 0
    %672 = vmatpush1.bf16.xpose.msra.mxu0 0
    %673 = vmatprep.subr.bf16.mxu0 0
    %674 = vmatpush1.bf16.xpose.msra.mxu0 0
    %675 = vmatprep.subr.bf16.mxu0 0
    %676 = vmatpush1.bf16.xpose.msra.mxu0 0
    %677 = vmatprep.subr.bf16.mxu0 0
    %678 = vmatpush1.bf16.xpose.msra.mxu0 0
    %679 = vmatprep.mubr.bf16.mxu0 0
    %680 = vmatmul.mubr.bf16.gmra.mrb[0].mxu0 %v645
    %v681 = vpop.f32.mrb[0].mxu0
    %v682 = vadd.f32 0.0, %v681
    %v683 = vpop.f32.mrb[0].mxu0
    %v684 = vpop.f32.mrb[0].mxu0
    %v685 = vadd.f32 0.0, %v684
    %v686 = vpop.f32.mrb[0].mxu0
    %687 = vdwg.mxu0
    %v688 = vmul.f32 %v682, 0.25
    %v689 = vmul.f32 %v685, 0.25
    %v690 = vadd.f32 %v688, %v193
    %v691 = vadd.f32 %v689, %v194
    %vm692 = vcmask 130048
    %v693 = vsel %vm692, %v690, -inf
    %694 = vmax.xlane.f32.xlu0 %v693
    %v695 = vpop.xlane.xlu0 %694
    %v696 = vsel %vm692, %v691, -inf
    %697 = vmax.xlane.f32.xlu0 %v696
    %v698 = vpop.xlane.xlu0 %697
    %v699 = vsub.f32 %v690, %v695
    %v700 = vsub.f32 %v691, %v698
    %v701 = vmul.f32 %v699, 1.442695
    %v702 = vpow.pop %v701
    %v703 = vmul.f32 %v700, 1.442695
    %v704 = vpow.pop %v703
    %v705 = vsel %vm692, %v702, 0.0
    %706 = vadd.xlane.f32.xlu0 %v705
    %v707 = vpop.xlane.xlu0 %706
    %v708 = vsel %vm692, %v704, 0.0
    %709 = vadd.xlane.f32.xlu0 %v708
    %v710 = vpop.xlane.xlu0 %709
    %v711 = vrcp.pop %v707
    %v712 = vrcp.pop %v710
    %v713 = vmul.f32 %v702, %v711
    %v714 = vmul.f32 %v704, %v712
    %v715 = vpack.c.bf16 %v714, %v713
    %v716 = vpack.c.bf16 %v641, %v637
    %v718 = vsel %vm692, %v715, 0
    %720 = vmatprep.subr.bf16.mxu0 0
    %721 = vmatpush1.bf16.msra.mxu0 %v716
    %722 = vmatprep.subr.bf16.mxu0 0
    %723 = vmatpush1.bf16.msra.mxu0 0
    %724 = vmatprep.subr.bf16.mxu0 0
    %725 = vmatpush1.bf16.msra.mxu0 0
    %726 = vmatprep.subr.bf16.mxu0 0
    %727 = vmatpush1.bf16.msra.mxu0 0
    %728 = vmatprep.subr.bf16.mxu0 0
    %729 = vmatpush1.bf16.msra.mxu0 0
    %730 = vmatprep.subr.bf16.mxu0 0
    %731 = vmatpush1.bf16.msra.mxu0 0
    %732 = vmatprep.subr.bf16.mxu0 0
    %733 = vmatpush1.bf16.msra.mxu0 0
    %734 = vmatprep.subr.bf16.mxu0 0
    %735 = vmatpush1.bf16.msra.mxu0 0
    %736 = vmatprep.subr.bf16.mxu0 0
    %737 = vmatpush1.bf16.msra.mxu0 0
    %738 = vmatprep.subr.bf16.mxu0 0
    %739 = vmatpush1.bf16.msra.mxu0 0
    %740 = vmatprep.subr.bf16.mxu0 0
    %741 = vmatpush1.bf16.msra.mxu0 0
    %742 = vmatprep.subr.bf16.mxu0 0
    %743 = vmatpush1.bf16.msra.mxu0 0
    %744 = vmatprep.subr.bf16.mxu0 0
    %745 = vmatpush1.bf16.msra.mxu0 0
    %746 = vmatprep.subr.bf16.mxu0 0
    %747 = vmatpush1.bf16.msra.mxu0 0
    %748 = vmatprep.subr.bf16.mxu0 0
    %749 = vmatpush1.bf16.msra.mxu0 0
    %750 = vmatprep.subr.bf16.mxu0 0
    %751 = vmatpush1.bf16.msra.mxu0 0
    %752 = vmatprep.mubr.bf16.mxu0 0
    %753 = vmatmul.mubr.bf16.gmra.mrb[0].mxu0 %v718
    %v754 = vpop.f32.mrb[0].mxu0
    %v755 = vadd.f32 0.0, %v754
    %v756 = vpop.f32.mrb[0].mxu0
    %v757 = vpop.f32.mrb[0].mxu0
    %v758 = vadd.f32 0.0, %v757
    %v759 = vpop.f32.mrb[0].mxu0
    %760 = vdwg.mxu0
    %v761 = vpack.c.bf16 %v557, %v553
    %v762 = vpack.c.bf16 %v600, %v596
    %763 = vmatprep.subr.bf16.mxu0 0
    %764 = vmatpush1.bf16.xpose.msra.mxu0 %v762
    %765 = vmatprep.subr.bf16.mxu0 0
    %766 = vmatpush1.bf16.xpose.msra.mxu0 0
    %767 = vmatprep.subr.bf16.mxu0 0
    %768 = vmatpush1.bf16.xpose.msra.mxu0 0
    %769 = vmatprep.subr.bf16.mxu0 0
    %770 = vmatpush1.bf16.xpose.msra.mxu0 0
    %771 = vmatprep.subr.bf16.mxu0 0
    %772 = vmatpush1.bf16.xpose.msra.mxu0 0
    %773 = vmatprep.subr.bf16.mxu0 0
    %774 = vmatpush1.bf16.xpose.msra.mxu0 0
    %775 = vmatprep.subr.bf16.mxu0 0
    %776 = vmatpush1.bf16.xpose.msra.mxu0 0
    %777 = vmatprep.subr.bf16.mxu0 0
    %778 = vmatpush1.bf16.xpose.msra.mxu0 0
    %779 = vmatprep.subr.bf16.mxu0 0
    %780 = vmatpush1.bf16.xpose.msra.mxu0 0
    %781 = vmatprep.subr.bf16.mxu0 0
    %782 = vmatpush1.bf16.xpose.msra.mxu0 0
    %783 = vmatprep.subr.bf16.mxu0 0
    %784 = vmatpush1.bf16.xpose.msra.mxu0 0
    %785 = vmatprep.subr.bf16.mxu0 0
    %786 = vmatpush1.bf16.xpose.msra.mxu0 0
    %787 = vmatprep.subr.bf16.mxu0 0
    %788 = vmatpush1.bf16.xpose.msra.mxu0 0
    %789 = vmatprep.subr.bf16.mxu0 0
    %790 = vmatpush1.bf16.xpose.msra.mxu0 0
    %791 = vmatprep.subr.bf16.mxu0 0
    %792 = vmatpush1.bf16.xpose.msra.mxu0 0
    %793 = vmatprep.subr.bf16.mxu0 0
    %794 = vmatpush1.bf16.xpose.msra.mxu0 0
    %795 = vmatprep.mubr.bf16.mxu0 0
    %796 = vmatmul.mubr.bf16.gmra.mrb[0].mxu0 %v761
    %v797 = vpop.f32.mrb[0].mxu0
    %v798 = vadd.f32 0.0, %v797
    %v799 = vpop.f32.mrb[0].mxu0
    %v800 = vpop.f32.mrb[0].mxu0
    %v801 = vadd.f32 0.0, %v800
    %v802 = vpop.f32.mrb[0].mxu0
    %803 = vdwg.mxu0
    %v804 = vmul.f32 %v798, 0.25
    %v805 = vmul.f32 %v801, 0.25
    %v806 = vadd.f32 %v804, %v193
    %v807 = vadd.f32 %v805, %v194
    %v808 = vsel %vm692, %v806, -inf
    %809 = vmax.xlane.f32.xlu0 %v808
    %v810 = vpop.xlane.xlu0 %809
    %v811 = vsel %vm692, %v807, -inf
    %812 = vmax.xlane.f32.xlu0 %v811
    %v813 = vpop.xlane.xlu0 %812
    %v814 = vsub.f32 %v806, %v810
    %v815 = vsub.f32 %v807, %v813
    %v816 = vmul.f32 %v814, 1.442695
    %v817 = vpow.pop %v816
    %v818 = vmul.f32 %v815, 1.442695
    %v819 = vpow.pop %v818
    %v820 = vsel %vm692, %v817, 0.0
    %821 = vadd.xlane.f32.xlu0 %v820
    %v822 = vpop.xlane.xlu0 %821
    %v823 = vsel %vm692, %v819, 0.0
    %824 = vadd.xlane.f32.xlu0 %v823
    %v825 = vpop.xlane.xlu0 %824
    %v826 = vrcp.pop %v822
    %v827 = vrcp.pop %v825
    %v828 = vmul.f32 %v817, %v826
    %v829 = vmul.f32 %v819, %v827
    %v830 = vpack.c.bf16 %v829, %v828
    %v831 = vpack.c.bf16 %v643, %v639
    %v833 = vsel %vm692, %v830, 0
    %835 = vmatprep.subr.bf16.mxu0 0
    %836 = vmatpush1.bf16.msra.mxu0 %v831
    %837 = vmatprep.subr.bf16.mxu0 0
    %838 = vmatpush1.bf16.msra.mxu0 0
    %839 = vmatprep.subr.bf16.mxu0 0
    %840 = vmatpush1.bf16.msra.mxu0 0
    %841 = vmatprep.subr.bf16.mxu0 0
    %842 = vmatpush1.bf16.msra.mxu0 0
    %843 = vmatprep.subr.bf16.mxu0 0
    %844 = vmatpush1.bf16.msra.mxu0 0
    %845 = vmatprep.subr.bf16.mxu0 0
    %846 = vmatpush1.bf16.msra.mxu0 0
    %847 = vmatprep.subr.bf16.mxu0 0
    %848 = vmatpush1.bf16.msra.mxu0 0
    %849 = vmatprep.subr.bf16.mxu0 0
    %850 = vmatpush1.bf16.msra.mxu0 0
    %851 = vmatprep.subr.bf16.mxu0 0
    %852 = vmatpush1.bf16.msra.mxu0 0
    %853 = vmatprep.subr.bf16.mxu0 0
    %854 = vmatpush1.bf16.msra.mxu0 0
    %855 = vmatprep.subr.bf16.mxu0 0
    %856 = vmatpush1.bf16.msra.mxu0 0
    %857 = vmatprep.subr.bf16.mxu0 0
    %858 = vmatpush1.bf16.msra.mxu0 0
    %859 = vmatprep.subr.bf16.mxu0 0
    %860 = vmatpush1.bf16.msra.mxu0 0
    %861 = vmatprep.subr.bf16.mxu0 0
    %862 = vmatpush1.bf16.msra.mxu0 0
    %863 = vmatprep.subr.bf16.mxu0 0
    %864 = vmatpush1.bf16.msra.mxu0 0
    %865 = vmatprep.subr.bf16.mxu0 0
    %866 = vmatpush1.bf16.msra.mxu0 0
    %867 = vmatprep.mubr.bf16.mxu0 0
    %868 = vmatmul.mubr.bf16.gmra.mrb[0].mxu0 %v833
    %v869 = vpop.f32.mrb[0].mxu0
    %v870 = vadd.f32 0.0, %v869
    %v871 = vpop.f32.mrb[0].mxu0
    %v872 = vpop.f32.mrb[0].mxu0
    %v873 = vadd.f32 0.0, %v872
    %v874 = vpop.f32.mrb[0].mxu0
    %875 = vdwg.mxu0
    %v876 = vld [vmem:[%s6] sm:$0xf]
    %v877 = vld [vmem:[%s6 + $0x4] sm:$0xf]
    %v878 = vld [vmem:[%s6 + $0x8] sm:$0xf]
    %v879 = vld [vmem:[%s6 + $0xc] sm:$0xf]
    %v880 = vld [vmem:[%s6 + $0x10] sm:$0xf]
    %v881 = vld [vmem:[%s6 + $0x14] sm:$0xf]
    %v882 = vld [vmem:[%s6 + $0x18] sm:$0xf]
    %v883 = vld [vmem:[%s6 + $0x1c] sm:$0xf]
    %v884 = vld [vmem:[%s6 + $0x20] sm:$0xf]
    %v885 = vld [vmem:[%s6 + $0x24] sm:$0xf]
    %v886 = vld [vmem:[%s6 + $0x28] sm:$0xf]
    %v887 = vld [vmem:[%s6 + $0x2c] sm:$0xf]
    %v888 = vld [vmem:[%s6 + $0x30] sm:$0xf]
    %v889 = vld [vmem:[%s6 + $0x34] sm:$0xf]
    %v890 = vld [vmem:[%s6 + $0x38] sm:$0xf]
    %v891 = vld [vmem:[%s6 + $0x3c] sm:$0xf]
    %v892 = vld [vmem:[%s6 + $0x40] sm:$0xf]
    %v893 = vld [vmem:[%s6 + $0x44] sm:$0xf]
    %v894 = vld [vmem:[%s6 + $0x48] sm:$0xf]
    %v895 = vld [vmem:[%s6 + $0x4c] sm:$0xf]
    %v896 = vld [vmem:[%s6 + $0x50] sm:$0xf]
    %v897 = vld [vmem:[%s6 + $0x54] sm:$0xf]
    %v898 = vld [vmem:[%s6 + $0x58] sm:$0xf]
    %v899 = vld [vmem:[%s6 + $0x5c] sm:$0xf]
    %v900 = vld [vmem:[%s6 + $0x60] sm:$0xf]
    %v901 = vld [vmem:[%s6 + $0x64] sm:$0xf]
    %v902 = vld [vmem:[%s6 + $0x68] sm:$0xf]
    %v903 = vld [vmem:[%s6 + $0x6c] sm:$0xf]
    %v904 = vld [vmem:[%s6 + $0x70] sm:$0xf]
    %v905 = vld [vmem:[%s6 + $0x74] sm:$0xf]
    %v906 = vld [vmem:[%s6 + $0x78] sm:$0xf]
    %v907 = vld [vmem:[%s6 + $0x7c] sm:$0xf]
    %v908 = vpack.c.bf16 %v758, %v755
    %v909 = vpack.c.bf16 %v873, %v870
    %v910 = vld [vmem:[%s7] sm:$0x1]
    %v912 = vlaneseq
    %v913 = vshrl.u32 %v912, 7
    %v914 = vsub.s32 0, %v913
    %v915 = vrot.slane %v910, %v914
    %v949 = vunpack.c.l.b16 %v876
    %v950 = vunpack.c.l.b16 %v877
    %v951 = vunpack.c.l.b16 %v878
    %v952 = vunpack.c.l.b16 %v879
    %v953 = vunpack.c.l.b16 %v880
    %v954 = vunpack.c.l.b16 %v881
    %v955 = vunpack.c.l.b16 %v882
    %v956 = vunpack.c.l.b16 %v883
    %v957 = vunpack.c.l.b16 %v884
    %v958 = vunpack.c.l.b16 %v885
    %v959 = vunpack.c.l.b16 %v886
    %v960 = vunpack.c.l.b16 %v887
    %v961 = vunpack.c.l.b16 %v888
    %v962 = vunpack.c.l.b16 %v889
    %v963 = vunpack.c.l.b16 %v890
    %v964 = vunpack.c.l.b16 %v891
    %v965 = vunpack.c.l.b16 %v892
    %v966 = vunpack.c.l.b16 %v893
    %v967 = vunpack.c.l.b16 %v894
    %v968 = vunpack.c.l.b16 %v895
    %v969 = vunpack.c.l.b16 %v896
    %v970 = vunpack.c.l.b16 %v897
    %v971 = vunpack.c.l.b16 %v898
    %v972 = vunpack.c.l.b16 %v899
    %v973 = vunpack.c.l.b16 %v900
    %v974 = vunpack.c.l.b16 %v901
    %v975 = vunpack.c.l.b16 %v902
    %v976 = vunpack.c.l.b16 %v903
    %v977 = vunpack.c.l.b16 %v904
    %v978 = vunpack.c.l.b16 %v905
    %v979 = vunpack.c.l.b16 %v906
    %v980 = vunpack.c.l.b16 %v907
    %v981 = vpack.c.b16 %v950, %v949
    %v982 = vpack.c.b16 %v952, %v951
    %v983 = vpack.c.b16 %v954, %v953
    %v984 = vpack.c.b16 %v956, %v955
    %v985 = vpack.c.b16 %v958, %v957
    %v986 = vpack.c.b16 %v960, %v959
    %v987 = vpack.c.b16 %v962, %v961
    %v988 = vpack.c.b16 %v964, %v963
    %v989 = vpack.c.b16 %v966, %v965
    %v990 = vpack.c.b16 %v968, %v967
    %v991 = vpack.c.b16 %v970, %v969
    %v992 = vpack.c.b16 %v972, %v971
    %v993 = vpack.c.b16 %v974, %v973
    %v994 = vpack.c.b16 %v976, %v975
    %v995 = vpack.c.b16 %v978, %v977
    %v996 = vpack.c.b16 %v980, %v979
    %1013 = vmatprep.subr.bf16.mxu0 0
    %1014 = vmatpush1.bf16.msra.mxu0 %v981
    %1015 = vmatprep.subr.bf16.mxu0 0
    %1016 = vmatpush1.bf16.msra.mxu0 %v982
    %1017 = vmatprep.subr.bf16.mxu0 0
    %1018 = vmatpush1.bf16.msra.mxu0 %v983
    %1019 = vmatprep.subr.bf16.mxu0 0
    %1020 = vmatpush1.bf16.msra.mxu0 %v984
    %1021 = vmatprep.subr.bf16.mxu0 0
    %1022 = vmatpush1.bf16.msra.mxu0 %v985
    %1023 = vmatprep.subr.bf16.mxu0 0
    %1024 = vmatpush1.bf16.msra.mxu0 %v986
    %1025 = vmatprep.subr.bf16.mxu0 0
    %1026 = vmatpush1.bf16.msra.mxu0 %v987
    %1027 = vmatprep.subr.bf16.mxu0 0
    %1028 = vmatpush1.bf16.msra.mxu0 %v988
    %1029 = vmatprep.subr.bf16.mxu0 0
    %1030 = vmatpush1.bf16.msra.mxu0 %v989
    %1031 = vmatprep.subr.bf16.mxu0 0
    %1032 = vmatpush1.bf16.msra.mxu0 %v990
    %1033 = vmatprep.subr.bf16.mxu0 0
    %1034 = vmatpush1.bf16.msra.mxu0 %v991
    %1035 = vmatprep.subr.bf16.mxu0 0
    %1036 = vmatpush1.bf16.msra.mxu0 %v992
    %1037 = vmatprep.subr.bf16.mxu0 0
    %1038 = vmatpush1.bf16.msra.mxu0 %v993
    %1039 = vmatprep.subr.bf16.mxu0 0
    %1040 = vmatpush1.bf16.msra.mxu0 %v994
    %1041 = vmatprep.subr.bf16.mxu0 0
    %1042 = vmatpush1.bf16.msra.mxu0 %v995
    %1043 = vmatprep.subr.bf16.mxu0 0
    %1044 = vmatpush1.bf16.msra.mxu0 %v996
    %1045 = vmatprep.mubr.bf16.mxu0 %v909
    %1046 = vmatmul.mubr.bf16.gmra.mrb[0].mxu0 %v908
    %v1047 = vpop.f32.mrb[0].mxu0
    %v1048 = vadd.f32 %v915, %v1047
    %v1049 = vpop.f32.mrb[0].mxu0
    %v1050 = vpop.f32.mrb[0].mxu0
    %v1051 = vadd.f32 %v915, %v1050
    %v1052 = vpop.f32.mrb[0].mxu0
    %1053 = vdwg.mxu0
    %v1054 = vadd.f32 %v191, %v1048
    %v1055 = vadd.f32 %v192, %v1051
    %v1056 = vld [vmem:[%s8] sm:$0x1]
    %v1057 = vld [vmem:[%s9] sm:$0x1]
    %1058 = vadd.xlane.f32.xlu0 %v1054
    %v1059 = vpop.xlane.xlu0 %1058
    %1060 = vadd.xlane.f32.xlu0 %v1055
    %v1061 = vpop.xlane.xlu0 %1060
    %v1062 = vmul.f32 %v1059, 0.03125
    %v1063 = vmul.f32 %v1061, 0.03125
    %v1064 = vmul.f32 %v1054, %v1054
    %v1065 = vmul.f32 %v1055, %v1055
    %1066 = vadd.xlane.f32.xlu0 %v1064
    %v1067 = vpop.xlane.xlu0 %1066
    %1068 = vadd.xlane.f32.xlu0 %v1065
    %v1069 = vpop.xlane.xlu0 %1068
    %v1070 = vmul.f32 %v1067, 0.03125
    %v1071 = vmul.f32 %v1069, 0.03125
    %v1072 = vmul.f32 %v1062, %v1062
    %v1073 = vmul.f32 %v1063, %v1063
    %v1074 = vsub.f32 %v1070, %v1072
    %v1075 = vsub.f32 %v1071, %v1073
    %v1076 = vsub.f32 %v1054, %v1062
    %v1077 = vsub.f32 %v1055, %v1063
    %v1078 = vadd.f32 %v1074, 1e-12
    %v1079 = vadd.f32 %v1075, 1e-12
    %v1080 = vrsqrt.pop %v1078
    %v1081 = vrsqrt.pop %v1079
    %v1082 = vmul.f32 %v1076, %v1080
    %v1083 = vmul.f32 %v1077, %v1081
    %v1085 = vlaneseq
    %v1086 = vshrl.u32 %v1085, 7
    %v1087 = vsub.s32 0, %v1086
    %v1088 = vrot.slane %v1056, %v1087
    %v1090 = vmul.f32 %v1082, %v1088
    %v1091 = vmul.f32 %v1083, %v1088
    %v1093 = vlaneseq
    %v1094 = vshrl.u32 %v1093, 7
    %v1095 = vsub.s32 0, %v1094
    %v1096 = vrot.slane %v1057, %v1095
    %v1098 = vadd.f32 %v1090, %v1096
    %v1099 = vadd.f32 %v1091, %v1096
    %v1100 = vld [vmem:[%s10] sm:$0xf]
    %v1101 = vld [vmem:[%s10 + $0x4] sm:$0xf]
    %v1102 = vld [vmem:[%s10 + $0x8] sm:$0xf]
    %v1103 = vld [vmem:[%s10 + $0xc] sm:$0xf]
    %v1104 = vld [vmem:[%s10 + $0x10] sm:$0xf]
    %v1105 = vld [vmem:[%s10 + $0x14] sm:$0xf]
    %v1106 = vld [vmem:[%s10 + $0x18] sm:$0xf]
    %v1107 = vld [vmem:[%s10 + $0x1c] sm:$0xf]
    %v1108 = vld [vmem:[%s10 + $0x20] sm:$0xf]
    %v1109 = vld [vmem:[%s10 + $0x24] sm:$0xf]
    %v1110 = vld [vmem:[%s10 + $0x28] sm:$0xf]
    %v1111 = vld [vmem:[%s10 + $0x2c] sm:$0xf]
    %v1112 = vld [vmem:[%s10 + $0x30] sm:$0xf]
    %v1113 = vld [vmem:[%s10 + $0x34] sm:$0xf]
    %v1114 = vld [vmem:[%s10 + $0x38] sm:$0xf]
    %v1115 = vld [vmem:[%s10 + $0x3c] sm:$0xf]
    %v1116 = vpack.c.bf16 %v1099, %v1098
    %v1117 = vld [vmem:[%s11] sm:$0x1]
    %v1119 = vlaneseq
    %v1120 = vshrl.u32 %v1119, 7
    %v1121 = vsub.s32 0, %v1120
    %v1122 = vrot.slane %v1117, %v1121
    %v1140 = vunpack.c.l.b16 %v1100
    %v1141 = vunpack.c.l.b16 %v1101
    %v1142 = vunpack.c.l.b16 %v1102
    %v1143 = vunpack.c.l.b16 %v1103
    %v1144 = vunpack.c.l.b16 %v1104
    %v1145 = vunpack.c.l.b16 %v1105
    %v1146 = vunpack.c.l.b16 %v1106
    %v1147 = vunpack.c.l.b16 %v1107
    %v1148 = vunpack.c.l.b16 %v1108
    %v1149 = vunpack.c.l.b16 %v1109
    %v1150 = vunpack.c.l.b16 %v1110
    %v1151 = vunpack.c.l.b16 %v1111
    %v1152 = vunpack.c.l.b16 %v1112
    %v1153 = vunpack.c.l.b16 %v1113
    %v1154 = vunpack.c.l.b16 %v1114
    %v1155 = vunpack.c.l.b16 %v1115
    %v1156 = vpack.c.b16 %v1141, %v1140
    %v1157 = vpack.c.b16 %v1143, %v1142
    %v1158 = vpack.c.b16 %v1145, %v1144
    %v1159 = vpack.c.b16 %v1147, %v1146
    %v1160 = vpack.c.b16 %v1149, %v1148
    %v1161 = vpack.c.b16 %v1151, %v1150
    %v1162 = vpack.c.b16 %v1153, %v1152
    %v1163 = vpack.c.b16 %v1155, %v1154
    %1172 = vmatprep.subr.bf16.mxu0 0
    %1173 = vmatpush1.bf16.msra.mxu0 %v1156
    %1174 = vmatprep.subr.bf16.mxu0 0
    %1175 = vmatpush1.bf16.msra.mxu0 %v1157
    %1176 = vmatprep.subr.bf16.mxu0 0
    %1177 = vmatpush1.bf16.msra.mxu0 %v1158
    %1178 = vmatprep.subr.bf16.mxu0 0
    %1179 = vmatpush1.bf16.msra.mxu0 %v1159
    %1180 = vmatprep.subr.bf16.mxu0 0
    %1181 = vmatpush1.bf16.msra.mxu0 %v1160
    %1182 = vmatprep.subr.bf16.mxu0 0
    %1183 = vmatpush1.bf16.msra.mxu0 %v1161
    %1184 = vmatprep.subr.bf16.mxu0 0
    %1185 = vmatpush1.bf16.msra.mxu0 %v1162
    %1186 = vmatprep.subr.bf16.mxu0 0
    %1187 = vmatpush1.bf16.msra.mxu0 %v1163
    %1188 = vmatprep.subr.bf16.mxu0 0
    %1189 = vmatpush1.bf16.msra.mxu0 0
    %1190 = vmatprep.subr.bf16.mxu0 0
    %1191 = vmatpush1.bf16.msra.mxu0 0
    %1192 = vmatprep.subr.bf16.mxu0 0
    %1193 = vmatpush1.bf16.msra.mxu0 0
    %1194 = vmatprep.subr.bf16.mxu0 0
    %1195 = vmatpush1.bf16.msra.mxu0 0
    %1196 = vmatprep.subr.bf16.mxu0 0
    %1197 = vmatpush1.bf16.msra.mxu0 0
    %1198 = vmatprep.subr.bf16.mxu0 0
    %1199 = vmatpush1.bf16.msra.mxu0 0
    %1200 = vmatprep.subr.bf16.mxu0 0
    %1201 = vmatpush1.bf16.msra.mxu0 0
    %1202 = vmatprep.subr.bf16.mxu0 0
    %1203 = vmatpush1.bf16.msra.mxu0 0
    %1204 = vmatprep.mubr.bf16.mxu0 0
    %1205 = vmatmul.mubr.bf16.gmra.mrb[0].mxu0 %v1116
    %v1206 = vpop.f32.mrb[0].mxu0
    %v1207 = vadd.f32 %v1122, %v1206
    %v1208 = vpop.f32.mrb[0].mxu0
    %v1209 = vpop.f32.mrb[0].mxu0
    %v1210 = vadd.f32 %v1122, %v1209
    %v1211 = vpop.f32.mrb[0].mxu0
    %1212 = vdwg.mxu0
    %v1213 = vmul.f32 %v1207, %v1207
    %v1214 = vmul.f32 %v1210, %v1210
    %v1215 = vmul.f32 %v1207, %v1213
    %v1216 = vmul.f32 %v1210, %v1214
    %v1217 = vmul.f32 %v1215, 0.044715
    %v1218 = vmul.f32 %v1216, 0.044715
    %v1219 = vadd.f32 %v1207, %v1217
    %v1220 = vadd.f32 %v1210, %v1218
    %v1221 = vmul.f32 %v1219, 0.7978846
    %v1222 = vmul.f32 %v1220, 0.7978846
    %v1223 = vtanh.pop %v1221
    %v1224 = vtanh.pop %v1222
    %v1225 = vadd.f32 %v1223, 1.0
    %v1226 = vadd.f32 %v1224, 1.0
    %v1227 = vmul.f32 %v1225, 0.5
    %v1228 = vmul.f32 %v1226, 0.5
    %v1229 = vmul.f32 %v1207, %v1227
    %v1230 = vmul.f32 %v1210, %v1228
    %v1231 = vld [vmem:[#allocation5] sm:$0xf]
    %v1232 = vld [vmem:[#allocation5 + $0x4] sm:$0xf]
    %v1233 = vld [vmem:[#allocation5 + $0x8] sm:$0xf]
    %v1234 = vld [vmem:[#allocation5 + $0xc] sm:$0xf]
    %v1235 = vld [vmem:[#allocation5 + $0x10] sm:$0xf]
    %v1236 = vld [vmem:[#allocation5 + $0x14] sm:$0xf]
    %v1237 = vld [vmem:[#allocation5 + $0x18] sm:$0xf]
    %v1238 = vld [vmem:[#allocation5 + $0x1c] sm:$0xf]
    %v1239 = vld [vmem:[#allocation5 + $0x20] sm:$0xf]
    %v1240 = vld [vmem:[#allocation5 + $0x24] sm:$0xf]
    %v1241 = vld [vmem:[#allocation5 + $0x28] sm:$0xf]
    %v1242 = vld [vmem:[#allocation5 + $0x2c] sm:$0xf]
    %v1243 = vld [vmem:[#allocation5 + $0x30] sm:$0xf]
    %v1244 = vld [vmem:[#allocation5 + $0x34] sm:$0xf]
    %v1245 = vld [vmem:[#allocation5 + $0x38] sm:$0xf]
    %v1246 = vld [vmem:[#allocation5 + $0x3c] sm:$0xf]
    %v1247 = vpack.c.bf16 %v1230, %v1229
    %v1248 = vld [vmem:[%s13] sm:$0x1]
    %v1250 = vlaneseq
    %v1251 = vshrl.u32 %v1250, 7
    %v1252 = vsub.s32 0, %v1251
    %v1253 = vrot.slane %v1248, %v1252
    %v1271 = vunpack.c.l.b16 %v1231
    %v1272 = vunpack.c.l.b16 %v1232
    %v1273 = vunpack.c.l.b16 %v1233
    %v1274 = vunpack.c.l.b16 %v1234
    %v1275 = vunpack.c.l.b16 %v1235
    %v1276 = vunpack.c.l.b16 %v1236
    %v1277 = vunpack.c.l.b16 %v1237
    %v1278 = vunpack.c.l.b16 %v1238
    %v1279 = vunpack.c.l.b16 %v1239
    %v1280 = vunpack.c.l.b16 %v1240
    %v1281 = vunpack.c.l.b16 %v1241
    %v1282 = vunpack.c.l.b16 %v1242
    %v1283 = vunpack.c.l.b16 %v1243
    %v1284 = vunpack.c.l.b16 %v1244
    %v1285 = vunpack.c.l.b16 %v1245
    %v1286 = vunpack.c.l.b16 %v1246
    %v1287 = vpack.c.b16 %v1272, %v1271
    %v1288 = vpack.c.b16 %v1274, %v1273
    %v1289 = vpack.c.b16 %v1276, %v1275
    %v1290 = vpack.c.b16 %v1278, %v1277
    %v1291 = vpack.c.b16 %v1280, %v1279
    %v1292 = vpack.c.b16 %v1282, %v1281
    %v1293 = vpack.c.b16 %v1284, %v1283
    %v1294 = vpack.c.b16 %v1286, %v1285
    %1303 = vmatprep.subr.bf16.mxu0 0
    %1304 = vmatpush1.bf16.msra.mxu0 %v1287
    %1305 = vmatprep.subr.bf16.mxu0 0
    %1306 = vmatpush1.bf16.msra.mxu0 %v1288
    %1307 = vmatprep.subr.bf16.mxu0 0
    %1308 = vmatpush1.bf16.msra.mxu0 %v1289
    %1309 = vmatprep.subr.bf16.mxu0 0
    %1310 = vmatpush1.bf16.msra.mxu0 %v1290
    %1311 = vmatprep.subr.bf16.mxu0 0
    %1312 = vmatpush1.bf16.msra.mxu0 %v1291
    %1313 = vmatprep.subr.bf16.mxu0 0
    %1314 = vmatpush1.bf16.msra.mxu0 %v1292
    %1315 = vmatprep.subr.bf16.mxu0 0
    %1316 = vmatpush1.bf16.msra.mxu0 %v1293
    %1317 = vmatprep.subr.bf16.mxu0 0
    %1318 = vmatpush1.bf16.msra.mxu0 %v1294
    %1319 = vmatprep.subr.bf16.mxu0 0
    %1320 = vmatpush1.bf16.msra.mxu0 0
    %1321 = vmatprep.subr.bf16.mxu0 0
    %1322 = vmatpush1.bf16.msra.mxu0 0
    %1323 = vmatprep.subr.bf16.mxu0 0
    %1324 = vmatpush1.bf16.msra.mxu0 0
    %1325 = vmatprep.subr.bf16.mxu0 0
    %1326 = vmatpush1.bf16.msra.mxu0 0
    %1327 = vmatprep.subr.bf16.mxu0 0
    %1328 = vmatpush1.bf16.msra.mxu0 0
    %1329 = vmatprep.subr.bf16.mxu0 0
    %1330 = vmatpush1.bf16.msra.mxu0 0
    %1331 = vmatprep.subr.bf16.mxu0 0
    %1332 = vmatpush1.bf16.msra.mxu0 0
    %1333 = vmatprep.subr.bf16.mxu0 0
    %1334 = vmatpush1.bf16.msra.mxu0 0
    %1335 = vmatprep.mubr.bf16.mxu0 0
    %1336 = vmatmul.mubr.bf16.gmra.mrb[0].mxu0 %v1247
    %v1337 = vpop.f32.mrb[0].mxu0
    %v1338 = vadd.f32 %v1253, %v1337
    %v1339 = vpop.f32.mrb[0].mxu0
    %v1340 = vpop.f32.mrb[0].mxu0
    %v1341 = vadd.f32 %v1253, %v1340
    %v1342 = vpop.f32.mrb[0].mxu0
    %1343 = vdwg.mxu0
    %v1344 = vadd.f32 %v1098, %v1338
    %v1345 = vadd.f32 %v1099, %v1341
    %v1346 = vld [vmem:[#allocation7] sm:$0x1]
    %v1347 = vld [vmem:[#allocation8] sm:$0x1]
    %1348 = vadd.xlane.f32.xlu0 %v1344
    %v1349 = vpop.xlane.xlu0 %1348
    %1350 = vadd.xlane.f32.xlu0 %v1345
    %v1351 = vpop.xlane.xlu0 %1350
    %v1352 = vmul.f32 %v1349, 0.03125
    %v1353 = vmul.f32 %v1351, 0.03125
    %v1354 = vmul.f32 %v1344, %v1344
    %v1355 = vmul.f32 %v1345, %v1345
    %1356 = vadd.xlane.f32.xlu0 %v1354
    %v1357 = vpop.xlane.xlu0 %1356
    %1358 = vadd.xlane.f32.xlu0 %v1355
    %v1359 = vpop.xlane.xlu0 %1358
    %v1360 = vmul.f32 %v1357, 0.03125
    %v1361 = vmul.f32 %v1359, 0.03125
    %v1362 = vmul.f32 %v1352, %v1352
    %v1363 = vmul.f32 %v1353, %v1353
    %v1364 = vsub.f32 %v1360, %v1362
    %v1365 = vsub.f32 %v1361, %v1363
    %v1366 = vsub.f32 %v1344, %v1352
    %v1367 = vsub.f32 %v1345, %v1353
    %v1368 = vadd.f32 %v1364, 1e-12
    %v1369 = vadd.f32 %v1365, 1e-12
    %v1370 = vrsqrt.pop %v1368
    %v1371 = vrsqrt.pop %v1369
    %v1372 = vmul.f32 %v1366, %v1370
    %v1373 = vmul.f32 %v1367, %v1371
    %v1375 = vlaneseq
    %v1376 = vshrl.u32 %v1375, 7
    %v1377 = vsub.s32 0, %v1376
    %v1378 = vrot.slane %v1346, %v1377
    %v1380 = vmul.f32 %v1372, %v1378
    %v1381 = vmul.f32 %v1373, %v1378
    %v1383 = vlaneseq
    %v1384 = vshrl.u32 %v1383, 7
    %v1385 = vsub.s32 0, %v1384
    %v1386 = vrot.slane %v1347, %v1385
    %v1388 = vadd.f32 %v1380, %v1386
    %v1389 = vadd.f32 %v1381, %v1386
    %s1390 = scalar_lea.vmem [#allocation2], 384
    %v1391 = vld [vmem:[%s1390] sm:$0xff]
    %v1392 = vld [vmem:[%s1390 + $0x8] sm:$0xff]
    %v1393 = vld [vmem:[%s1390 + $0x10] sm:$0xff]
    %v1394 = vld [vmem:[%s1390 + $0x18] sm:$0xff]
    %v1395 = vld [vmem:[%s1390 + $0x20] sm:$0xff]
    %v1396 = vld [vmem:[%s1390 + $0x28] sm:$0xff]
    %v1397 = vld [vmem:[%s1390 + $0x30] sm:$0xff]
    %v1398 = vld [vmem:[%s1390 + $0x38] sm:$0xff]
    %v1399 = vld [vmem:[%s1390 + $0x40] sm:$0xff]
    %v1400 = vld [vmem:[%s1390 + $0x48] sm:$0xff]
    %v1401 = vld [vmem:[%s1390 + $0x50] sm:$0xff]
    %v1402 = vld [vmem:[%s1390 + $0x58] sm:$0xff]
    %v1403 = vld [vmem:[%s1390 + $0x60] sm:$0xff]
    %v1404 = vld [vmem:[%s1390 + $0x68] sm:$0xff]
    %v1405 = vld [vmem:[%s1390 + $0x70] sm:$0xff]
    %v1406 = vld [vmem:[%s1390 + $0x78] sm:$0xff]
    %v1407 = vld [vmem:[%s1390 + $0x80] sm:$0xff]
    %v1408 = vld [vmem:[%s1390 + $0x88] sm:$0xff]
    %v1409 = vld [vmem:[%s1390 + $0x90] sm:$0xff]
    %v1410 = vld [vmem:[%s1390 + $0x98] sm:$0xff]
    %v1411 = vld [vmem:[%s1390 + $0xa0] sm:$0xff]
    %v1412 = vld [vmem:[%s1390 + $0xa8] sm:$0xff]
    %v1413 = vld [vmem:[%s1390 + $0xb0] sm:$0xff]
    %v1414 = vld [vmem:[%s1390 + $0xb8] sm:$0xff]
    %v1415 = vld [vmem:[%s1390 + $0xc0] sm:$0xff]
    %v1416 = vld [vmem:[%s1390 + $0xc8] sm:$0xff]
    %v1417 = vld [vmem:[%s1390 + $0xd0] sm:$0xff]
    %v1418 = vld [vmem:[%s1390 + $0xd8] sm:$0xff]
    %v1419 = vld [vmem:[%s1390 + $0xe0] sm:$0xff]
    %v1420 = vld [vmem:[%s1390 + $0xe8] sm:$0xff]
    %v1421 = vld [vmem:[%s1390 + $0xf0] sm:$0xff]
    %v1422 = vld [vmem:[%s1390 + $0xf8] sm:$0xff]
    %v1423 = vld [vmem:[%s1390 + $0x100] sm:$0xff]
    %v1424 = vld [vmem:[%s1390 + $0x108] sm:$0xff]
    %v1425 = vld [vmem:[%s1390 + $0x110] sm:$0xff]
    %v1426 = vld [vmem:[%s1390 + $0x118] sm:$0xff]
    %v1427 = vld [vmem:[%s1390 + $0x120] sm:$0xff]
    %v1428 = vld [vmem:[%s1390 + $0x128] sm:$0xff]
    %v1429 = vld [vmem:[%s1390 + $0x130] sm:$0xff]
    %v1430 = vld [vmem:[%s1390 + $0x138] sm:$0xff]
    %v1431 = vld [vmem:[%s1390 + $0x140] sm:$0xff]
    %v1432 = vld [vmem:[%s1390 + $0x148] sm:$0xff]
    %v1433 = vld [vmem:[%s1390 + $0x150] sm:$0xff]
    %v1434 = vld [vmem:[%s1390 + $0x158] sm:$0xff]
    %v1435 = vld [vmem:[%s1390 + $0x160] sm:$0xff]
    %v1436 = vld [vmem:[%s1390 + $0x168] sm:$0xff]
    %v1437 = vld [vmem:[%s1390 + $0x170] sm:$0xff]
    %v1438 = vld [vmem:[%s1390 + $0x178] sm:$0xff]
    %v1439 = vpack.c.bf16 %v1389, %v1388
    %s1440 = scalar_lea.vmem %s5, 6
    %v1441 = vld [vmem:[%s1440] sm:$0x3f]
    %v1443 = vlaneseq
    %v1444 = vshrl.u32 %v1443, 7
    %v1445 = vsub.s32 0, %v1444
    %v1446 = vrot.slane %v1441, %v1445
    %v1447 = vlaneseq
    %v1448 = vshrl.u32 %v1447, 7
    %v1449 = vsub.s32 1, %v1448
    %v1450 = vrot.slane %v1441, %v1449
    %v1451 = vlaneseq
    %v1452 = vshrl.u32 %v1451, 7
    %v1453 = vsub.s32 2, %v1452
    %v1454 = vrot.slane %v1441, %v1453
    %v1455 = vlaneseq
    %v1456 = vshrl.u32 %v1455, 7
    %v1457 = vsub.s32 3, %v1456
    %v1458 = vrot.slane %v1441, %v1457
    %v1459 = vlaneseq
    %v1460 = vshrl.u32 %v1459, 7
    %v1461 = vsub.s32 4, %v1460
    %v1462 = vrot.slane %v1441, %v1461
    %v1463 = vlaneseq
    %v1464 = vshrl.u32 %v1463, 7
    %v1465 = vsub.s32 5, %v1464
    %v1466 = vrot.slane %v1441, %v1465
    %v1521 = vunpack.c.l.b16 %v1391
    %v1522 = vunpack.c.h.b16 %v1391
    %v1523 = vunpack.c.l.b16 %v1392
    %v1524 = vunpack.c.h.b16 %v1392
    %v1525 = vunpack.c.l.b16 %v1393
    %v1526 = vunpack.c.h.b16 %v1393
    %v1527 = vunpack.c.l.b16 %v1394
    %v1528 = vunpack.c.h.b16 %v1394
    %v1529 = vunpack.c.l.b16 %v1395
    %v1530 = vunpack.c.h.b16 %v1395
    %v1531 = vunpack.c.l.b16 %v1396
    %v1532 = vunpack.c.h.b16 %v1396
    %v1533 = vunpack.c.l.b16 %v1397
    %v1534 = vunpack.c.h.b16 %v1397
    %v1535 = vunpack.c.l.b16 %v1398
    %v1536 = vunpack.c.h.b16 %v1398
    %v1537 = vunpack.c.l.b16 %v1399
    %v1538 = vunpack.c.h.b16 %v1399
    %v1539 = vunpack.c.l.b16 %v1400
    %v1540 = vunpack.c.h.b16 %v1400
    %v1541 = vunpack.c.l.b16 %v1401
    %v1542 = vunpack.c.h.b16 %v1401
    %v1543 = vunpack.c.l.b16 %v1402
    %v1544 = vunpack.c.h.b16 %v1402
    %v1545 = vunpack.c.l.b16 %v1403
    %v1546 = vunpack.c.h.b16 %v1403
    %v1547 = vunpack.c.l.b16 %v1404
    %v1548 = vunpack.c.h.b16 %v1404
    %v1549 = vunpack.c.l.b16 %v1405
    %v1550 = vunpack.c.h.b16 %v1405
    %v1551 = vunpack.c.l.b16 %v1406
    %v1552 = vunpack.c.h.b16 %v1406
    %v1553 = vunpack.c.l.b16 %v1407
    %v1554 = vunpack.c.h.b16 %v1407
    %v1555 = vunpack.c.l.b16 %v1408
    %v1556 = vunpack.c.h.b16 %v1408
    %v1557 = vunpack.c.l.b16 %v1409
    %v1558 = vunpack.c.h.b16 %v1409
    %v1559 = vunpack.c.l.b16 %v1410
    %v1560 = vunpack.c.h.b16 %v1410
    %v1561 = vunpack.c.l.b16 %v1411
    %v1562 = vunpack.c.h.b16 %v1411
    %v1563 = vunpack.c.l.b16 %v1412
    %v1564 = vunpack.c.h.b16 %v1412
    %v1565 = vunpack.c.l.b16 %v1413
    %v1566 = vunpack.c.h.b16 %v1413
    %v1567 = vunpack.c.l.b16 %v1414
    %v1568 = vunpack.c.h.b16 %v1414
    %v1569 = vunpack.c.l.b16 %v1415
    %v1570 = vunpack.c.h.b16 %v1415
    %v1571 = vunpack.c.l.b16 %v1416
    %v1572 = vunpack.c.h.b16 %v1416
    %v1573 = vunpack.c.l.b16 %v1417
    %v1574 = vunpack.c.h.b16 %v1417
    %v1575 = vunpack.c.l.b16 %v1418
    %v1576 = vunpack.c.h.b16 %v1418
    %v1577 = vunpack.c.l.b16 %v1419
    %v1578 = vunpack.c.h.b16 %v1419
    %v1579 = vunpack.c.l.b16 %v1420
    %v1580 = vunpack.c.h.b16 %v1420
    %v1581 = vunpack.c.l.b16 %v1421
    %v1582 = vunpack.c.h.b16 %v1421
    %v1583 = vunpack.c.l.b16 %v1422
    %v1584 = vunpack.c.h.b16 %v1422
    %v1585 = vunpack.c.l.b16 %v1423
    %v1586 = vunpack.c.h.b16 %v1423
    %v1587 = vunpack.c.l.b16 %v1424
    %v1588 = vunpack.c.h.b16 %v1424
    %v1589 = vunpack.c.l.b16 %v1425
    %v1590 = vunpack.c.h.b16 %v1425
    %v1591 = vunpack.c.l.b16 %v1426
    %v1592 = vunpack.c.h.b16 %v1426
    %v1593 = vunpack.c.l.b16 %v1427
    %v1594 = vunpack.c.h.b16 %v1427
    %v1595 = vunpack.c.l.b16 %v1428
    %v1596 = vunpack.c.h.b16 %v1428
    %v1597 = vunpack.c.l.b16 %v1429
    %v1598 = vunpack.c.h.b16 %v1429
    %v1599 = vunpack.c.l.b16 %v1430
    %v1600 = vunpack.c.h.b16 %v1430
    %v1601 = vunpack.c.l.b16 %v1431
    %v1602 = vunpack.c.h.b16 %v1431
    %v1603 = vunpack.c.l.b16 %v1432
    %v1604 = vunpack.c.h.b16 %v1432
    %v1605 = vunpack.c.l.b16 %v1433
    %v1606 = vunpack.c.h.b16 %v1433
    %v1607 = vunpack.c.l.b16 %v1434
    %v1608 = vunpack.c.h.b16 %v1434
    %v1609 = vunpack.c.l.b16 %v1435
    %v1610 = vunpack.c.h.b16 %v1435
    %v1611 = vunpack.c.l.b16 %v1436
    %v1612 = vunpack.c.h.b16 %v1436
    %v1613 = vunpack.c.l.b16 %v1437
    %v1614 = vunpack.c.h.b16 %v1437
    %v1615 = vunpack.c.l.b16 %v1438
    %v1616 = vunpack.c.h.b16 %v1438
    %v1617 = vpack.c.b16 %v1527, %v1521
    %v1618 = vpack.c.b16 %v1528, %v1522
    %v1619 = vpack.c.b16 %v1529, %v1523
    %v1620 = vpack.c.b16 %v1530, %v1524
    %v1621 = vpack.c.b16 %v1531, %v1525
    %v1622 = vpack.c.b16 %v1532, %v1526
    %v1623 = vpack.c.b16 %v1539, %v1533
    %v1624 = vpack.c.b16 %v1540, %v1534
    %v1625 = vpack.c.b16 %v1541, %v1535
    %v1626 = vpack.c.b16 %v1542, %v1536
    %v1627 = vpack.c.b16 %v1543, %v1537
    %v1628 = vpack.c.b16 %v1544, %v1538
    %v1629 = vpack.c.b16 %v1551, %v1545
    %v1630 = vpack.c.b16 %v1552, %v1546
    %v1631 = vpack.c.b16 %v1553, %v1547
    %v1632 = vpack.c.b16 %v1554, %v1548
    %v1633 = vpack.c.b16 %v1555, %v1549
    %v1634 = vpack.c.b16 %v1556, %v1550
    %v1635 = vpack.c.b16 %v1563, %v1557
    %v1636 = vpack.c.b16 %v1564, %v1558
    %v1637 = vpack.c.b16 %v1565, %v1559
    %v1638 = vpack.c.b16 %v1566, %v1560
    %v1639 = vpack.c.b16 %v1567, %v1561
    %v1640 = vpack.c.b16 %v1568, %v1562
    %v1641 = vpack.c.b16 %v1575, %v1569
    %v1642 = vpack.c.b16 %v1576, %v1570
    %v1643 = vpack.c.b16 %v1577, %v1571
    %v1644 = vpack.c.b16 %v1578, %v1572
    %v1645 = vpack.c.b16 %v1579, %v1573
    %v1646 = vpack.c.b16 %v1580, %v1574
    %v1647 = vpack.c.b16 %v1587, %v1581
    %v1648 = vpack.c.b16 %v1588, %v1582
    %v1649 = vpack.c.b16 %v1589, %v1583
    %v1650 = vpack.c.b16 %v1590, %v1584
    %v1651 = vpack.c.b16 %v1591, %v1585
    %v1652 = vpack.c.b16 %v1592, %v1586
    %v1653 = vpack.c.b16 %v1599, %v1593
    %v1654 = vpack.c.b16 %v1600, %v1594
    %v1655 = vpack.c.b16 %v1601, %v1595
    %v1656 = vpack.c.b16 %v1602, %v1596
    %v1657 = vpack.c.b16 %v1603, %v1597
    %v1658 = vpack.c.b16 %v1604, %v1598
    %v1659 = vpack.c.b16 %v1611, %v1605
    %v1660 = vpack.c.b16 %v1612, %v1606
    %v1661 = vpack.c.b16 %v1613, %v1607
    %v1662 = vpack.c.b16 %v1614, %v1608
    %v1663 = vpack.c.b16 %v1615, %v1609
    %v1664 = vpack.c.b16 %v1616, %v1610
    %1713 = vmatprep.subr.bf16.mxu0 %v1618
    %1714 = vmatpush1.bf16.msra.mxu0 %v1617
    %1715 = vmatprep.subr.bf16.mxu0 %v1624
    %1716 = vmatpush1.bf16.msra.mxu0 %v1623
    %1717 = vmatprep.subr.bf16.mxu0 %v1630
    %1718 = vmatpush1.bf16.msra.mxu0 %v1629
    %1719 = vmatprep.subr.bf16.mxu0 %v1636
    %1720 = vmatpush1.bf16.msra.mxu0 %v1635
    %1721 = vmatprep.subr.bf16.mxu0 %v1642
    %1722 = vmatpush1.bf16.msra.mxu0 %v1641
    %1723 = vmatprep.subr.bf16.mxu0 %v1648
    %1724 = vmatpush1.bf16.msra.mxu0 %v1647
    %1725 = vmatprep.subr.bf16.mxu0 %v1654
    %1726 = vmatpush1.bf16.msra.mxu0 %v1653
    %1727 = vmatprep.subr.bf16.mxu0 %v1660
    %1728 = vmatpush1.bf16.msra.mxu0 %v1659
    %1729 = vmatprep.subr.bf16.mxu0 0
    %1730 = vmatpush1.bf16.msra.mxu0 0
    %1731 = vmatprep.subr.bf16.mxu0 0
    %1732 = vmatpush1.bf16.msra.mxu0 0
    %1733 = vmatprep.subr.bf16.mxu0 0
    %1734 = vmatpush1.bf16.msra.mxu0 0
    %1735 = vmatprep.subr.bf16.mxu0 0
    %1736 = vmatpush1.bf16.msra.mxu0 0
    %1737 = vmatprep.subr.bf16.mxu0 0
    %1738 = vmatpush1.bf16.msra.mxu0 0
    %1739 = vmatprep.subr.bf16.mxu0 0
    %1740 = vmatpush1.bf16.msra.mxu0 0
    %1741 = vmatprep.subr.bf16.mxu0 0
    %1742 = vmatpush1.bf16.msra.mxu0 0
    %1743 = vmatprep.subr.bf16.mxu0 0
    %1744 = vmatpush1.bf16.msra.mxu0 0
    %1745 = vmatprep.mubr.bf16.mxu0 0
    %1746 = vmatmul.mubr.bf16.gmra.mrb[0].mxu0 %v1439
    %v1747 = vpop.f32.mrb[0].mxu0
    %v1748 = vadd.f32 %v1446, %v1747
    %v1749 = vpop.f32.mrb[0].mxu0
    %v1750 = vadd.f32 %v1450, %v1749
    %v1751 = vpop.f32.mrb[0].mxu0
    %v1752 = vadd.f32 %v1446, %v1751
    %v1753 = vpop.f32.mrb[0].mxu0
    %v1754 = vadd.f32 %v1450, %v1753
    %1755 = vdwg.mxu0
    %1756 = vmatprep.subr.bf16.mxu0 %v1620
    %1757 = vmatpush1.bf16.msra.mxu0 %v1619
    %1758 = vmatprep.subr.bf16.mxu0 %v1626
    %1759 = vmatpush1.bf16.msra.mxu0 %v1625
    %1760 = vmatprep.subr.bf16.mxu0 %v1632
    %1761 = vmatpush1.bf16.msra.mxu0 %v1631
    %1762 = vmatprep.subr.bf16.mxu0 %v1638
    %1763 = vmatpush1.bf16.msra.mxu0 %v1637
    %1764 = vmatprep.subr.bf16.mxu0 %v1644
    %1765 = vmatpush1.bf16.msra.mxu0 %v1643
    %1766 = vmatprep.subr.bf16.mxu0 %v1650
    %1767 = vmatpush1.bf16.msra.mxu0 %v1649
    %1768 = vmatprep.subr.bf16.mxu0 %v1656
    %1769 = vmatpush1.bf16.msra.mxu0 %v1655
    %1770 = vmatprep.subr.bf16.mxu0 %v1662
    %1771 = vmatpush1.bf16.msra.mxu0 %v1661
    %1772 = vmatprep.subr.bf16.mxu0 0
    %1773 = vmatpush1.bf16.msra.mxu0 0
    %1774 = vmatprep.subr.bf16.mxu0 0
    %1775 = vmatpush1.bf16.msra.mxu0 0
    %1776 = vmatprep.subr.bf16.mxu0 0
    %1777 = vmatpush1.bf16.msra.mxu0 0
    %1778 = vmatprep.subr.bf16.mxu0 0
    %1779 = vmatpush1.bf16.msra.mxu0 0
    %1780 = vmatprep.subr.bf16.mxu0 0
    %1781 = vmatpush1.bf16.msra.mxu0 0
    %1782 = vmatprep.subr.bf16.mxu0 0
    %1783 = vmatpush1.bf16.msra.mxu0 0
    %1784 = vmatprep.subr.bf16.mxu0 0
    %1785 = vmatpush1.bf16.msra.mxu0 0
    %1786 = vmatprep.subr.bf16.mxu0 0
    %1787 = vmatpush1.bf16.msra.mxu0 0
    %1788 = vmatprep.mubr.bf16.mxu0 0
    %1789 = vmatmul.mubr.bf16.gmra.mrb[0].mxu0 %v1439
    %v1790 = vpop.f32.mrb[0].mxu0
    %v1791 = vadd.f32 %v1454, %v1790
    %v1792 = vpop.f32.mrb[0].mxu0
    %v1793 = vadd.f32 %v1458, %v1792
    %v1794 = vpop.f32.mrb[0].mxu0
    %v1795 = vadd.f32 %v1454, %v1794
    %v1796 = vpop.f32.mrb[0].mxu0
    %v1797 = vadd.f32 %v1458, %v1796
    %1798 = vdwg.mxu0
    %1799 = vmatprep.subr.bf16.mxu0 %v1622
    %1800 = vmatpush1.bf16.msra.mxu0 %v1621
    %1801 = vmatprep.subr.bf16.mxu0 %v1628
    %1802 = vmatpush1.bf16.msra.mxu0 %v1627
    %1803 = vmatprep.subr.bf16.mxu0 %v1634
    %1804 = vmatpush1.bf16.msra.mxu0 %v1633
    %1805 = vmatprep.subr.bf16.mxu0 %v1640
    %1806 = vmatpush1.bf16.msra.mxu0 %v1639
    %1807 = vmatprep.subr.bf16.mxu0 %v1646
    %1808 = vmatpush1.bf16.msra.mxu0 %v1645
    %1809 = vmatprep.subr.bf16.mxu0 %v1652
    %1810 = vmatpush1.bf16.msra.mxu0 %v1651
    %1811 = vmatprep.subr.bf16.mxu0 %v1658
    %1812 = vmatpush1.bf16.msra.mxu0 %v1657
    %1813 = vmatprep.subr.bf16.mxu0 %v1664
    %1814 = vmatpush1.bf16.msra.mxu0 %v1663
    %1815 = vmatprep.subr.bf16.mxu0 0
    %1816 = vmatpush1.bf16.msra.mxu0 0
    %1817 = vmatprep.subr.bf16.mxu0 0
    %1818 = vmatpush1.bf16.msra.mxu0 0
    %1819 = vmatprep.subr.bf16.mxu0 0
    %1820 = vmatpush1.bf16.msra.mxu0 0
    %1821 = vmatprep.subr.bf16.mxu0 0
    %1822 = vmatpush1.bf16.msra.mxu0 0
    %1823 = vmatprep.subr.bf16.mxu0 0
    %1824 = vmatpush1.bf16.msra.mxu0 0
    %1825 = vmatprep.subr.bf16.mxu0 0
    %1826 = vmatpush1.bf16.msra.mxu0 0
    %1827 = vmatprep.subr.bf16.mxu0 0
    %1828 = vmatpush1.bf16.msra.mxu0 0
    %1829 = vmatprep.subr.bf16.mxu0 0
    %1830 = vmatpush1.bf16.msra.mxu0 0
    %1831 = vmatprep.mubr.bf16.mxu0 0
    %1832 = vmatmul.mubr.bf16.gmra.mrb[0].mxu0 %v1439
    %v1833 = vpop.f32.mrb[0].mxu0
    %v1834 = vadd.f32 %v1462, %v1833
    %v1835 = vpop.f32.mrb[0].mxu0
    %v1836 = vadd.f32 %v1466, %v1835
    %v1837 = vpop.f32.mrb[0].mxu0
    %v1838 = vadd.f32 %v1462, %v1837
    %v1839 = vpop.f32.mrb[0].mxu0
    %v1840 = vadd.f32 %v1466, %v1839
    %1841 = vdwg.mxu0
    %v1842 = vpack.c.bf16 %v1752, %v1748
    %v1843 = vpack.c.bf16 %v1795, %v1791
    %1844 = vmatprep.subr.bf16.mxu0 0
    %1845 = vmatpush1.bf16.xpose.msra.mxu0 %v1843
    %1846 = vmatprep.subr.bf16.mxu0 0
    %1847 = vmatpush1.bf16.xpose.msra.mxu0 0
    %1848 = vmatprep.subr.bf16.mxu0 0
    %1849 = vmatpush1.bf16.xpose.msra.mxu0 0
    %1850 = vmatprep.subr.bf16.mxu0 0
    %1851 = vmatpush1.bf16.xpose.msra.mxu0 0
    %1852 = vmatprep.subr.bf16.mxu0 0
    %1853 = vmatpush1.bf16.xpose.msra.mxu0 0
    %1854 = vmatprep.subr.bf16.mxu0 0
    %1855 = vmatpush1.bf16.xpose.msra.mxu0 0
    %1856 = vmatprep.subr.bf16.mxu0 0
    %1857 = vmatpush1.bf16.xpose.msra.mxu0 0
    %1858 = vmatprep.subr.bf16.mxu0 0
    %1859 = vmatpush1.bf16.xpose.msra.mxu0 0
    %1860 = vmatprep.subr.bf16.mxu0 0
    %1861 = vmatpush1.bf16.xpose.msra.mxu0 0
    %1862 = vmatprep.subr.bf16.mxu0 0
    %1863 = vmatpush1.bf16.xpose.msra.mxu0 0
    %1864 = vmatprep.subr.bf16.mxu0 0
    %1865 = vmatpush1.bf16.xpose.msra.mxu0 0
    %1866 = vmatprep.subr.bf16.mxu0 0
    %1867 = vmatpush1.bf16.xpose.msra.mxu0 0
    %1868 = vmatprep.subr.bf16.mxu0 0
    %1869 = vmatpush1.bf16.xpose.msra.mxu0 0
    %1870 = vmatprep.subr.bf16.mxu0 0
    %1871 = vmatpush1.bf16.xpose.msra.mxu0 0
    %1872 = vmatprep.subr.bf16.mxu0 0
    %1873 = vmatpush1.bf16.xpose.msra.mxu0 0
    %1874 = vmatprep.subr.bf16.mxu0 0
    %1875 = vmatpush1.bf16.xpose.msra.mxu0 0
    %1876 = vmatprep.mubr.bf16.mxu0 0
    %1877 = vmatmul.mubr.bf16.gmra.mrb[0].mxu0 %v1842
    %v1878 = vpop.f32.mrb[0].mxu0
    %v1879 = vadd.f32 0.0, %v1878
    %v1880 = vpop.f32.mrb[0].mxu0
    %v1881 = vpop.f32.mrb[0].mxu0
    %v1882 = vadd.f32 0.0, %v1881
    %v1883 = vpop.f32.mrb[0].mxu0
    %1884 = vdwg.mxu0
    %v1885 = vmul.f32 %v1879, 0.25
    %v1886 = vmul.f32 %v1882, 0.25
    %v1887 = vadd.f32 %v1885, %v193
    %v1888 = vadd.f32 %v1886, %v194
    %v1889 = vsel %vm692, %v1887, -inf
    %1890 = vmax.xlane.f32.xlu0 %v1889
    %v1891 = vpop.xlane.xlu0 %1890
    %v1892 = vsel %vm692, %v1888, -inf
    %1893 = vmax.xlane.f32.xlu0 %v1892
    %v1894 = vpop.xlane.xlu0 %1893
    %v1895 = vsub.f32 %v1887, %v1891
    %v1896 = vsub.f32 %v1888, %v1894
    %v1897 = vmul.f32 %v1895, 1.442695
    %v1898 = vpow.pop %v1897
    %v1899 = vmul.f32 %v1896, 1.442695
    %v1900 = vpow.pop %v1899
    %v1901 = vsel %vm692, %v1898, 0.0
    %1902 = vadd.xlane.f32.xlu0 %v1901
    %v1903 = vpop.xlane.xlu0 %1902
    %v1904 = vsel %vm692, %v1900, 0.0
    %1905 = vadd.xlane.f32.xlu0 %v1904
    %v1906 = vpop.xlane.xlu0 %1905
    %v1907 = vrcp.pop %v1903
    %v1908 = vrcp.pop %v1906
    %v1909 = vmul.f32 %v1898, %v1907
    %v1910 = vmul.f32 %v1900, %v1908
    %v1911 = vpack.c.bf16 %v1910, %v1909
    %v1912 = vpack.c.bf16 %v1838, %v1834
    %v1914 = vsel %vm692, %v1911, 0
    %1916 = vmatprep.subr.bf16.mxu0 0
    %1917 = vmatpush1.bf16.msra.mxu0 %v1912
    %1918 = vmatprep.subr.bf16.mxu0 0
    %1919 = vmatpush1.bf16.msra.mxu0 0
    %1920 = vmatprep.subr.bf16.mxu0 0
    %1921 = vmatpush1.bf16.msra.mxu0 0
    %1922 = vmatprep.subr.bf16.mxu0 0
    %1923 = vmatpush1.bf16.msra.mxu0 0
    %1924 = vmatprep.subr.bf16.mxu0 0
    %1925 = vmatpush1.bf16.msra.mxu0 0
    %1926 = vmatprep.subr.bf16.mxu0 0
    %1927 = vmatpush1.bf16.msra.mxu0 0
    %1928 = vmatprep.subr.bf16.mxu0 0
    %1929 = vmatpush1.bf16.msra.mxu0 0
    %1930 = vmatprep.subr.bf16.mxu0 0
    %1931 = vmatpush1.bf16.msra.mxu0 0
    %1932 = vmatprep.subr.bf16.mxu0 0
    %1933 = vmatpush1.bf16.msra.mxu0 0
    %1934 = vmatprep.subr.bf16.mxu0 0
    %1935 = vmatpush1.bf16.msra.mxu0 0
    %1936 = vmatprep.subr.bf16.mxu0 0
    %1937 = vmatpush1.bf16.msra.mxu0 0
    %1938 = vmatprep.subr.bf16.mxu0 0
    %1939 = vmatpush1.bf16.msra.mxu0 0
    %1940 = vmatprep.subr.bf16.mxu0 0
    %1941 = vmatpush1.bf16.msra.mxu0 0
    %1942 = vmatprep.subr.bf16.mxu0 0
    %1943 = vmatpush1.bf16.msra.mxu0 0
    %1944 = vmatprep.subr.bf16.mxu0 0
    %1945 = vmatpush1.bf16.msra.mxu0 0
    %1946 = vmatprep.subr.bf16.mxu0 0
    %1947 = vmatpush1.bf16.msra.mxu0 0
    %1948 = vmatprep.mubr.bf16.mxu0 0
    %1949 = vmatmul.mubr.bf16.gmra.mrb[0].mxu0 %v1914
    %v1950 = vpop.f32.mrb[0].mxu0
    %v1951 = vadd.f32 0.0, %v1950
    %v1952 = vpop.f32.mrb[0].mxu0
    %v1953 = vpop.f32.mrb[0].mxu0
    %v1954 = vadd.f32 0.0, %v1953
    %v1955 = vpop.f32.mrb[0].mxu0
    %1956 = vdwg.mxu0
    %v1957 = vpack.c.bf16 %v1754, %v1750
    %v1958 = vpack.c.bf16 %v1797, %v1793
    %1959 = vmatprep.subr.bf16.mxu0 0
    %1960 = vmatpush1.bf16.xpose.msra.mxu0 %v1958
    %1961 = vmatprep.subr.bf16.mxu0 0
    %1962 = vmatpush1.bf16.xpose.msra.mxu0 0
    %1963 = vmatprep.subr.bf16.mxu0 0
    %1964 = vmatpush1.bf16.xpose.msra.mxu0 0
    %1965 = vmatprep.subr.bf16.mxu0 0
    %1966 = vmatpush1.bf16.xpose.msra.mxu0 0
    %1967 = vmatprep.subr.bf16.mxu0 0
    %1968 = vmatpush1.bf16.xpose.msra.mxu0 0
    %1969 = vmatprep.subr.bf16.mxu0 0
    %1970 = vmatpush1.bf16.xpose.msra.mxu0 0
    %1971 = vmatprep.subr.bf16.mxu0 0
    %1972 = vmatpush1.bf16.xpose.msra.mxu0 0
    %1973 = vmatprep.subr.bf16.mxu0 0
    %1974 = vmatpush1.bf16.xpose.msra.mxu0 0
    %1975 = vmatprep.subr.bf16.mxu0 0
    %1976 = vmatpush1.bf16.xpose.msra.mxu0 0
    %1977 = vmatprep.subr.bf16.mxu0 0
    %1978 = vmatpush1.bf16.xpose.msra.mxu0 0
    %1979 = vmatprep.subr.bf16.mxu0 0
    %1980 = vmatpush1.bf16.xpose.msra.mxu0 0
    %1981 = vmatprep.subr.bf16.mxu0 0
    %1982 = vmatpush1.bf16.xpose.msra.mxu0 0
    %1983 = vmatprep.subr.bf16.mxu0 0
    %1984 = vmatpush1.bf16.xpose.msra.mxu0 0
    %1985 = vmatprep.subr.bf16.mxu0 0
    %1986 = vmatpush1.bf16.xpose.msra.mxu0 0
    %1987 = vmatprep.subr.bf16.mxu0 0
    %1988 = vmatpush1.bf16.xpose.msra.mxu0 0
    %1989 = vmatprep.subr.bf16.mxu0 0
    %1990 = vmatpush1.bf16.xpose.msra.mxu0 0
    %1991 = vmatprep.mubr.bf16.mxu0 0
    %1992 = vmatmul.mubr.bf16.gmra.mrb[0].mxu0 %v1957
    %v1993 = vpop.f32.mrb[0].mxu0
    %v1994 = vadd.f32 0.0, %v1993
    %v1995 = vpop.f32.mrb[0].mxu0
    %v1996 = vpop.f32.mrb[0].mxu0
    %v1997 = vadd.f32 0.0, %v1996
    %v1998 = vpop.f32.mrb[0].mxu0
    %1999 = vdwg.mxu0
    %v2000 = vmul.f32 %v1994, 0.25
    %v2001 = vmul.f32 %v1997, 0.25
    %v2002 = vadd.f32 %v2000, %v193
    %v2003 = vadd.f32 %v2001, %v194
    %v2004 = vsel %vm692, %v2002, -inf
    %2005 = vmax.xlane.f32.xlu0 %v2004
    %v2006 = vpop.xlane.xlu0 %2005
    %v2007 = vsel %vm692, %v2003, -inf
    %2008 = vmax.xlane.f32.xlu0 %v2007
    %v2009 = vpop.xlane.xlu0 %2008
    %v2010 = vsub.f32 %v2002, %v2006
    %v2011 = vsub.f32 %v2003, %v2009
    %v2012 = vmul.f32 %v2010, 1.442695
    %v2013 = vpow.pop %v2012
    %v2014 = vmul.f32 %v2011, 1.442695
    %v2015 = vpow.pop %v2014
    %v2016 = vsel %vm692, %v2013, 0.0
    %2017 = vadd.xlane.f32.xlu0 %v2016
    %v2018 = vpop.xlane.xlu0 %2017
    %v2019 = vsel %vm692, %v2015, 0.0
    %2020 = vadd.xlane.f32.xlu0 %v2019
    %v2021 = vpop.xlane.xlu0 %2020
    %v2022 = vrcp.pop %v2018
    %v2023 = vrcp.pop %v2021
    %v2024 = vmul.f32 %v2013, %v2022
    %v2025 = vmul.f32 %v2015, %v2023
    %v2026 = vpack.c.bf16 %v2025, %v2024
    %v2027 = vpack.c.bf16 %v1840, %v1836
    %v2029 = vsel %vm692, %v2026, 0
    %2031 = vmatprep.subr.bf16.mxu0 0
    %2032 = vmatpush1.bf16.msra.mxu0 %v2027
    %2033 = vmatprep.subr.bf16.mxu0 0
    %2034 = vmatpush1.bf16.msra.mxu0 0
    %2035 = vmatprep.subr.bf16.mxu0 0
    %2036 = vmatpush1.bf16.msra.mxu0 0
    %2037 = vmatprep.subr.bf16.mxu0 0
    %2038 = vmatpush1.bf16.msra.mxu0 0
    %2039 = vmatprep.subr.bf16.mxu0 0
    %2040 = vmatpush1.bf16.msra.mxu0 0
    %2041 = vmatprep.subr.bf16.mxu0 0
    %2042 = vmatpush1.bf16.msra.mxu0 0
    %2043 = vmatprep.subr.bf16.mxu0 0
    %2044 = vmatpush1.bf16.msra.mxu0 0
    %2045 = vmatprep.subr.bf16.mxu0 0
    %2046 = vmatpush1.bf16.msra.mxu0 0
    %2047 = vmatprep.subr.bf16.mxu0 0
    %2048 = vmatpush1.bf16.msra.mxu0 0
    %2049 = vmatprep.subr.bf16.mxu0 0
    %2050 = vmatpush1.bf16.msra.mxu0 0
    %2051 = vmatprep.subr.bf16.mxu0 0
    %2052 = vmatpush1.bf16.msra.mxu0 0
    %2053 = vmatprep.subr.bf16.mxu0 0
    %2054 = vmatpush1.bf16.msra.mxu0 0
    %2055 = vmatprep.subr.bf16.mxu0 0
    %2056 = vmatpush1.bf16.msra.mxu0 0
    %2057 = vmatprep.subr.bf16.mxu0 0
    %2058 = vmatpush1.bf16.msra.mxu0 0
    %2059 = vmatprep.subr.bf16.mxu0 0
    %2060 = vmatpush1.bf16.msra.mxu0 0
    %2061 = vmatprep.subr.bf16.mxu0 0
    %2062 = vmatpush1.bf16.msra.mxu0 0
    %2063 = vmatprep.mubr.bf16.mxu0 0
    %2064 = vmatmul.mubr.bf16.gmra.mrb[0].mxu0 %v2029
    %v2065 = vpop.f32.mrb[0].mxu0
    %v2066 = vadd.f32 0.0, %v2065
    %v2067 = vpop.f32.mrb[0].mxu0
    %v2068 = vpop.f32.mrb[0].mxu0
    %v2069 = vadd.f32 0.0, %v2068
    %v2070 = vpop.f32.mrb[0].mxu0
    %2071 = vdwg.mxu0
    %s2072 = scalar_lea.vmem %s6, 128
    %v2073 = vld [vmem:[%s2072] sm:$0xf]
    %v2074 = vld [vmem:[%s2072 + $0x4] sm:$0xf]
    %v2075 = vld [vmem:[%s2072 + $0x8] sm:$0xf]
    %v2076 = vld [vmem:[%s2072 + $0xc] sm:$0xf]
    %v2077 = vld [vmem:[%s2072 + $0x10] sm:$0xf]
    %v2078 = vld [vmem:[%s2072 + $0x14] sm:$0xf]
    %v2079 = vld [vmem:[%s2072 + $0x18] sm:$0xf]
    %v2080 = vld [vmem:[%s2072 + $0x1c] sm:$0xf]
    %v2081 = vld [vmem:[%s2072 + $0x20] sm:$0xf]
    %v2082 = vld [vmem:[%s2072 + $0x24] sm:$0xf]
    %v2083 = vld [vmem:[%s2072 + $0x28] sm:$0xf]
    %v2084 = vld [vmem:[%s2072 + $0x2c] sm:$0xf]
    %v2085 = vld [vmem:[%s2072 + $0x30] sm:$0xf]
    %v2086 = vld [vmem:[%s2072 + $0x34] sm:$0xf]
    %v2087 = vld [vmem:[%s2072 + $0x38] sm:$0xf]
    %v2088 = vld [vmem:[%s2072 + $0x3c] sm:$0xf]
    %v2089 = vld [vmem:[%s2072 + $0x40] sm:$0xf]
    %v2090 = vld [vmem:[%s2072 + $0x44] sm:$0xf]
    %v2091 = vld [vmem:[%s2072 + $0x48] sm:$0xf]
    %v2092 = vld [vmem:[%s2072 + $0x4c] sm:$0xf]
    %v2093 = vld [vmem:[%s2072 + $0x50] sm:$0xf]
    %v2094 = vld [vmem:[%s2072 + $0x54] sm:$0xf]
    %v2095 = vld [vmem:[%s2072 + $0x58] sm:$0xf]
    %v2096 = vld [vmem:[%s2072 + $0x5c] sm:$0xf]
    %v2097 = vld [vmem:[%s2072 + $0x60] sm:$0xf]
    %v2098 = vld [vmem:[%s2072 + $0x64] sm:$0xf]
    %v2099 = vld [vmem:[%s2072 + $0x68] sm:$0xf]
    %v2100 = vld [vmem:[%s2072 + $0x6c] sm:$0xf]
    %v2101 = vld [vmem:[%s2072 + $0x70] sm:$0xf]
    %v2102 = vld [vmem:[%s2072 + $0x74] sm:$0xf]
    %v2103 = vld [vmem:[%s2072 + $0x78] sm:$0xf]
    %v2104 = vld [vmem:[%s2072 + $0x7c] sm:$0xf]
    %v2105 = vpack.c.bf16 %v1954, %v1951
    %v2106 = vpack.c.bf16 %v2069, %v2066
    %s2107 = scalar_lea.vmem %s7, 1
    %v2108 = vld [vmem:[%s2107] sm:$0x1]
    %v2110 = vlaneseq
    %v2111 = vshrl.u32 %v2110, 7
    %v2112 = vsub.s32 0, %v2111
    %v2113 = vrot.slane %v2108, %v2112
    %v2147 = vunpack.c.l.b16 %v2073
    %v2148 = vunpack.c.l.b16 %v2074
    %v2149 = vunpack.c.l.b16 %v2075
    %v2150 = vunpack.c.l.b16 %v2076
    %v2151 = vunpack.c.l.b16 %v2077
    %v2152 = vunpack.c.l.b16 %v2078
    %v2153 = vunpack.c.l.b16 %v2079
    %v2154 = vunpack.c.l.b16 %v2080
    %v2155 = vunpack.c.l.b16 %v2081
    %v2156 = vunpack.c.l.b16 %v2082
    %v2157 = vunpack.c.l.b16 %v2083
    %v2158 = vunpack.c.l.b16 %v2084
    %v2159 = vunpack.c.l.b16 %v2085
    %v2160 = vunpack.c.l.b16 %v2086
    %v2161 = vunpack.c.l.b16 %v2087
    %v2162 = vunpack.c.l.b16 %v2088
    %v2163 = vunpack.c.l.b16 %v2089
    %v2164 = vunpack.c.l.b16 %v2090
    %v2165 = vunpack.c.l.b16 %v2091
    %v2166 = vunpack.c.l.b16 %v2092
    %v2167 = vunpack.c.l.b16 %v2093
    %v2168 = vunpack.c.l.b16 %v2094
    %v2169 = vunpack.c.l.b16 %v2095
    %v2170 = vunpack.c.l.b16 %v2096
    %v2171 = vunpack.c.l.b16 %v2097
    %v2172 = vunpack.c.l.b16 %v2098
    %v2173 = vunpack.c.l.b16 %v2099
    %v2174 = vunpack.c.l.b16 %v2100
    %v2175 = vunpack.c.l.b16 %v2101
    %v2176 = vunpack.c.l.b16 %v2102
    %v2177 = vunpack.c.l.b16 %v2103
    %v2178 = vunpack.c.l.b16 %v2104
    %v2179 = vpack.c.b16 %v2148, %v2147
    %v2180 = vpack.c.b16 %v2150, %v2149
    %v2181 = vpack.c.b16 %v2152, %v2151
    %v2182 = vpack.c.b16 %v2154, %v2153
    %v2183 = vpack.c.b16 %v2156, %v2155
    %v2184 = vpack.c.b16 %v2158, %v2157
    %v2185 = vpack.c.b16 %v2160, %v2159
    %v2186 = vpack.c.b16 %v2162, %v2161
    %v2187 = vpack.c.b16 %v2164, %v2163
    %v2188 = vpack.c.b16 %v2166, %v2165
    %v2189 = vpack.c.b16 %v2168, %v2167
    %v2190 = vpack.c.b16 %v2170, %v2169
    %v2191 = vpack.c.b16 %v2172, %v2171
    %v2192 = vpack.c.b16 %v2174, %v2173
    %v2193 = vpack.c.b16 %v2176, %v2175
    %v2194 = vpack.c.b16 %v2178, %v2177
    %2211 = vmatprep.subr.bf16.mxu0 0
    %2212 = vmatpush1.bf16.msra.mxu0 %v2179
    %2213 = vmatprep.subr.bf16.mxu0 0
    %2214 = vmatpush1.bf16.msra.mxu0 %v2180
    %2215 = vmatprep.subr.bf16.mxu0 0
    %2216 = vmatpush1.bf16.msra.mxu0 %v2181
    %2217 = vmatprep.subr.bf16.mxu0 0
    %2218 = vmatpush1.bf16.msra.mxu0 %v2182
    %2219 = vmatprep.subr.bf16.mxu0 0
    %2220 = vmatpush1.bf16.msra.mxu0 %v2183
    %2221 = vmatprep.subr.bf16.mxu0 0
    %2222 = vmatpush1.bf16.msra.mxu0 %v2184
    %2223 = vmatprep.subr.bf16.mxu0 0
    %2224 = vmatpush1.bf16.msra.mxu0 %v2185
    %2225 = vmatprep.subr.bf16.mxu0 0
    %2226 = vmatpush1.bf16.msra.mxu0 %v2186
    %2227 = vmatprep.subr.bf16.mxu0 0
    %2228 = vmatpush1.bf16.msra.mxu0 %v2187
    %2229 = vmatprep.subr.bf16.mxu0 0
    %2230 = vmatpush1.bf16.msra.mxu0 %v2188
    %2231 = vmatprep.subr.bf16.mxu0 0
    %2232 = vmatpush1.bf16.msra.mxu0 %v2189
    %2233 = vmatprep.subr.bf16.mxu0 0
    %2234 = vmatpush1.bf16.msra.mxu0 %v2190
    %2235 = vmatprep.subr.bf16.mxu0 0
    %2236 = vmatpush1.bf16.msra.mxu0 %v2191
    %2237 = vmatprep.subr.bf16.mxu0 0
    %2238 = vmatpush1.bf16.msra.mxu0 %v2192
    %2239 = vmatprep.subr.bf16.mxu0 0
    %2240 = vmatpush1.bf16.msra.mxu0 %v2193
    %2241 = vmatprep.subr.bf16.mxu0 0
    %2242 = vmatpush1.bf16.msra.mxu0 %v2194
    %2243 = vmatprep.mubr.bf16.mxu0 %v2106
    %2244 = vmatmul.mubr.bf16.gmra.mrb[0].mxu0 %v2105
    %v2245 = vpop.f32.mrb[0].mxu0
    %v2246 = vadd.f32 %v2113, %v2245
    %v2247 = vpop.f32.mrb[0].mxu0
    %v2248 = vpop.f32.mrb[0].mxu0
    %v2249 = vadd.f32 %v2113, %v2248
    %v2250 = vpop.f32.mrb[0].mxu0
    %2251 = vdwg.mxu0
    %v2252 = vadd.f32 %v1388, %v2246
    %v2253 = vadd.f32 %v1389, %v2249
    %s2254 = scalar_lea.vmem %s8, 1
    %v2255 = vld [vmem:[%s2254] sm:$0x1]
    %s2256 = scalar_lea.vmem %s9, 1
    %v2257 = vld [vmem:[%s2256] sm:$0x1]
    %2258 = vadd.xlane.f32.xlu0 %v2252
    %v2259 = vpop.xlane.xlu0 %2258
    %2260 = vadd.xlane.f32.xlu0 %v2253
    %v2261 = vpop.xlane.xlu0 %2260
    %v2262 = vmul.f32 %v2259, 0.03125
    %v2263 = vmul.f32 %v2261, 0.03125
    %v2264 = vmul.f32 %v2252, %v2252
    %v2265 = vmul.f32 %v2253, %v2253
    %2266 = vadd.xlane.f32.xlu0 %v2264
    %v2267 = vpop.xlane.xlu0 %2266
    %2268 = vadd.xlane.f32.xlu0 %v2265
    %v2269 = vpop.xlane.xlu0 %2268
    %v2270 = vmul.f32 %v2267, 0.03125
    %v2271 = vmul.f32 %v2269, 0.03125
    %v2272 = vmul.f32 %v2262, %v2262
    %v2273 = vmul.f32 %v2263, %v2263
    %v2274 = vsub.f32 %v2270, %v2272
    %v2275 = vsub.f32 %v2271, %v2273
    %v2276 = vsub.f32 %v2252, %v2262
    %v2277 = vsub.f32 %v2253, %v2263
    %v2278 = vadd.f32 %v2274, 1e-12
    %v2279 = vadd.f32 %v2275, 1e-12
    %v2280 = vrsqrt.pop %v2278
    %v2281 = vrsqrt.pop %v2279
    %v2282 = vmul.f32 %v2276, %v2280
    %v2283 = vmul.f32 %v2277, %v2281
    %v2285 = vlaneseq
    %v2286 = vshrl.u32 %v2285, 7
    %v2287 = vsub.s32 0, %v2286
    %v2288 = vrot.slane %v2255, %v2287
    %v2290 = vmul.f32 %v2282, %v2288
    %v2291 = vmul.f32 %v2283, %v2288
    %v2293 = vlaneseq
    %v2294 = vshrl.u32 %v2293, 7
    %v2295 = vsub.s32 0, %v2294
    %v2296 = vrot.slane %v2257, %v2295
    %v2298 = vadd.f32 %v2290, %v2296
    %v2299 = vadd.f32 %v2291, %v2296
    %s2300 = scalar_lea.vmem %s10, 64
    %v2301 = vld [vmem:[%s2300] sm:$0xf]
    %v2302 = vld [vmem:[%s2300 + $0x4] sm:$0xf]
    %v2303 = vld [vmem:[%s2300 + $0x8] sm:$0xf]
    %v2304 = vld [vmem:[%s2300 + $0xc] sm:$0xf]
    %v2305 = vld [vmem:[%s2300 + $0x10] sm:$0xf]
    %v2306 = vld [vmem:[%s2300 + $0x14] sm:$0xf]
    %v2307 = vld [vmem:[%s2300 + $0x18] sm:$0xf]
    %v2308 = vld [vmem:[%s2300 + $0x1c] sm:$0xf]
    %v2309 = vld [vmem:[%s2300 + $0x20] sm:$0xf]
    %v2310 = vld [vmem:[%s2300 + $0x24] sm:$0xf]
    %v2311 = vld [vmem:[%s2300 + $0x28] sm:$0xf]
    %v2312 = vld [vmem:[%s2300 + $0x2c] sm:$0xf]
    %v2313 = vld [vmem:[%s2300 + $0x30] sm:$0xf]
    %v2314 = vld [vmem:[%s2300 + $0x34] sm:$0xf]
    %v2315 = vld [vmem:[%s2300 + $0x38] sm:$0xf]
    %v2316 = vld [vmem:[%s2300 + $0x3c] sm:$0xf]
    %v2317 = vpack.c.bf16 %v2299, %v2298
    %s2318 = scalar_lea.vmem %s11, 1
    %v2319 = vld [vmem:[%s2318] sm:$0x1]
    %v2321 = vlaneseq
    %v2322 = vshrl.u32 %v2321, 7
    %v2323 = vsub.s32 0, %v2322
    %v2324 = vrot.slane %v2319, %v2323
    %v2342 = vunpack.c.l.b16 %v2301
    %v2343 = vunpack.c.l.b16 %v2302
    %v2344 = vunpack.c.l.b16 %v2303
    %v2345 = vunpack.c.l.b16 %v2304
    %v2346 = vunpack.c.l.b16 %v2305
    %v2347 = vunpack.c.l.b16 %v2306
    %v2348 = vunpack.c.l.b16 %v2307
    %v2349 = vunpack.c.l.b16 %v2308
    %v2350 = vunpack.c.l.b16 %v2309
    %v2351 = vunpack.c.l.b16 %v2310
    %v2352 = vunpack.c.l.b16 %v2311
    %v2353 = vunpack.c.l.b16 %v2312
    %v2354 = vunpack.c.l.b16 %v2313
    %v2355 = vunpack.c.l.b16 %v2314
    %v2356 = vunpack.c.l.b16 %v2315
    %v2357 = vunpack.c.l.b16 %v2316
    %v2358 = vpack.c.b16 %v2343, %v2342
    %v2359 = vpack.c.b16 %v2345, %v2344
    %v2360 = vpack.c.b16 %v2347, %v2346
    %v2361 = vpack.c.b16 %v2349, %v2348
    %v2362 = vpack.c.b16 %v2351, %v2350
    %v2363 = vpack.c.b16 %v2353, %v2352
    %v2364 = vpack.c.b16 %v2355, %v2354
    %v2365 = vpack.c.b16 %v2357, %v2356
    %2374 = vmatprep.subr.bf16.mxu0 0
    %2375 = vmatpush1.bf16.msra.mxu0 %v2358
    %2376 = vmatprep.subr.bf16.mxu0 0
    %2377 = vmatpush1.bf16.msra.mxu0 %v2359
    %2378 = vmatprep.subr.bf16.mxu0 0
    %2379 = vmatpush1.bf16.msra.mxu0 %v2360
    %2380 = vmatprep.subr.bf16.mxu0 0
    %2381 = vmatpush1.bf16.msra.mxu0 %v2361
    %2382 = vmatprep.subr.bf16.mxu0 0
    %2383 = vmatpush1.bf16.msra.mxu0 %v2362
    %2384 = vmatprep.subr.bf16.mxu0 0
    %2385 = vmatpush1.bf16.msra.mxu0 %v2363
    %2386 = vmatprep.subr.bf16.mxu0 0
    %2387 = vmatpush1.bf16.msra.mxu0 %v2364
    %2388 = vmatprep.subr.bf16.mxu0 0
    %2389 = vmatpush1.bf16.msra.mxu0 %v2365
    %2390 = vmatprep.subr.bf16.mxu0 0
    %2391 = vmatpush1.bf16.msra.mxu0 0
    %2392 = vmatprep.subr.bf16.mxu0 0
    %2393 = vmatpush1.bf16.msra.mxu0 0
    %2394 = vmatprep.subr.bf16.mxu0 0
    %2395 = vmatpush1.bf16.msra.mxu0 0
    %2396 = vmatprep.subr.bf16.mxu0 0
    %2397 = vmatpush1.bf16.msra.mxu0 0
    %2398 = vmatprep.subr.bf16.mxu0 0
    %2399 = vmatpush1.bf16.msra.mxu0 0
    %2400 = vmatprep.subr.bf16.mxu0 0
    %2401 = vmatpush1.bf16.msra.mxu0 0
    %2402 = vmatprep.subr.bf16.mxu0 0
    %2403 = vmatpush1.bf16.msra.mxu0 0
    %2404 = vmatprep.subr.bf16.mxu0 0
    %2405 = vmatpush1.bf16.msra.mxu0 0
    %2406 = vmatprep.mubr.bf16.mxu0 0
    %2407 = vmatmul.mubr.bf16.gmra.mrb[0].mxu0 %v2317
    %v2408 = vpop.f32.mrb[0].mxu0
    %v2409 = vadd.f32 %v2324, %v2408
    %v2410 = vpop.f32.mrb[0].mxu0
    %v2411 = vpop.f32.mrb[0].mxu0
    %v2412 = vadd.f32 %v2324, %v2411
    %v2413 = vpop.f32.mrb[0].mxu0
    %2414 = vdwg.mxu0
    %v2415 = vmul.f32 %v2409, %v2409
    %v2416 = vmul.f32 %v2412, %v2412
    %v2417 = vmul.f32 %v2409, %v2415
    %v2418 = vmul.f32 %v2412, %v2416
    %v2419 = vmul.f32 %v2417, 0.044715
    %v2420 = vmul.f32 %v2418, 0.044715
    %v2421 = vadd.f32 %v2409, %v2419
    %v2422 = vadd.f32 %v2412, %v2420
    %v2423 = vmul.f32 %v2421, 0.7978846
    %v2424 = vmul.f32 %v2422, 0.7978846
    %v2425 = vtanh.pop %v2423
    %v2426 = vtanh.pop %v2424
    %v2427 = vadd.f32 %v2425, 1.0
    %v2428 = vadd.f32 %v2426, 1.0
    %v2429 = vmul.f32 %v2427, 0.5
    %v2430 = vmul.f32 %v2428, 0.5
    %v2431 = vmul.f32 %v2409, %v2429
    %v2432 = vmul.f32 %v2412, %v2430
    %s2433 = scalar_lea.vmem [#allocation5], 64
    %v2434 = vld [vmem:[%s2433] sm:$0xf]
    %v2435 = vld [vmem:[%s2433 + $0x4] sm:$0xf]
    %v2436 = vld [vmem:[%s2433 + $0x8] sm:$0xf]
    %v2437 = vld [vmem:[%s2433 + $0xc] sm:$0xf]
    %v2438 = vld [vmem:[%s2433 + $0x10] sm:$0xf]
    %v2439 = vld [vmem:[%s2433 + $0x14] sm:$0xf]
    %v2440 = vld [vmem:[%s2433 + $0x18] sm:$0xf]
    %v2441 = vld [vmem:[%s2433 + $0x1c] sm:$0xf]
    %v2442 = vld [vmem:[%s2433 + $0x20] sm:$0xf]
    %v2443 = vld [vmem:[%s2433 + $0x24] sm:$0xf]
    %v2444 = vld [vmem:[%s2433 + $0x28] sm:$0xf]
    %v2445 = vld [vmem:[%s2433 + $0x2c] sm:$0xf]
    %v2446 = vld [vmem:[%s2433 + $0x30] sm:$0xf]
    %v2447 = vld [vmem:[%s2433 + $0x34] sm:$0xf]
    %v2448 = vld [vmem:[%s2433 + $0x38] sm:$0xf]
    %v2449 = vld [vmem:[%s2433 + $0x3c] sm:$0xf]
    %v2450 = vpack.c.bf16 %v2432, %v2431
    %s2451 = scalar_lea.vmem %s13, 1
    %v2452 = vld [vmem:[%s2451] sm:$0x1]
    %v2454 = vlaneseq
    %v2455 = vshrl.u32 %v2454, 7
    %v2456 = vsub.s32 0, %v2455
    %v2457 = vrot.slane %v2452, %v2456
    %v2475 = vunpack.c.l.b16 %v2434
    %v2476 = vunpack.c.l.b16 %v2435
    %v2477 = vunpack.c.l.b16 %v2436
    %v2478 = vunpack.c.l.b16 %v2437
    %v2479 = vunpack.c.l.b16 %v2438
    %v2480 = vunpack.c.l.b16 %v2439
    %v2481 = vunpack.c.l.b16 %v2440
    %v2482 = vunpack.c.l.b16 %v2441
    %v2483 = vunpack.c.l.b16 %v2442
    %v2484 = vunpack.c.l.b16 %v2443
    %v2485 = vunpack.c.l.b16 %v2444
    %v2486 = vunpack.c.l.b16 %v2445
    %v2487 = vunpack.c.l.b16 %v2446
    %v2488 = vunpack.c.l.b16 %v2447
    %v2489 = vunpack.c.l.b16 %v2448
    %v2490 = vunpack.c.l.b16 %v2449
    %v2491 = vpack.c.b16 %v2476, %v2475
    %v2492 = vpack.c.b16 %v2478, %v2477
    %v2493 = vpack.c.b16 %v2480, %v2479
    %v2494 = vpack.c.b16 %v2482, %v2481
    %v2495 = vpack.c.b16 %v2484, %v2483
    %v2496 = vpack.c.b16 %v2486, %v2485
    %v2497 = vpack.c.b16 %v2488, %v2487
    %v2498 = vpack.c.b16 %v2490, %v2489
    %2507 = vmatprep.subr.bf16.mxu0 0
    %2508 = vmatpush1.bf16.msra.mxu0 %v2491
    %2509 = vmatprep.subr.bf16.mxu0 0
    %2510 = vmatpush1.bf16.msra.mxu0 %v2492
    %2511 = vmatprep.subr.bf16.mxu0 0
    %2512 = vmatpush1.bf16.msra.mxu0 %v2493
    %2513 = vmatprep.subr.bf16.mxu0 0
    %2514 = vmatpush1.bf16.msra.mxu0 %v2494
    %2515 = vmatprep.subr.bf16.mxu0 0
    %2516 = vmatpush1.bf16.msra.mxu0 %v2495
    %2517 = vmatprep.subr.bf16.mxu0 0
    %2518 = vmatpush1.bf16.msra.mxu0 %v2496
    %2519 = vmatprep.subr.bf16.mxu0 0
    %2520 = vmatpush1.bf16.msra.mxu0 %v2497
    %2521 = vmatprep.subr.bf16.mxu0 0
    %2522 = vmatpush1.bf16.msra.mxu0 %v2498
    %2523 = vmatprep.subr.bf16.mxu0 0
    %2524 = vmatpush1.bf16.msra.mxu0 0
    %2525 = vmatprep.subr.bf16.mxu0 0
    %2526 = vmatpush1.bf16.msra.mxu0 0
    %2527 = vmatprep.subr.bf16.mxu0 0
    %2528 = vmatpush1.bf16.msra.mxu0 0
    %2529 = vmatprep.subr.bf16.mxu0 0
    %2530 = vmatpush1.bf16.msra.mxu0 0
    %2531 = vmatprep.subr.bf16.mxu0 0
    %2532 = vmatpush1.bf16.msra.mxu0 0
    %2533 = vmatprep.subr.bf16.mxu0 0
    %2534 = vmatpush1.bf16.msra.mxu0 0
    %2535 = vmatprep.subr.bf16.mxu0 0
    %2536 = vmatpush1.bf16.msra.mxu0 0
    %2537 = vmatprep.subr.bf16.mxu0 0
    %2538 = vmatpush1.bf16.msra.mxu0 0
    %2539 = vmatprep.mubr.bf16.mxu0 0
    %2540 = vmatmul.mubr.bf16.gmra.mrb[0].mxu0 %v2450
    %v2541 = vpop.f32.mrb[0].mxu0
    %v2542 = vadd.f32 %v2457, %v2541
    %v2543 = vpop.f32.mrb[0].mxu0
    %v2544 = vpop.f32.mrb[0].mxu0
    %v2545 = vadd.f32 %v2457, %v2544
    %v2546 = vpop.f32.mrb[0].mxu0
    %2547 = vdwg.mxu0
    %v2548 = vadd.f32 %v2298, %v2542
    %v2549 = vadd.f32 %v2299, %v2545
    %s2550 = scalar_lea.vmem [#allocation7], 1
    %v2551 = vld [vmem:[%s2550] sm:$0x1]
    %s2552 = scalar_lea.vmem [#allocation8], 1
    %v2553 = vld [vmem:[%s2552] sm:$0x1]
    %2554 = vadd.xlane.f32.xlu0 %v2548
    %v2555 = vpop.xlane.xlu0 %2554
    %2556 = vadd.xlane.f32.xlu0 %v2549
    %v2557 = vpop.xlane.xlu0 %2556
    %v2558 = vmul.f32 %v2555, 0.03125
    %v2559 = vmul.f32 %v2557, 0.03125
    %v2560 = vmul.f32 %v2548, %v2548
    %v2561 = vmul.f32 %v2549, %v2549
    %2562 = vadd.xlane.f32.xlu0 %v2560
    %v2563 = vpop.xlane.xlu0 %2562
    %2564 = vadd.xlane.f32.xlu0 %v2561
    %v2565 = vpop.xlane.xlu0 %2564
    %v2566 = vmul.f32 %v2563, 0.03125
    %v2567 = vmul.f32 %v2565, 0.03125
    %v2568 = vmul.f32 %v2558, %v2558
    %v2569 = vmul.f32 %v2559, %v2559
    %v2570 = vsub.f32 %v2566, %v2568
    %v2571 = vsub.f32 %v2567, %v2569
    %v2572 = vsub.f32 %v2548, %v2558
    %v2573 = vsub.f32 %v2549, %v2559
    %v2574 = vadd.f32 %v2570, 1e-12
    %v2575 = vadd.f32 %v2571, 1e-12
    %v2576 = vrsqrt.pop %v2574
    %v2577 = vrsqrt.pop %v2575
    %v2578 = vmul.f32 %v2572, %v2576
    %v2579 = vmul.f32 %v2573, %v2577
    %v2581 = vlaneseq
    %v2582 = vshrl.u32 %v2581, 7
    %v2583 = vsub.s32 0, %v2582
    %v2584 = vrot.slane %v2551, %v2583
    %v2586 = vmul.f32 %v2578, %v2584
    %v2587 = vmul.f32 %v2579, %v2584
    %v2589 = vlaneseq
    %v2590 = vshrl.u32 %v2589, 7
    %v2591 = vsub.s32 0, %v2590
    %v2592 = vrot.slane %v2553, %v2591
    %v2594 = vadd.f32 %v2586, %v2592
    %v2595 = vadd.f32 %v2587, %v2592
    %v2597 = vrot.slane %v2595, 7
    %vm2599 = vcmask 1040384
    %v2600 = vsel %vm2599, %v2594, %v2597
    %v2601 = vld [vmem:[#allocation10] sm:$0xf]
    %v2602 = vld [vmem:[#allocation10 + $0x4] sm:$0xf]
    %v2603 = vld [vmem:[#allocation10 + $0x8] sm:$0xf]
    %v2604 = vld [vmem:[#allocation10 + $0xc] sm:$0xf]
    %v2605 = vld [vmem:[#allocation10 + $0x10] sm:$0xf]
    %v2606 = vld [vmem:[#allocation10 + $0x14] sm:$0xf]
    %v2607 = vld [vmem:[#allocation10 + $0x18] sm:$0xf]
    %v2608 = vld [vmem:[#allocation10 + $0x1c] sm:$0xf]
    %v2609 = vld [vmem:[#allocation10 + $0x20] sm:$0xf]
    %v2610 = vld [vmem:[#allocation10 + $0x24] sm:$0xf]
    %v2611 = vld [vmem:[#allocation10 + $0x28] sm:$0xf]
    %v2612 = vld [vmem:[#allocation10 + $0x2c] sm:$0xf]
    %v2613 = vld [vmem:[#allocation10 + $0x30] sm:$0xf]
    %v2614 = vld [vmem:[#allocation10 + $0x34] sm:$0xf]
    %v2615 = vld [vmem:[#allocation10 + $0x38] sm:$0xf]
    %v2616 = vld [vmem:[#allocation10 + $0x3c] sm:$0xf]
    %v2617 = vpack.c.bf16 %v2600, %v2600
    %v2618 = vld [vmem:[#allocation11] sm:$0x1]
    %v2620 = vlaneseq
    %v2621 = vshrl.u32 %v2620, 7
    %v2622 = vsub.s32 0, %v2621
    %v2623 = vrot.slane %v2618, %v2622
    %v2641 = vunpack.c.l.b16 %v2601
    %v2642 = vunpack.c.l.b16 %v2602
    %v2643 = vunpack.c.l.b16 %v2603
    %v2644 = vunpack.c.l.b16 %v2604
    %v2645 = vunpack.c.l.b16 %v2605
    %v2646 = vunpack.c.l.b16 %v2606
    %v2647 = vunpack.c.l.b16 %v2607
    %v2648 = vunpack.c.l.b16 %v2608
    %v2649 = vunpack.c.l.b16 %v2609
    %v2650 = vunpack.c.l.b16 %v2610
    %v2651 = vunpack.c.l.b16 %v2611
    %v2652 = vunpack.c.l.b16 %v2612
    %v2653 = vunpack.c.l.b16 %v2613
    %v2654 = vunpack.c.l.b16 %v2614
    %v2655 = vunpack.c.l.b16 %v2615
    %v2656 = vunpack.c.l.b16 %v2616
    %v2657 = vpack.c.b16 %v2642, %v2641
    %v2658 = vpack.c.b16 %v2644, %v2643
    %v2659 = vpack.c.b16 %v2646, %v2645
    %v2660 = vpack.c.b16 %v2648, %v2647
    %v2661 = vpack.c.b16 %v2650, %v2649
    %v2662 = vpack.c.b16 %v2652, %v2651
    %v2663 = vpack.c.b16 %v2654, %v2653
    %v2664 = vpack.c.b16 %v2656, %v2655
    %2673 = vmatprep.subr.bf16.mxu0 0
    %2674 = vmatpush1.bf16.msra.mxu0 %v2657
    %2675 = vmatprep.subr.bf16.mxu0 0
    %2676 = vmatpush1.bf16.msra.mxu0 %v2658
    %2677 = vmatprep.subr.bf16.mxu0 0
    %2678 = vmatpush1.bf16.msra.mxu0 %v2659
    %2679 = vmatprep.subr.bf16.mxu0 0
    %2680 = vmatpush1.bf16.msra.mxu0 %v2660
    %2681 = vmatprep.subr.bf16.mxu0 0
    %2682 = vmatpush1.bf16.msra.mxu0 %v2661
    %2683 = vmatprep.subr.bf16.mxu0 0
    %2684 = vmatpush1.bf16.msra.mxu0 %v2662
    %2685 = vmatprep.subr.bf16.mxu0 0
    %2686 = vmatpush1.bf16.msra.mxu0 %v2663
    %2687 = vmatprep.subr.bf16.mxu0 0
    %2688 = vmatpush1.bf16.msra.mxu0 %v2664
    %2689 = vmatprep.subr.bf16.mxu0 0
    %2690 = vmatpush1.bf16.msra.mxu0 0
    %2691 = vmatprep.subr.bf16.mxu0 0
    %2692 = vmatpush1.bf16.msra.mxu0 0
    %2693 = vmatprep.subr.bf16.mxu0 0
    %2694 = vmatpush1.bf16.msra.mxu0 0
    %2695 = vmatprep.subr.bf16.mxu0 0
    %2696 = vmatpush1.bf16.msra.mxu0 0
    %2697 = vmatprep.subr.bf16.mxu0 0
    %2698 = vmatpush1.bf16.msra.mxu0 0
    %2699 = vmatprep.subr.bf16.mxu0 0
    %2700 = vmatpush1.bf16.msra.mxu0 0
    %2701 = vmatprep.subr.bf16.mxu0 0
    %2702 = vmatpush1.bf16.msra.mxu0 0
    %2703 = vmatprep.subr.bf16.mxu0 0
    %2704 = vmatpush1.bf16.msra.mxu0 0
    %2705 = vmatprep.mubr.bf16.mxu0 0
    %2706 = vmatmul.mubr.bf16.gmra.mrb[0].mxu0 %v2617
    %v2707 = vpop.f32.mrb[0].mxu0
    %v2708 = vadd.f32 %v2623, %v2707
    %v2709 = vpop.f32.mrb[0].mxu0
    %v2710 = vpop.f32.mrb[0].mxu0
    %v2711 = vpop.f32.mrb[0].mxu0
    %2712 = vdwg.mxu0
    %v2713 = vtanh.pop %v2708
    %v2714 = vld [vmem:[%s18] sm:$0xf]
    %v2715 = vld [vmem:[%s18 + $0x4] sm:$0xf]
    %v2716 = vld [vmem:[%s18 + $0x8] sm:$0xf]
    %v2717 = vld [vmem:[%s18 + $0xc] sm:$0xf]
    %v2718 = vld [vmem:[%s18 + $0x10] sm:$0xf]
    %v2719 = vld [vmem:[%s18 + $0x14] sm:$0xf]
    %v2720 = vld [vmem:[%s18 + $0x18] sm:$0xf]
    %v2721 = vld [vmem:[%s18 + $0x1c] sm:$0xf]
    %v2722 = vld [vmem:[%s18 + $0x20] sm:$0xf]
    %v2723 = vld [vmem:[%s18 + $0x24] sm:$0xf]
    %v2724 = vld [vmem:[%s18 + $0x28] sm:$0xf]
    %v2725 = vld [vmem:[%s18 + $0x2c] sm:$0xf]
    %v2726 = vld [vmem:[%s18 + $0x30] sm:$0xf]
    %v2727 = vld [vmem:[%s18 + $0x34] sm:$0xf]
    %v2728 = vld [vmem:[%s18 + $0x38] sm:$0xf]
    %v2729 = vld [vmem:[%s18 + $0x3c] sm:$0xf]
    %v2730 = vpack.c.bf16 %v2713, %v2713
    %v2731 = vld [vmem:[%s19] sm:$0x1]
    %v2733 = vlaneseq
    %v2734 = vshrl.u32 %v2733, 7
    %v2735 = vsub.s32 0, %v2734
    %v2736 = vrot.slane %v2731, %v2735
    %v2754 = vunpack.c.l.b16 %v2714
    %v2755 = vunpack.c.l.b16 %v2715
    %v2756 = vunpack.c.l.b16 %v2716
    %v2757 = vunpack.c.l.b16 %v2717
    %v2758 = vunpack.c.l.b16 %v2718
    %v2759 = vunpack.c.l.b16 %v2719
    %v2760 = vunpack.c.l.b16 %v2720
    %v2761 = vunpack.c.l.b16 %v2721
    %v2762 = vunpack.c.l.b16 %v2722
    %v2763 = vunpack.c.l.b16 %v2723
    %v2764 = vunpack.c.l.b16 %v2724
    %v2765 = vunpack.c.l.b16 %v2725
    %v2766 = vunpack.c.l.b16 %v2726
    %v2767 = vunpack.c.l.b16 %v2727
    %v2768 = vunpack.c.l.b16 %v2728
    %v2769 = vunpack.c.l.b16 %v2729
    %v2770 = vpack.c.b16 %v2755, %v2754
    %v2771 = vpack.c.b16 %v2757, %v2756
    %v2772 = vpack.c.b16 %v2759, %v2758
    %v2773 = vpack.c.b16 %v2761, %v2760
    %v2774 = vpack.c.b16 %v2763, %v2762
    %v2775 = vpack.c.b16 %v2765, %v2764
    %v2776 = vpack.c.b16 %v2767, %v2766
    %v2777 = vpack.c.b16 %v2769, %v2768
    %2786 = vmatprep.subr.bf16.mxu0 0
    %2787 = vmatpush1.bf16.msra.mxu0 %v2770
    %2788 = vmatprep.subr.bf16.mxu0 0
    %2789 = vmatpush1.bf16.msra.mxu0 %v2771
    %2790 = vmatprep.subr.bf16.mxu0 0
    %2791 = vmatpush1.bf16.msra.mxu0 %v2772
    %2792 = vmatprep.subr.bf16.mxu0 0
    %2793 = vmatpush1.bf16.msra.mxu0 %v2773
    %2794 = vmatprep.subr.bf16.mxu0 0
    %2795 = vmatpush1.bf16.msra.mxu0 %v2774
    %2796 = vmatprep.subr.bf16.mxu0 0
    %2797 = vmatpush1.bf16.msra.mxu0 %v2775
    %2798 = vmatprep.subr.bf16.mxu0 0
    %2799 = vmatpush1.bf16.msra.mxu0 %v2776
    %2800 = vmatprep.subr.bf16.mxu0 0
    %2801 = vmatpush1.bf16.msra.mxu0 %v2777
    %2802 = vmatprep.subr.bf16.mxu0 0
    %2803 = vmatpush1.bf16.msra.mxu0 0
    %2804 = vmatprep.subr.bf16.mxu0 0
    %2805 = vmatpush1.bf16.msra.mxu0 0
    %2806 = vmatprep.subr.bf16.mxu0 0
    %2807 = vmatpush1.bf16.msra.mxu0 0
    %2808 = vmatprep.subr.bf16.mxu0 0
    %2809 = vmatpush1.bf16.msra.mxu0 0
    %2810 = vmatprep.subr.bf16.mxu0 0
    %2811 = vmatpush1.bf16.msra.mxu0 0
    %2812 = vmatprep.subr.bf16.mxu0 0
    %2813 = vmatpush1.bf16.msra.mxu0 0
    %2814 = vmatprep.subr.bf16.mxu0 0
    %2815 = vmatpush1.bf16.msra.mxu0 0
    %2816 = vmatprep.subr.bf16.mxu0 0
    %2817 = vmatpush1.bf16.msra.mxu0 0
    %2818 = vmatprep.mubr.bf16.mxu0 0
    %2819 = vmatmul.mubr.bf16.gmra.mrb[0].mxu0 %v2730
    %v2820 = vpop.f32.mrb[0].mxu0
    %v2821 = vadd.f32 %v2736, %v2820
    %v2822 = vpop.f32.mrb[0].mxu0
    %v2823 = vpop.f32.mrb[0].mxu0
    %v2824 = vpop.f32.mrb[0].mxu0
    %2825 = vdwg.mxu0
    %vm2826 = vcmask 1041408
    %v2827 = vsel %vm2826, %v2821, -inf
    %2828 = vmax.xlane.f32.xlu0 %v2827
    %v2829 = vpop.xlane.xlu0 %2828
    %v2830 = vsub.f32 %v2821, %v2829
    %v2831 = vmul.f32 %v2830, 1.442695
    %v2832 = vpow.pop %v2831
    %v2833 = vsel %vm2826, %v2832, 0.0
    %2834 = vadd.xlane.f32.xlu0 %v2833
    %v2835 = vpop.xlane.xlu0 %2834
    %v2836 = vrcp.pop %v2835
    %v2837 = vmul.f32 %v2832, %v2836
    %2838 = vst [vmem:[#allocation13] sm:$0x3] %v2837
    // Predicated region
    $region106: #{bert_base_forward.1} parent=1 // pred_check
      _
    $region107: #{bert_base_forward.1} parent=1 // pred_check_branch
      %2840 = sbr.rel (0) target = $region109
    $region108: #{bert_base_forward.1} parent=1 // pred_region
      %s2842 = ssub.s32 32, 32
      %2843 = vsyncadd [#allocation4], %s2842
      %s2845 = sshll.u32 [#allocation13], 4
      %s2846 = int_to_ptr.vmem [resolvable:$true] %s2845
      %2848 = dma.vmem_to_hbm [thread:$0]  %s2846, 32, %s20, [#allocation4]
    $region109: #{bert_base_forward.1} parent=1 // pred_fallthru
      _
    // Predicated region
    $region110: #{bert_base_forward.1} parent=1 // pred_check
      _
    $region111: #{bert_base_forward.1} parent=1 // pred_check_branch
      %2850 = sbr.rel (0) target = $region113
    $region112: #{bert_base_forward.1} parent=1 // pred_region
      %2851 = dma.done [#allocation4], 32
    $region113: #{bert_base_forward.1} parent=1 // pred_fallthru
      _
    %2852 = vsyncpa [#allocation3], 1
    %2853 = vsyncpa [#allocation6], 1
    %2854 = vsyncpa [#allocation9], 1
    %2855 = vsyncpa [#allocation12], 1
    %2856 = vsyncpa [#allocation4], 1

</llo_original>
